<compile_context>
chip_gen: v7x
topology: tpu7x:2x2x1
jax: 0.10.0
libtpu: 0.0.40
codegen_flags: <defaults>
</compile_context>

<pallas_src>
import math
import functools

import jax
import jax.numpy as jnp
from jax.experimental import pallas as pl
from jax.experimental.pallas import tpu as pltpu


def _round_up(x, m):
    return ((x + m - 1) // m) * m


def _pad_cols(x, cols):
    pad = cols - x.shape[-1]
    if pad == 0:
        return x
    return jnp.pad(x, [(0, 0)] * (x.ndim - 1) + [(0, pad)])


def _row_shift(x, off):
    """y[i] = x[(i + off) % R].  Wrapped rows are always masked invalid by the caller
    (the in-sequence position mask), so wrap never leaks across sequence boundaries."""
    if off == 0:
        return x
    return pltpu.roll(x, shift=(-off) % x.shape[0], axis=0)   # XLU sublane rotate


def _hgner_fused_kernel(seq_ref, wf_ih_ref, wf_hh_ref, bf_ref,
                        wb_ih_ref, wb_hh_ref, bb_ref, wcls_ref, bcls_ref,
                        out_ref, *, windows, hidden, seq_len, d_model):
    """For every row (token), run one BiLSTM per window size over the clipped window
    [i-w//2, i+w//2], dot-attend the window features against the token, add the residual
    and apply the classifier linear.  Everything stays in VMEM."""
    H = hidden
    seq = seq_ref[...]                                   # (R, D) f32
    R = seq.shape[0]
    seq_bf = seq.astype(jnp.bfloat16)
    # in-sequence position of every row (batch is folded into rows)
    pos = jax.lax.broadcasted_iota(jnp.int32, (R, 1), 0) % seq_len

    locals_list = []
    for wdx, window in enumerate(windows):
        wf_ih = wf_ih_ref[wdx]                           # (D, Gpad) bf16
        wf_hh = wf_hh_ref[wdx]                           # (H, Gpad) bf16
        bfv = bf_ref[wdx]                                # (1, Gpad) f32
        wb_ih = wb_ih_ref[wdx]
        wb_hh = wb_hh_ref[wdx]
        bbv = bb_ref[wdx]

        # Hoisted input projections (bias folded in): one big MXU matmul per direction,
        # shifted per window step instead of re-projecting shifted inputs.
        proj_f = jnp.dot(seq_bf, wf_ih, preferred_element_type=jnp.float32) + bfv
        proj_b = jnp.dot(seq_bf, wb_ih, preferred_element_type=jnp.float32) + bbv

        half = window // 2
        zeros = jnp.zeros((R, H), jnp.float32)
        hf, cf, hb, cb = zeros, zeros, zeros, zeros

        def cell(h, c, x_gates, w_hh, valid):
            # recurrence keeps only the small h @ W_hh matmul (bf16 operands, f32 acc)
            gates = x_gates + jnp.dot(h.astype(jnp.bfloat16), w_hh,
                                      preferred_element_type=jnp.float32)
            i_g = jax.nn.sigmoid(gates[:, 0 * H:1 * H])
            f_g = jax.nn.sigmoid(gates[:, 1 * H:2 * H])
            g_g = jnp.tanh(gates[:, 2 * H:3 * H])
            o_g = jax.nn.sigmoid(gates[:, 3 * H:4 * H])
            c_new = f_g * c + i_g * g_g
            h_new = o_g * jnp.tanh(c_new)
            # masked step: out-of-range window index leaves the state untouched
            return jnp.where(valid, h_new, h), jnp.where(valid, c_new, c)

        for t in range(2 * half + 1):                    # static unroll (window is compile-time)
            off_f = t - half                             # forward walks the window left -> right
            off_b = half - t                             # backward walks the window right -> left
            vf = (pos + off_f >= 0) & (pos + off_f <= seq_len - 1)
            vb = (pos + off_b >= 0) & (pos + off_b <= seq_len - 1)
            hf, cf = cell(hf, cf, _row_shift(proj_f, off_f), wf_hh, vf)
            hb, cb = cell(hb, cb, _row_shift(proj_b, off_b), wb_hh, vb)

        locals_list.append(jnp.concatenate([hf, hb], axis=-1))   # (R, D) == out[:, -1, :]

    # dot-attention over windows + residual + classifier, all in-kernel
    scale = 1.0 / math.sqrt(float(d_model))
    cols = [jnp.sum(seq * lw, axis=-1, keepdims=True) * scale for lw in locals_list]
    scores = jnp.concatenate(cols, axis=-1)              # (R, nW)
    m = jnp.max(scores, axis=-1, keepdims=True)
    e = jnp.exp(scores - m)
    inv = pl.reciprocal(jnp.sum(e, axis=-1, keepdims=True), approx=True)   # EUP slot

    local = jnp.zeros_like(seq)
    for wdx, lw in enumerate(locals_list):
        local = local + (e[:, wdx:wdx + 1] * inv) * lw

    fused = seq + local                                   # residual add
    out_ref[...] = (jnp.dot(fused.astype(jnp.bfloat16), wcls_ref[...],
                            preferred_element_type=jnp.float32) + bcls_ref[...])


def fused_multiwindow_dot_att(seq, lstm_params, w_lin_t, b_lin, windows, d_model,
                              *, seqs_per_block=1):
    """Fused multi-window BiLSTM + dot-att + linear.  seq: (B, L, D) f32."""
    B, L, D = seq.shape
    H = D // 2
    C = w_lin_t.shape[1]
    nW = len(windows)
    Gpad = _round_up(4 * H, 128)          # lane-aligned gate dim (dense MXU tiles)
    Cpad = _round_up(C, 128)              # lane-dense classifier output (unmasked vst)

    def stack_pad(key, cols, dtype):
        return jnp.stack([_pad_cols(p[key], cols) for p in lstm_params]).astype(dtype)

    wf_ih = stack_pad("wf_ih", Gpad, jnp.bfloat16)   # (nW, D, Gpad)
    wf_hh = stack_pad("wf_hh", Gpad, jnp.bfloat16)   # (nW, H, Gpad)
    bf = stack_pad("bf", Gpad, jnp.float32)          # (nW, 1, Gpad)
    wb_ih = stack_pad("wb_ih", Gpad, jnp.bfloat16)
    wb_hh = stack_pad("wb_hh", Gpad, jnp.bfloat16)
    bb = stack_pad("bb", Gpad, jnp.float32)

    w_cls = _pad_cols(w_lin_t, Cpad).astype(jnp.bfloat16)   # (D, Cpad)
    b_cls = _pad_cols(b_lin, Cpad).astype(jnp.float32)      # (1, Cpad)

    assert B % seqs_per_block == 0
    R = seqs_per_block * L                # rows per block (batch folded into rows)
    n_blocks = (B * L) // R
    seq2d = seq.reshape(B * L, D)

    kernel = functools.partial(_hgner_fused_kernel, windows=tuple(windows),
                               hidden=H, seq_len=L, d_model=d_model)

    out2d = pl.pallas_call(
        kernel,
        out_shape=jax.ShapeDtypeStruct((B * L, Cpad), jnp.float32),
        grid=(n_blocks,),
        in_specs=[
            pl.BlockSpec((R, D), lambda g: (g, 0)),
            pl.BlockSpec((nW, D, Gpad), lambda g: (0, 0, 0)),
            pl.BlockSpec((nW, H, Gpad), lambda g: (0, 0, 0)),
            pl.BlockSpec((nW, 1, Gpad), lambda g: (0, 0, 0)),
            pl.BlockSpec((nW, D, Gpad), lambda g: (0, 0, 0)),
            pl.BlockSpec((nW, H, Gpad), lambda g: (0, 0, 0)),
            pl.BlockSpec((nW, 1, Gpad), lambda g: (0, 0, 0)),
            pl.BlockSpec((D, Cpad), lambda g: (0, 0)),
            pl.BlockSpec((1, Cpad), lambda g: (0, 0)),
        ],
        out_specs=pl.BlockSpec((R, Cpad), lambda g: (g, 0)),
        compiler_params=pltpu.CompilerParams(
            dimension_semantics=("parallel",),
            # explicit VMEM budget; at production scale (D=768, L=512, nW>=4) tile L with a
            # halo of max(window)//2 rows and keep this within the v7x 64 MiB physical VMEM.
            vmem_limit_bytes=32 * 1024 * 1024,
        ),
    )(seq2d, wf_ih, wf_hh, bf, wb_ih, wb_hh, bb, w_cls, b_cls)

    return out2d[:, :C].reshape(B, L, C)


def valid_compact(seq, valid_ids):
    """Port of the valid_ids loop: compact tokens with valid_ids==1 to the front,
    zero-fill the rest (plain-JAX glue; cumsum scatter, order-preserving)."""
    B, L, D = seq.shape
    v = valid_ids.astype(jnp.int32)
    dest = jnp.cumsum(v, axis=1) - 1
    dest = jnp.where(v == 1, dest, L)                    # invalid tokens -> dump row (dropped)
    out = jnp.zeros((B, L + 1, D), seq.dtype)
    out = out.at[jnp.arange(B)[:, None], dest].set(seq)
    return out[:, :L, :]


def encode(input_ids, valid_ids, emb):
    seq = emb[input_ids].astype(jnp.float32)             # BERT stand-in (glue)
    seq = valid_compact(seq, valid_ids)                  # valid_ids gather
    # dropout: eval mode -> identity
    return seq


def hgner_forward(input_ids, valid_ids, emb, lstm_params, w_lin_t, b_lin,
                  windows_list, d_model):
    seq = encode(input_ids, valid_ids, emb)
    return fused_multiwindow_dot_att(seq, lstm_params, w_lin_t, b_lin,
                                     tuple(windows_list), d_model)


# ---------------------------------------------------------------------------
# Pure-JAX reference (literal port of windows_sequence / dot-att / linear), f32.
# ---------------------------------------------------------------------------
def ref_forward(seq, lstm_params, w_lin_t, b_lin, windows_list, d_model):
    B, L, D = seq.shape
    H = D // 2

    def lstm_last_h(x, w_ih, w_hh, b):                   # x: (B, T, D) -> final hidden (B, H)
        def step(carry, xt):
            h, c = carry
            g = xt @ w_ih + h @ w_hh + b
            i = jax.nn.sigmoid(g[:, 0 * H:1 * H])
            f = jax.nn.sigmoid(g[:, 1 * H:2 * H])
            gg = jnp.tanh(g[:, 2 * H:3 * H])
            o = jax.nn.sigmoid(g[:, 3 * H:4 * H])
            c = f * c + i * gg
            h = o * jnp.tanh(c)
            return (h, c), None
        init = (jnp.zeros((B, H)), jnp.zeros((B, H)))
        (h, _), _ = jax.lax.scan(step, init, jnp.swapaxes(x, 0, 1))
        return h

    locals_ = []
    for widx, window in enumerate(windows_list):
        p = lstm_params[widx]
        half = window // 2
        per_pos = []
        for i in range(L):
            idx = jnp.array([j for j in range(i - half, i + half + 1) if 0 <= j <= L - 1])
            win = seq[:, idx, :]                                           # (B, T, D)
            hf = lstm_last_h(win, p["wf_ih"], p["wf_hh"], p["bf"][0])
            hb = lstm_last_h(win[:, ::-1, :], p["wb_ih"], p["wb_hh"], p["bb"][0])
            per_pos.append(jnp.concatenate([hf, hb], axis=-1))             # (B, D)
        locals_.append(jnp.stack(per_pos, axis=1))                         # (B, L, D)

    muti = jnp.stack(locals_, axis=2)                                      # (B, L, nW, D)
    attn = jnp.einsum('bld,blwd->blw', seq, muti) / math.sqrt(float(d_model))
    attn = jax.nn.softmax(attn, axis=-1)
    local = jnp.einsum('blw,blwd->bld', attn, muti)
    return (seq + local) @ w_lin_t + b_lin


if __name__ == "__main__":
    B, L, D, C = 2, 8, 32, 9          # batch, seq, d_model, num_labels
    H = D // 2
    vocab = 50
    windows_list = [3, 5]

    keys = iter(jax.random.split(jax.random.PRNGKey(0), 32))

    emb = jax.random.normal(next(keys), (vocab, D), jnp.float32) * 0.1
    input_ids = jax.random.randint(next(keys), (B, L), 0, vocab)
    valid_ids = jax.random.bernoulli(next(keys), 0.8, (B, L)).astype(jnp.int32)

    s = 1.0 / math.sqrt(H)
    lstm_params = []
    for _ in windows_list:
        p = {
            "wf_ih": jax.random.uniform(next(keys), (D, 4 * H), jnp.float32, -s, s),
            "wf_hh": jax.random.uniform(next(keys), (H, 4 * H), jnp.float32, -s, s),
            "bf":    jax.random.uniform(next(keys), (1, 4 * H), jnp.float32, -s, s),
            "wb_ih": jax.random.uniform(next(keys), (D, 4 * H), jnp.float32, -s, s),
            "wb_hh": jax.random.uniform(next(keys), (H, 4 * H), jnp.float32, -s, s),
            "bb":    jax.random.uniform(next(keys), (1, 4 * H), jnp.float32, -s, s),
        }
        lstm_params.append(p)

    sl = 1.0 / math.sqrt(D)
    w_lin_t = jax.random.uniform(next(keys), (D, C), jnp.float32, -sl, sl)  # linear.weight^T
    b_lin = jax.random.uniform(next(keys), (1, C), jnp.float32, -sl, sl)    # linear.bias

    logits = hgner_forward(input_ids, valid_ids, emb, lstm_params,
                           w_lin_t, b_lin, windows_list, D)
    jax.block_until_ready(logits)
    assert logits.shape == (B, L, C) and logits.dtype == jnp.float32

    # correctness check against a pure-JAX f32 reference (kernel uses bf16 MXU operands)
    seq = encode(input_ids, valid_ids, emb)
    ref = ref_forward(seq, lstm_params, w_lin_t, b_lin, windows_list, D)
    max_err = float(jnp.max(jnp.abs(logits - ref)))
    assert max_err < 5e-2, f"kernel vs reference max abs err {max_err}"

    print("KERNEL_OK")
</pallas_src>

<mosaic_0001>
module attributes {stable_mosaic.version = 11 : i64} {
  func.func @_hgner_fused_kernel(%arg0: i32, %arg1: memref<8x32xf32, #tpu.memory_space<vmem>>, %arg2: memref<2x32x128xbf16, #tpu.memory_space<vmem>>, %arg3: memref<2x16x128xbf16, #tpu.memory_space<vmem>>, %arg4: memref<2x1x128xf32, #tpu.memory_space<vmem>>, %arg5: memref<2x32x128xbf16, #tpu.memory_space<vmem>>, %arg6: memref<2x16x128xbf16, #tpu.memory_space<vmem>>, %arg7: memref<2x1x128xf32, #tpu.memory_space<vmem>>, %arg8: memref<32x128xbf16, #tpu.memory_space<vmem>>, %arg9: memref<1x128xf32, #tpu.memory_space<vmem>>, %arg10: memref<8x128xf32, #tpu.memory_space<vmem>>) attributes {dimension_semantics = [#tpu.dimension_semantics<parallel>], iteration_bounds = array<i64: 2>, scalar_prefetch = 0 : i64, scratch_operands = 0 : i64, tpu.core_type = #tpu.core_type<tc>, window_params = [{transform_indices = @transform_0, window_bounds = array<i64: 8, 32>}, {pipeline_mode = #tpu.pipeline_mode<synchronous>, transform_indices = @transform_1, window_bounds = array<i64: 2, 32, 128>}, {pipeline_mode = #tpu.pipeline_mode<synchronous>, transform_indices = @transform_2, window_bounds = array<i64: 2, 16, 128>}, {pipeline_mode = #tpu.pipeline_mode<synchronous>, transform_indices = @transform_3, window_bounds = array<i64: 2, 1, 128>}, {pipeline_mode = #tpu.pipeline_mode<synchronous>, transform_indices = @transform_4, window_bounds = array<i64: 2, 32, 128>}, {pipeline_mode = #tpu.pipeline_mode<synchronous>, transform_indices = @transform_5, window_bounds = array<i64: 2, 16, 128>}, {pipeline_mode = #tpu.pipeline_mode<synchronous>, transform_indices = @transform_6, window_bounds = array<i64: 2, 1, 128>}, {pipeline_mode = #tpu.pipeline_mode<synchronous>, transform_indices = @transform_7, window_bounds = array<i64: 32, 128>}, {pipeline_mode = #tpu.pipeline_mode<synchronous>, transform_indices = @transform_8, window_bounds = array<i64: 1, 128>}, {transform_indices = @transform_9, window_bounds = array<i64: 8, 128>}]} {
    %c0 = arith.constant 0 : index
    %c0_0 = arith.constant 0 : index
    %0 = vector.load %arg1[%c0, %c0_0] : memref<8x32xf32, #tpu.memory_space<vmem>>, vector<8x32xf32>
    %1 = arith.truncf %0 : vector<8x32xf32> to vector<8x32xbf16>
    %2 = tpu.iota {dimensions = array<i32: 0>} : vector<8x1xi32>
    %c8_i32 = arith.constant 8 : i32
    %c0_i32 = arith.constant 0 : i32
    %3 = arith.cmpi eq, %c8_i32, %c0_i32 : i32
    %c1_i32 = arith.constant 1 : i32
    %4 = arith.select %3, %c1_i32, %c8_i32 : i32
    %5 = vector.broadcast %4 : i32 to vector<8x1xi32>
    %6 = arith.remsi %2, %5 : vector<8x1xi32>
    %c0_i32_1 = arith.constant 0 : i32
    %7 = vector.broadcast %c0_i32_1 : i32 to vector<8x1xi32>
    %8 = arith.cmpi ne, %6, %7 : vector<8x1xi32>
    %c0_i32_2 = arith.constant 0 : i32
    %9 = vector.broadcast %c0_i32_2 : i32 to vector<8x1xi32>
    %10 = arith.cmpi slt, %6, %9 : vector<8x1xi32>
    %c0_i32_3 = arith.constant 0 : i32
    %11 = arith.cmpi slt, %4, %c0_i32_3 : i32
    %12 = vector.broadcast %11 : i1 to vector<8x1xi1>
    %13 = vector.broadcast %12 : vector<8x1xi1> to vector<8x1xi1>
    %14 = arith.xori %10, %13 : vector<8x1xi1>
    %15 = arith.andi %14, %8 : vector<8x1xi1>
    %16 = vector.broadcast %4 : i32 to vector<8x1xi32>
    %17 = arith.addi %6, %16 : vector<8x1xi32>
    %18 = arith.select %15, %17, %6 : vector<8x1xi1>, vector<8x1xi32>
    %c0_4 = arith.constant 0 : index
    %c0_5 = arith.constant 0 : index
    %c0_6 = arith.constant 0 : index
    %19 = vector.load %arg2[%c0_4, %c0_5, %c0_6] : memref<2x32x128xbf16, #tpu.memory_space<vmem>>, vector<1x32x128xbf16>
    %20 = vector.shape_cast %19 : vector<1x32x128xbf16> to vector<32x128xbf16>
    %c0_7 = arith.constant 0 : index
    %c0_8 = arith.constant 0 : index
    %c0_9 = arith.constant 0 : index
    %21 = vector.load %arg3[%c0_7, %c0_8, %c0_9] : memref<2x16x128xbf16, #tpu.memory_space<vmem>>, vector<1x16x128xbf16>
    %22 = vector.shape_cast %21 : vector<1x16x128xbf16> to vector<16x128xbf16>
    %c0_10 = arith.constant 0 : index
    %c0_11 = arith.constant 0 : index
    %c0_12 = arith.constant 0 : index
    %23 = vector.load %arg4[%c0_10, %c0_11, %c0_12] : memref<2x1x128xf32, #tpu.memory_space<vmem>>, vector<1x1x128xf32>
    %24 = vector.shape_cast %23 : vector<1x1x128xf32> to vector<1x128xf32>
    %c0_13 = arith.constant 0 : index
    %c0_14 = arith.constant 0 : index
    %c0_15 = arith.constant 0 : index
    %25 = vector.load %arg5[%c0_13, %c0_14, %c0_15] : memref<2x32x128xbf16, #tpu.memory_space<vmem>>, vector<1x32x128xbf16>
    %26 = vector.shape_cast %25 : vector<1x32x128xbf16> to vector<32x128xbf16>
    %c0_16 = arith.constant 0 : index
    %c0_17 = arith.constant 0 : index
    %c0_18 = arith.constant 0 : index
    %27 = vector.load %arg6[%c0_16, %c0_17, %c0_18] : memref<2x16x128xbf16, #tpu.memory_space<vmem>>, vector<1x16x128xbf16>
    %28 = vector.shape_cast %27 : vector<1x16x128xbf16> to vector<16x128xbf16>
    %c0_19 = arith.constant 0 : index
    %c0_20 = arith.constant 0 : index
    %c0_21 = arith.constant 0 : index
    %29 = vector.load %arg7[%c0_19, %c0_20, %c0_21] : memref<2x1x128xf32, #tpu.memory_space<vmem>>, vector<1x1x128xf32>
    %30 = vector.shape_cast %29 : vector<1x1x128xf32> to vector<1x128xf32>
    %cst = arith.constant dense<0.000000e+00> : vector<8x128xf32>
    %31 = tpu.matmul %1, %20, %cst {dimension_numbers = #tpu.dot_dimension_numbers<[1], [0], [0], [1], [0, 0, 1, 1], [], []>} : vector<8x32xbf16>, vector<32x128xbf16>, vector<8x128xf32> -> vector<8x128xf32>
    %32 = vector.broadcast %24 : vector<1x128xf32> to vector<8x128xf32>
    %33 = arith.addf %31, %32 : vector<8x128xf32>
    %cst_22 = arith.constant dense<0.000000e+00> : vector<8x128xf32>
    %34 = tpu.matmul %1, %26, %cst_22 {dimension_numbers = #tpu.dot_dimension_numbers<[1], [0], [0], [1], [0, 0, 1, 1], [], []>} : vector<8x32xbf16>, vector<32x128xbf16>, vector<8x128xf32> -> vector<8x128xf32>
    %35 = vector.broadcast %30 : vector<1x128xf32> to vector<8x128xf32>
    %36 = arith.addf %34, %35 : vector<8x128xf32>
    %cst_23 = arith.constant 0.000000e+00 : f32
    %37 = vector.broadcast %cst_23 : f32 to vector<8x16xf32>
    %c-1_i32 = arith.constant -1 : i32
    %38 = vector.broadcast %c-1_i32 : i32 to vector<8x1xi32>
    %39 = arith.addi %18, %38 : vector<8x1xi32>
    %c0_i32_24 = arith.constant 0 : i32
    %40 = vector.broadcast %c0_i32_24 : i32 to vector<8x1xi32>
    %41 = arith.cmpi sge, %39, %40 : vector<8x1xi32>
    %c-1_i32_25 = arith.constant -1 : i32
    %42 = vector.broadcast %c-1_i32_25 : i32 to vector<8x1xi32>
    %43 = arith.addi %18, %42 : vector<8x1xi32>
    %c7_i32 = arith.constant 7 : i32
    %44 = vector.broadcast %c7_i32 : i32 to vector<8x1xi32>
    %45 = arith.cmpi sle, %43, %44 : vector<8x1xi32>
    %46 = arith.andi %41, %45 : vector<8x1xi1>
    %c1_i32_26 = arith.constant 1 : i32
    %47 = vector.broadcast %c1_i32_26 : i32 to vector<8x1xi32>
    %48 = arith.addi %18, %47 : vector<8x1xi32>
    %c0_i32_27 = arith.constant 0 : i32
    %49 = vector.broadcast %c0_i32_27 : i32 to vector<8x1xi32>
    %50 = arith.cmpi sge, %48, %49 : vector<8x1xi32>
    %c1_i32_28 = arith.constant 1 : i32
    %51 = vector.broadcast %c1_i32_28 : i32 to vector<8x1xi32>
    %52 = arith.addi %18, %51 : vector<8x1xi32>
    %c7_i32_29 = arith.constant 7 : i32
    %53 = vector.broadcast %c7_i32_29 : i32 to vector<8x1xi32>
    %54 = arith.cmpi sle, %52, %53 : vector<8x1xi32>
    %55 = arith.andi %50, %54 : vector<8x1xi1>
    %c1_i32_30 = arith.constant 1 : i32
    %56 = tpu.dynamic_rotate %33 by %c1_i32_30 dim 0 : vector<8x128xf32>, i32 -> vector<8x128xf32>
    %57 = arith.truncf %37 : vector<8x16xf32> to vector<8x16xbf16>
    %cst_31 = arith.constant dense<0.000000e+00> : vector<8x128xf32>
    %58 = tpu.matmul %57, %22, %cst_31 {dimension_numbers = #tpu.dot_dimension_numbers<[1], [0], [0], [1], [0, 0, 1, 1], [], []>} : vector<8x16xbf16>, vector<16x128xbf16>, vector<8x128xf32> -> vector<8x128xf32>
    %59 = arith.addf %56, %58 : vector<8x128xf32>
    %60 = vector.extract_strided_slice %59 {offsets = [0, 0], sizes = [8, 16], strides = [1, 1]} : vector<8x128xf32> to vector<8x16xf32>
    %61 = arith.negf %60 : vector<8x16xf32>
    %62 = math.exp %61 : vector<8x16xf32>
    %cst_32 = arith.constant 1.000000e+00 : f32
    %63 = vector.broadcast %cst_32 : f32 to vector<8x16xf32>
    %64 = arith.addf %63, %62 : vector<8x16xf32>
    %65 = arith.divf %63, %64 : vector<8x16xf32>
    %66 = vector.extract_strided_slice %59 {offsets = [0, 16], sizes = [8, 16], strides = [1, 1]} : vector<8x128xf32> to vector<8x16xf32>
    %67 = arith.negf %66 : vector<8x16xf32>
    %68 = math.exp %67 : vector<8x16xf32>
    %cst_33 = arith.constant 1.000000e+00 : f32
    %69 = vector.broadcast %cst_33 : f32 to vector<8x16xf32>
    %70 = arith.addf %69, %68 : vector<8x16xf32>
    %71 = arith.divf %69, %70 : vector<8x16xf32>
    %72 = vector.extract_strided_slice %59 {offsets = [0, 32], sizes = [8, 16], strides = [1, 1]} : vector<8x128xf32> to vector<8x16xf32>
    %73 = math.tanh %72 : vector<8x16xf32>
    %74 = vector.extract_strided_slice %59 {offsets = [0, 48], sizes = [8, 16], strides = [1, 1]} : vector<8x128xf32> to vector<8x16xf32>
    %75 = arith.negf %74 : vector<8x16xf32>
    %76 = math.exp %75 : vector<8x16xf32>
    %cst_34 = arith.constant 1.000000e+00 : f32
    %77 = vector.broadcast %cst_34 : f32 to vector<8x16xf32>
    %78 = arith.addf %77, %76 : vector<8x16xf32>
    %79 = arith.divf %77, %78 : vector<8x16xf32>
    %80 = arith.mulf %71, %37 : vector<8x16xf32>
    %81 = arith.mulf %65, %73 : vector<8x16xf32>
    %82 = arith.addf %80, %81 : vector<8x16xf32>
    %83 = math.tanh %82 : vector<8x16xf32>
    %84 = arith.mulf %79, %83 : vector<8x16xf32>
    %85 = vector.shape_cast %46 : vector<8x1xi1> to vector<8x1xi1>
    %86 = vector.broadcast %85 : vector<8x1xi1> to vector<8x16xi1>
    %87 = arith.select %86, %84, %37 : vector<8x16xi1>, vector<8x16xf32>
    %88 = vector.shape_cast %46 : vector<8x1xi1> to vector<8x1xi1>
    %89 = vector.broadcast %88 : vector<8x1xi1> to vector<8x16xi1>
    %90 = arith.select %89, %82, %37 : vector<8x16xi1>, vector<8x16xf32>
    %c7_i32_35 = arith.constant 7 : i32
    %91 = tpu.dynamic_rotate %36 by %c7_i32_35 dim 0 : vector<8x128xf32>, i32 -> vector<8x128xf32>
    %92 = arith.truncf %37 : vector<8x16xf32> to vector<8x16xbf16>
    %cst_36 = arith.constant dense<0.000000e+00> : vector<8x128xf32>
    %93 = tpu.matmul %92, %28, %cst_36 {dimension_numbers = #tpu.dot_dimension_numbers<[1], [0], [0], [1], [0, 0, 1, 1], [], []>} : vector<8x16xbf16>, vector<16x128xbf16>, vector<8x128xf32> -> vector<8x128xf32>
    %94 = arith.addf %91, %93 : vector<8x128xf32>
    %95 = vector.extract_strided_slice %94 {offsets = [0, 0], sizes = [8, 16], strides = [1, 1]} : vector<8x128xf32> to vector<8x16xf32>
    %96 = arith.negf %95 : vector<8x16xf32>
    %97 = math.exp %96 : vector<8x16xf32>
    %cst_37 = arith.constant 1.000000e+00 : f32
    %98 = vector.broadcast %cst_37 : f32 to vector<8x16xf32>
    %99 = arith.addf %98, %97 : vector<8x16xf32>
    %100 = arith.divf %98, %99 : vector<8x16xf32>
    %101 = vector.extract_strided_slice %94 {offsets = [0, 16], sizes = [8, 16], strides = [1, 1]} : vector<8x128xf32> to vector<8x16xf32>
    %102 = arith.negf %101 : vector<8x16xf32>
    %103 = math.exp %102 : vector<8x16xf32>
    %cst_38 = arith.constant 1.000000e+00 : f32
    %104 = vector.broadcast %cst_38 : f32 to vector<8x16xf32>
    %105 = arith.addf %104, %103 : vector<8x16xf32>
    %106 = arith.divf %104, %105 : vector<8x16xf32>
    %107 = vector.extract_strided_slice %94 {offsets = [0, 32], sizes = [8, 16], strides = [1, 1]} : vector<8x128xf32> to vector<8x16xf32>
    %108 = math.tanh %107 : vector<8x16xf32>
    %109 = vector.extract_strided_slice %94 {offsets = [0, 48], sizes = [8, 16], strides = [1, 1]} : vector<8x128xf32> to vector<8x16xf32>
    %110 = arith.negf %109 : vector<8x16xf32>
    %111 = math.exp %110 : vector<8x16xf32>
    %cst_39 = arith.constant 1.000000e+00 : f32
    %112 = vector.broadcast %cst_39 : f32 to vector<8x16xf32>
    %113 = arith.addf %112, %111 : vector<8x16xf32>
    %114 = arith.divf %112, %113 : vector<8x16xf32>
    %115 = arith.mulf %106, %37 : vector<8x16xf32>
    %116 = arith.mulf %100, %108 : vector<8x16xf32>
    %117 = arith.addf %115, %116 : vector<8x16xf32>
    %118 = math.tanh %117 : vector<8x16xf32>
    %119 = arith.mulf %114, %118 : vector<8x16xf32>
    %120 = vector.shape_cast %55 : vector<8x1xi1> to vector<8x1xi1>
    %121 = vector.broadcast %120 : vector<8x1xi1> to vector<8x16xi1>
    %122 = arith.select %121, %119, %37 : vector<8x16xi1>, vector<8x16xf32>
    %123 = vector.shape_cast %55 : vector<8x1xi1> to vector<8x1xi1>
    %124 = vector.broadcast %123 : vector<8x1xi1> to vector<8x16xi1>
    %125 = arith.select %124, %117, %37 : vector<8x16xi1>, vector<8x16xf32>
    %c0_i32_40 = arith.constant 0 : i32
    %126 = vector.broadcast %c0_i32_40 : i32 to vector<8x1xi32>
    %127 = arith.addi %18, %126 : vector<8x1xi32>
    %c0_i32_41 = arith.constant 0 : i32
    %128 = vector.broadcast %c0_i32_41 : i32 to vector<8x1xi32>
    %129 = arith.cmpi sge, %127, %128 : vector<8x1xi32>
    %c0_i32_42 = arith.constant 0 : i32
    %130 = vector.broadcast %c0_i32_42 : i32 to vector<8x1xi32>
    %131 = arith.addi %18, %130 : vector<8x1xi32>
    %c7_i32_43 = arith.constant 7 : i32
    %132 = vector.broadcast %c7_i32_43 : i32 to vector<8x1xi32>
    %133 = arith.cmpi sle, %131, %132 : vector<8x1xi32>
    %134 = arith.andi %129, %133 : vector<8x1xi1>
    %c0_i32_44 = arith.constant 0 : i32
    %135 = vector.broadcast %c0_i32_44 : i32 to vector<8x1xi32>
    %136 = arith.addi %18, %135 : vector<8x1xi32>
    %c0_i32_45 = arith.constant 0 : i32
    %137 = vector.broadcast %c0_i32_45 : i32 to vector<8x1xi32>
    %138 = arith.cmpi sge, %136, %137 : vector<8x1xi32>
    %c0_i32_46 = arith.constant 0 : i32
    %139 = vector.broadcast %c0_i32_46 : i32 to vector<8x1xi32>
    %140 = arith.addi %18, %139 : vector<8x1xi32>
    %c7_i32_47 = arith.constant 7 : i32
    %141 = vector.broadcast %c7_i32_47 : i32 to vector<8x1xi32>
    %142 = arith.cmpi sle, %140, %141 : vector<8x1xi32>
    %143 = arith.andi %138, %142 : vector<8x1xi1>
    %144 = arith.truncf %87 : vector<8x16xf32> to vector<8x16xbf16>
    %cst_48 = arith.constant dense<0.000000e+00> : vector<8x128xf32>
    %145 = tpu.matmul %144, %22, %cst_48 {dimension_numbers = #tpu.dot_dimension_numbers<[1], [0], [0], [1], [0, 0, 1, 1], [], []>} : vector<8x16xbf16>, vector<16x128xbf16>, vector<8x128xf32> -> vector<8x128xf32>
    %146 = arith.addf %33, %145 : vector<8x128xf32>
    %147 = vector.extract_strided_slice %146 {offsets = [0, 0], sizes = [8, 16], strides = [1, 1]} : vector<8x128xf32> to vector<8x16xf32>
    %148 = arith.negf %147 : vector<8x16xf32>
    %149 = math.exp %148 : vector<8x16xf32>
    %cst_49 = arith.constant 1.000000e+00 : f32
    %150 = vector.broadcast %cst_49 : f32 to vector<8x16xf32>
    %151 = arith.addf %150, %149 : vector<8x16xf32>
    %152 = arith.divf %150, %151 : vector<8x16xf32>
    %153 = vector.extract_strided_slice %146 {offsets = [0, 16], sizes = [8, 16], strides = [1, 1]} : vector<8x128xf32> to vector<8x16xf32>
    %154 = arith.negf %153 : vector<8x16xf32>
    %155 = math.exp %154 : vector<8x16xf32>
    %cst_50 = arith.constant 1.000000e+00 : f32
    %156 = vector.broadcast %cst_50 : f32 to vector<8x16xf32>
    %157 = arith.addf %156, %155 : vector<8x16xf32>
    %158 = arith.divf %156, %157 : vector<8x16xf32>
    %159 = vector.extract_strided_slice %146 {offsets = [0, 32], sizes = [8, 16], strides = [1, 1]} : vector<8x128xf32> to vector<8x16xf32>
    %160 = math.tanh %159 : vector<8x16xf32>
    %161 = vector.extract_strided_slice %146 {offsets = [0, 48], sizes = [8, 16], strides = [1, 1]} : vector<8x128xf32> to vector<8x16xf32>
    %162 = arith.negf %161 : vector<8x16xf32>
    %163 = math.exp %162 : vector<8x16xf32>
    %cst_51 = arith.constant 1.000000e+00 : f32
    %164 = vector.broadcast %cst_51 : f32 to vector<8x16xf32>
    %165 = arith.addf %164, %163 : vector<8x16xf32>
    %166 = arith.divf %164, %165 : vector<8x16xf32>
    %167 = arith.mulf %158, %90 : vector<8x16xf32>
    %168 = arith.mulf %152, %160 : vector<8x16xf32>
    %169 = arith.addf %167, %168 : vector<8x16xf32>
    %170 = math.tanh %169 : vector<8x16xf32>
    %171 = arith.mulf %166, %170 : vector<8x16xf32>
    %172 = vector.shape_cast %134 : vector<8x1xi1> to vector<8x1xi1>
    %173 = vector.broadcast %172 : vector<8x1xi1> to vector<8x16xi1>
    %174 = arith.select %173, %171, %87 : vector<8x16xi1>, vector<8x16xf32>
    %175 = vector.shape_cast %134 : vector<8x1xi1> to vector<8x1xi1>
    %176 = vector.broadcast %175 : vector<8x1xi1> to vector<8x16xi1>
    %177 = arith.select %176, %169, %90 : vector<8x16xi1>, vector<8x16xf32>
    %178 = arith.truncf %122 : vector<8x16xf32> to vector<8x16xbf16>
    %cst_52 = arith.constant dense<0.000000e+00> : vector<8x128xf32>
    %179 = tpu.matmul %178, %28, %cst_52 {dimension_numbers = #tpu.dot_dimension_numbers<[1], [0], [0], [1], [0, 0, 1, 1], [], []>} : vector<8x16xbf16>, vector<16x128xbf16>, vector<8x128xf32> -> vector<8x128xf32>
    %180 = arith.addf %36, %179 : vector<8x128xf32>
    %181 = vector.extract_strided_slice %180 {offsets = [0, 0], sizes = [8, 16], strides = [1, 1]} : vector<8x128xf32> to vector<8x16xf32>
    %182 = arith.negf %181 : vector<8x16xf32>
    %183 = math.exp %182 : vector<8x16xf32>
    %cst_53 = arith.constant 1.000000e+00 : f32
    %184 = vector.broadcast %cst_53 : f32 to vector<8x16xf32>
    %185 = arith.addf %184, %183 : vector<8x16xf32>
    %186 = arith.divf %184, %185 : vector<8x16xf32>
    %187 = vector.extract_strided_slice %180 {offsets = [0, 16], sizes = [8, 16], strides = [1, 1]} : vector<8x128xf32> to vector<8x16xf32>
    %188 = arith.negf %187 : vector<8x16xf32>
    %189 = math.exp %188 : vector<8x16xf32>
    %cst_54 = arith.constant 1.000000e+00 : f32
    %190 = vector.broadcast %cst_54 : f32 to vector<8x16xf32>
    %191 = arith.addf %190, %189 : vector<8x16xf32>
    %192 = arith.divf %190, %191 : vector<8x16xf32>
    %193 = vector.extract_strided_slice %180 {offsets = [0, 32], sizes = [8, 16], strides = [1, 1]} : vector<8x128xf32> to vector<8x16xf32>
    %194 = math.tanh %193 : vector<8x16xf32>
    %195 = vector.extract_strided_slice %180 {offsets = [0, 48], sizes = [8, 16], strides = [1, 1]} : vector<8x128xf32> to vector<8x16xf32>
    %196 = arith.negf %195 : vector<8x16xf32>
    %197 = math.exp %196 : vector<8x16xf32>
    %cst_55 = arith.constant 1.000000e+00 : f32
    %198 = vector.broadcast %cst_55 : f32 to vector<8x16xf32>
    %199 = arith.addf %198, %197 : vector<8x16xf32>
    %200 = arith.divf %198, %199 : vector<8x16xf32>
    %201 = arith.mulf %192, %125 : vector<8x16xf32>
    %202 = arith.mulf %186, %194 : vector<8x16xf32>
    %203 = arith.addf %201, %202 : vector<8x16xf32>
    %204 = math.tanh %203 : vector<8x16xf32>
    %205 = arith.mulf %200, %204 : vector<8x16xf32>
    %206 = vector.shape_cast %143 : vector<8x1xi1> to vector<8x1xi1>
    %207 = vector.broadcast %206 : vector<8x1xi1> to vector<8x16xi1>
    %208 = arith.select %207, %205, %122 : vector<8x16xi1>, vector<8x16xf32>
    %209 = vector.shape_cast %143 : vector<8x1xi1> to vector<8x1xi1>
    %210 = vector.broadcast %209 : vector<8x1xi1> to vector<8x16xi1>
    %211 = arith.select %210, %203, %125 : vector<8x16xi1>, vector<8x16xf32>
    %c1_i32_56 = arith.constant 1 : i32
    %212 = vector.broadcast %c1_i32_56 : i32 to vector<8x1xi32>
    %213 = arith.addi %18, %212 : vector<8x1xi32>
    %c0_i32_57 = arith.constant 0 : i32
    %214 = vector.broadcast %c0_i32_57 : i32 to vector<8x1xi32>
    %215 = arith.cmpi sge, %213, %214 : vector<8x1xi32>
    %c1_i32_58 = arith.constant 1 : i32
    %216 = vector.broadcast %c1_i32_58 : i32 to vector<8x1xi32>
    %217 = arith.addi %18, %216 : vector<8x1xi32>
    %c7_i32_59 = arith.constant 7 : i32
    %218 = vector.broadcast %c7_i32_59 : i32 to vector<8x1xi32>
    %219 = arith.cmpi sle, %217, %218 : vector<8x1xi32>
    %220 = arith.andi %215, %219 : vector<8x1xi1>
    %c-1_i32_60 = arith.constant -1 : i32
    %221 = vector.broadcast %c-1_i32_60 : i32 to vector<8x1xi32>
    %222 = arith.addi %18, %221 : vector<8x1xi32>
    %c0_i32_61 = arith.constant 0 : i32
    %223 = vector.broadcast %c0_i32_61 : i32 to vector<8x1xi32>
    %224 = arith.cmpi sge, %222, %223 : vector<8x1xi32>
    %c-1_i32_62 = arith.constant -1 : i32
    %225 = vector.broadcast %c-1_i32_62 : i32 to vector<8x1xi32>
    %226 = arith.addi %18, %225 : vector<8x1xi32>
    %c7_i32_63 = arith.constant 7 : i32
    %227 = vector.broadcast %c7_i32_63 : i32 to vector<8x1xi32>
    %228 = arith.cmpi sle, %226, %227 : vector<8x1xi32>
    %229 = arith.andi %224, %228 : vector<8x1xi1>
    %c7_i32_64 = arith.constant 7 : i32
    %230 = tpu.dynamic_rotate %33 by %c7_i32_64 dim 0 : vector<8x128xf32>, i32 -> vector<8x128xf32>
    %231 = arith.truncf %174 : vector<8x16xf32> to vector<8x16xbf16>
    %cst_65 = arith.constant dense<0.000000e+00> : vector<8x128xf32>
    %232 = tpu.matmul %231, %22, %cst_65 {dimension_numbers = #tpu.dot_dimension_numbers<[1], [0], [0], [1], [0, 0, 1, 1], [], []>} : vector<8x16xbf16>, vector<16x128xbf16>, vector<8x128xf32> -> vector<8x128xf32>
    %233 = arith.addf %230, %232 : vector<8x128xf32>
    %234 = vector.extract_strided_slice %233 {offsets = [0, 0], sizes = [8, 16], strides = [1, 1]} : vector<8x128xf32> to vector<8x16xf32>
    %235 = arith.negf %234 : vector<8x16xf32>
    %236 = math.exp %235 : vector<8x16xf32>
    %cst_66 = arith.constant 1.000000e+00 : f32
    %237 = vector.broadcast %cst_66 : f32 to vector<8x16xf32>
    %238 = arith.addf %237, %236 : vector<8x16xf32>
    %239 = arith.divf %237, %238 : vector<8x16xf32>
    %240 = vector.extract_strided_slice %233 {offsets = [0, 16], sizes = [8, 16], strides = [1, 1]} : vector<8x128xf32> to vector<8x16xf32>
    %241 = arith.negf %240 : vector<8x16xf32>
    %242 = math.exp %241 : vector<8x16xf32>
    %cst_67 = arith.constant 1.000000e+00 : f32
    %243 = vector.broadcast %cst_67 : f32 to vector<8x16xf32>
    %244 = arith.addf %243, %242 : vector<8x16xf32>
    %245 = arith.divf %243, %244 : vector<8x16xf32>
    %246 = vector.extract_strided_slice %233 {offsets = [0, 32], sizes = [8, 16], strides = [1, 1]} : vector<8x128xf32> to vector<8x16xf32>
    %247 = math.tanh %246 : vector<8x16xf32>
    %248 = vector.extract_strided_slice %233 {offsets = [0, 48], sizes = [8, 16], strides = [1, 1]} : vector<8x128xf32> to vector<8x16xf32>
    %249 = arith.negf %248 : vector<8x16xf32>
    %250 = math.exp %249 : vector<8x16xf32>
    %cst_68 = arith.constant 1.000000e+00 : f32
    %251 = vector.broadcast %cst_68 : f32 to vector<8x16xf32>
    %252 = arith.addf %251, %250 : vector<8x16xf32>
    %253 = arith.divf %251, %252 : vector<8x16xf32>
    %254 = arith.mulf %245, %177 : vector<8x16xf32>
    %255 = arith.mulf %239, %247 : vector<8x16xf32>
    %256 = arith.addf %254, %255 : vector<8x16xf32>
    %257 = math.tanh %256 : vector<8x16xf32>
    %258 = arith.mulf %253, %257 : vector<8x16xf32>
    %259 = vector.shape_cast %220 : vector<8x1xi1> to vector<8x1xi1>
    %260 = vector.broadcast %259 : vector<8x1xi1> to vector<8x16xi1>
    %261 = arith.select %260, %258, %174 : vector<8x16xi1>, vector<8x16xf32>
    %c1_i32_69 = arith.constant 1 : i32
    %262 = tpu.dynamic_rotate %36 by %c1_i32_69 dim 0 : vector<8x128xf32>, i32 -> vector<8x128xf32>
    %263 = arith.truncf %208 : vector<8x16xf32> to vector<8x16xbf16>
    %cst_70 = arith.constant dense<0.000000e+00> : vector<8x128xf32>
    %264 = tpu.matmul %263, %28, %cst_70 {dimension_numbers = #tpu.dot_dimension_numbers<[1], [0], [0], [1], [0, 0, 1, 1], [], []>} : vector<8x16xbf16>, vector<16x128xbf16>, vector<8x128xf32> -> vector<8x128xf32>
    %265 = arith.addf %262, %264 : vector<8x128xf32>
    %266 = vector.extract_strided_slice %265 {offsets = [0, 0], sizes = [8, 16], strides = [1, 1]} : vector<8x128xf32> to vector<8x16xf32>
    %267 = arith.negf %266 : vector<8x16xf32>
    %268 = math.exp %267 : vector<8x16xf32>
    %cst_71 = arith.constant 1.000000e+00 : f32
    %269 = vector.broadcast %cst_71 : f32 to vector<8x16xf32>
    %270 = arith.addf %269, %268 : vector<8x16xf32>
    %271 = arith.divf %269, %270 : vector<8x16xf32>
    %272 = vector.extract_strided_slice %265 {offsets = [0, 16], sizes = [8, 16], strides = [1, 1]} : vector<8x128xf32> to vector<8x16xf32>
    %273 = arith.negf %272 : vector<8x16xf32>
    %274 = math.exp %273 : vector<8x16xf32>
    %cst_72 = arith.constant 1.000000e+00 : f32
    %275 = vector.broadcast %cst_72 : f32 to vector<8x16xf32>
    %276 = arith.addf %275, %274 : vector<8x16xf32>
    %277 = arith.divf %275, %276 : vector<8x16xf32>
    %278 = vector.extract_strided_slice %265 {offsets = [0, 32], sizes = [8, 16], strides = [1, 1]} : vector<8x128xf32> to vector<8x16xf32>
    %279 = math.tanh %278 : vector<8x16xf32>
    %280 = vector.extract_strided_slice %265 {offsets = [0, 48], sizes = [8, 16], strides = [1, 1]} : vector<8x128xf32> to vector<8x16xf32>
    %281 = arith.negf %280 : vector<8x16xf32>
    %282 = math.exp %281 : vector<8x16xf32>
    %cst_73 = arith.constant 1.000000e+00 : f32
    %283 = vector.broadcast %cst_73 : f32 to vector<8x16xf32>
    %284 = arith.addf %283, %282 : vector<8x16xf32>
    %285 = arith.divf %283, %284 : vector<8x16xf32>
    %286 = arith.mulf %277, %211 : vector<8x16xf32>
    %287 = arith.mulf %271, %279 : vector<8x16xf32>
    %288 = arith.addf %286, %287 : vector<8x16xf32>
    %289 = math.tanh %288 : vector<8x16xf32>
    %290 = arith.mulf %285, %289 : vector<8x16xf32>
    %291 = vector.shape_cast %229 : vector<8x1xi1> to vector<8x1xi1>
    %292 = vector.broadcast %291 : vector<8x1xi1> to vector<8x16xi1>
    %293 = arith.select %292, %290, %208 : vector<8x16xi1>, vector<8x16xf32>
    %294 = tpu.concatenate %261, %293 in 1 : vector<8x16xf32>, vector<8x16xf32> -> vector<8x32xf32>
    %c1 = arith.constant 1 : index
    %c0_74 = arith.constant 0 : index
    %c0_75 = arith.constant 0 : index
    %295 = vector.load %arg2[%c1, %c0_74, %c0_75] : memref<2x32x128xbf16, #tpu.memory_space<vmem>>, vector<1x32x128xbf16>
    %296 = vector.shape_cast %295 : vector<1x32x128xbf16> to vector<32x128xbf16>
    %c1_76 = arith.constant 1 : index
    %c0_77 = arith.constant 0 : index
    %c0_78 = arith.constant 0 : index
    %297 = vector.load %arg3[%c1_76, %c0_77, %c0_78] : memref<2x16x128xbf16, #tpu.memory_space<vmem>>, vector<1x16x128xbf16>
    %298 = vector.shape_cast %297 : vector<1x16x128xbf16> to vector<16x128xbf16>
    %c1_79 = arith.constant 1 : index
    %c0_80 = arith.constant 0 : index
    %c0_81 = arith.constant 0 : index
    %299 = vector.load %arg4[%c1_79, %c0_80, %c0_81] : memref<2x1x128xf32, #tpu.memory_space<vmem>>, vector<1x1x128xf32>
    %300 = vector.shape_cast %299 : vector<1x1x128xf32> to vector<1x128xf32>
    %c1_82 = arith.constant 1 : index
    %c0_83 = arith.constant 0 : index
    %c0_84 = arith.constant 0 : index
    %301 = vector.load %arg5[%c1_82, %c0_83, %c0_84] : memref<2x32x128xbf16, #tpu.memory_space<vmem>>, vector<1x32x128xbf16>
    %302 = vector.shape_cast %301 : vector<1x32x128xbf16> to vector<32x128xbf16>
    %c1_85 = arith.constant 1 : index
    %c0_86 = arith.constant 0 : index
    %c0_87 = arith.constant 0 : index
    %303 = vector.load %arg6[%c1_85, %c0_86, %c0_87] : memref<2x16x128xbf16, #tpu.memory_space<vmem>>, vector<1x16x128xbf16>
    %304 = vector.shape_cast %303 : vector<1x16x128xbf16> to vector<16x128xbf16>
    %c1_88 = arith.constant 1 : index
    %c0_89 = arith.constant 0 : index
    %c0_90 = arith.constant 0 : index
    %305 = vector.load %arg7[%c1_88, %c0_89, %c0_90] : memref<2x1x128xf32, #tpu.memory_space<vmem>>, vector<1x1x128xf32>
    %306 = vector.shape_cast %305 : vector<1x1x128xf32> to vector<1x128xf32>
    %cst_91 = arith.constant dense<0.000000e+00> : vector<8x128xf32>
    %307 = tpu.matmul %1, %296, %cst_91 {dimension_numbers = #tpu.dot_dimension_numbers<[1], [0], [0], [1], [0, 0, 1, 1], [], []>} : vector<8x32xbf16>, vector<32x128xbf16>, vector<8x128xf32> -> vector<8x128xf32>
    %308 = vector.broadcast %300 : vector<1x128xf32> to vector<8x128xf32>
    %309 = arith.addf %307, %308 : vector<8x128xf32>
    %cst_92 = arith.constant dense<0.000000e+00> : vector<8x128xf32>
    %310 = tpu.matmul %1, %302, %cst_92 {dimension_numbers = #tpu.dot_dimension_numbers<[1], [0], [0], [1], [0, 0, 1, 1], [], []>} : vector<8x32xbf16>, vector<32x128xbf16>, vector<8x128xf32> -> vector<8x128xf32>
    %311 = vector.broadcast %306 : vector<1x128xf32> to vector<8x128xf32>
    %312 = arith.addf %310, %311 : vector<8x128xf32>
    %cst_93 = arith.constant 0.000000e+00 : f32
    %313 = vector.broadcast %cst_93 : f32 to vector<8x16xf32>
    %c-2_i32 = arith.constant -2 : i32
    %314 = vector.broadcast %c-2_i32 : i32 to vector<8x1xi32>
    %315 = arith.addi %18, %314 : vector<8x1xi32>
    %c0_i32_94 = arith.constant 0 : i32
    %316 = vector.broadcast %c0_i32_94 : i32 to vector<8x1xi32>
    %317 = arith.cmpi sge, %315, %316 : vector<8x1xi32>
    %c-2_i32_95 = arith.constant -2 : i32
    %318 = vector.broadcast %c-2_i32_95 : i32 to vector<8x1xi32>
    %319 = arith.addi %18, %318 : vector<8x1xi32>
    %c7_i32_96 = arith.constant 7 : i32
    %320 = vector.broadcast %c7_i32_96 : i32 to vector<8x1xi32>
    %321 = arith.cmpi sle, %319, %320 : vector<8x1xi32>
    %322 = arith.andi %317, %321 : vector<8x1xi1>
    %c2_i32 = arith.constant 2 : i32
    %323 = vector.broadcast %c2_i32 : i32 to vector<8x1xi32>
    %324 = arith.addi %18, %323 : vector<8x1xi32>
    %c0_i32_97 = arith.constant 0 : i32
    %325 = vector.broadcast %c0_i32_97 : i32 to vector<8x1xi32>
    %326 = arith.cmpi sge, %324, %325 : vector<8x1xi32>
    %c2_i32_98 = arith.constant 2 : i32
    %327 = vector.broadcast %c2_i32_98 : i32 to vector<8x1xi32>
    %328 = arith.addi %18, %327 : vector<8x1xi32>
    %c7_i32_99 = arith.constant 7 : i32
    %329 = vector.broadcast %c7_i32_99 : i32 to vector<8x1xi32>
    %330 = arith.cmpi sle, %328, %329 : vector<8x1xi32>
    %331 = arith.andi %326, %330 : vector<8x1xi1>
    %c2_i32_100 = arith.constant 2 : i32
    %332 = tpu.dynamic_rotate %309 by %c2_i32_100 dim 0 : vector<8x128xf32>, i32 -> vector<8x128xf32>
    %333 = arith.truncf %313 : vector<8x16xf32> to vector<8x16xbf16>
    %cst_101 = arith.constant dense<0.000000e+00> : vector<8x128xf32>
    %334 = tpu.matmul %333, %298, %cst_101 {dimension_numbers = #tpu.dot_dimension_numbers<[1], [0], [0], [1], [0, 0, 1, 1], [], []>} : vector<8x16xbf16>, vector<16x128xbf16>, vector<8x128xf32> -> vector<8x128xf32>
    %335 = arith.addf %332, %334 : vector<8x128xf32>
    %336 = vector.extract_strided_slice %335 {offsets = [0, 0], sizes = [8, 16], strides = [1, 1]} : vector<8x128xf32> to vector<8x16xf32>
    %337 = arith.negf %336 : vector<8x16xf32>
    %338 = math.exp %337 : vector<8x16xf32>
    %cst_102 = arith.constant 1.000000e+00 : f32
    %339 = vector.broadcast %cst_102 : f32 to vector<8x16xf32>
    %340 = arith.addf %339, %338 : vector<8x16xf32>
    %341 = arith.divf %339, %340 : vector<8x16xf32>
    %342 = vector.extract_strided_slice %335 {offsets = [0, 16], sizes = [8, 16], strides = [1, 1]} : vector<8x128xf32> to vector<8x16xf32>
    %343 = arith.negf %342 : vector<8x16xf32>
    %344 = math.exp %343 : vector<8x16xf32>
    %cst_103 = arith.constant 1.000000e+00 : f32
    %345 = vector.broadcast %cst_103 : f32 to vector<8x16xf32>
    %346 = arith.addf %345, %344 : vector<8x16xf32>
    %347 = arith.divf %345, %346 : vector<8x16xf32>
    %348 = vector.extract_strided_slice %335 {offsets = [0, 32], sizes = [8, 16], strides = [1, 1]} : vector<8x128xf32> to vector<8x16xf32>
    %349 = math.tanh %348 : vector<8x16xf32>
    %350 = vector.extract_strided_slice %335 {offsets = [0, 48], sizes = [8, 16], strides = [1, 1]} : vector<8x128xf32> to vector<8x16xf32>
    %351 = arith.negf %350 : vector<8x16xf32>
    %352 = math.exp %351 : vector<8x16xf32>
    %cst_104 = arith.constant 1.000000e+00 : f32
    %353 = vector.broadcast %cst_104 : f32 to vector<8x16xf32>
    %354 = arith.addf %353, %352 : vector<8x16xf32>
    %355 = arith.divf %353, %354 : vector<8x16xf32>
    %356 = arith.mulf %347, %313 : vector<8x16xf32>
    %357 = arith.mulf %341, %349 : vector<8x16xf32>
    %358 = arith.addf %356, %357 : vector<8x16xf32>
    %359 = math.tanh %358 : vector<8x16xf32>
    %360 = arith.mulf %355, %359 : vector<8x16xf32>
    %361 = vector.shape_cast %322 : vector<8x1xi1> to vector<8x1xi1>
    %362 = vector.broadcast %361 : vector<8x1xi1> to vector<8x16xi1>
    %363 = arith.select %362, %360, %313 : vector<8x16xi1>, vector<8x16xf32>
    %364 = vector.shape_cast %322 : vector<8x1xi1> to vector<8x1xi1>
    %365 = vector.broadcast %364 : vector<8x1xi1> to vector<8x16xi1>
    %366 = arith.select %365, %358, %313 : vector<8x16xi1>, vector<8x16xf32>
    %c6_i32 = arith.constant 6 : i32
    %367 = tpu.dynamic_rotate %312 by %c6_i32 dim 0 : vector<8x128xf32>, i32 -> vector<8x128xf32>
    %368 = arith.truncf %313 : vector<8x16xf32> to vector<8x16xbf16>
    %cst_105 = arith.constant dense<0.000000e+00> : vector<8x128xf32>
    %369 = tpu.matmul %368, %304, %cst_105 {dimension_numbers = #tpu.dot_dimension_numbers<[1], [0], [0], [1], [0, 0, 1, 1], [], []>} : vector<8x16xbf16>, vector<16x128xbf16>, vector<8x128xf32> -> vector<8x128xf32>
    %370 = arith.addf %367, %369 : vector<8x128xf32>
    %371 = vector.extract_strided_slice %370 {offsets = [0, 0], sizes = [8, 16], strides = [1, 1]} : vector<8x128xf32> to vector<8x16xf32>
    %372 = arith.negf %371 : vector<8x16xf32>
    %373 = math.exp %372 : vector<8x16xf32>
    %cst_106 = arith.constant 1.000000e+00 : f32
    %374 = vector.broadcast %cst_106 : f32 to vector<8x16xf32>
    %375 = arith.addf %374, %373 : vector<8x16xf32>
    %376 = arith.divf %374, %375 : vector<8x16xf32>
    %377 = vector.extract_strided_slice %370 {offsets = [0, 16], sizes = [8, 16], strides = [1, 1]} : vector<8x128xf32> to vector<8x16xf32>
    %378 = arith.negf %377 : vector<8x16xf32>
    %379 = math.exp %378 : vector<8x16xf32>
    %cst_107 = arith.constant 1.000000e+00 : f32
    %380 = vector.broadcast %cst_107 : f32 to vector<8x16xf32>
    %381 = arith.addf %380, %379 : vector<8x16xf32>
    %382 = arith.divf %380, %381 : vector<8x16xf32>
    %383 = vector.extract_strided_slice %370 {offsets = [0, 32], sizes = [8, 16], strides = [1, 1]} : vector<8x128xf32> to vector<8x16xf32>
    %384 = math.tanh %383 : vector<8x16xf32>
    %385 = vector.extract_strided_slice %370 {offsets = [0, 48], sizes = [8, 16], strides = [1, 1]} : vector<8x128xf32> to vector<8x16xf32>
    %386 = arith.negf %385 : vector<8x16xf32>
    %387 = math.exp %386 : vector<8x16xf32>
    %cst_108 = arith.constant 1.000000e+00 : f32
    %388 = vector.broadcast %cst_108 : f32 to vector<8x16xf32>
    %389 = arith.addf %388, %387 : vector<8x16xf32>
    %390 = arith.divf %388, %389 : vector<8x16xf32>
    %391 = arith.mulf %382, %313 : vector<8x16xf32>
    %392 = arith.mulf %376, %384 : vector<8x16xf32>
    %393 = arith.addf %391, %392 : vector<8x16xf32>
    %394 = math.tanh %393 : vector<8x16xf32>
    %395 = arith.mulf %390, %394 : vector<8x16xf32>
    %396 = vector.shape_cast %331 : vector<8x1xi1> to vector<8x1xi1>
    %397 = vector.broadcast %396 : vector<8x1xi1> to vector<8x16xi1>
    %398 = arith.select %397, %395, %313 : vector<8x16xi1>, vector<8x16xf32>
    %399 = vector.shape_cast %331 : vector<8x1xi1> to vector<8x1xi1>
    %400 = vector.broadcast %399 : vector<8x1xi1> to vector<8x16xi1>
    %401 = arith.select %400, %393, %313 : vector<8x16xi1>, vector<8x16xf32>
    %c-1_i32_109 = arith.constant -1 : i32
    %402 = vector.broadcast %c-1_i32_109 : i32 to vector<8x1xi32>
    %403 = arith.addi %18, %402 : vector<8x1xi32>
    %c0_i32_110 = arith.constant 0 : i32
    %404 = vector.broadcast %c0_i32_110 : i32 to vector<8x1xi32>
    %405 = arith.cmpi sge, %403, %404 : vector<8x1xi32>
    %c-1_i32_111 = arith.constant -1 : i32
    %406 = vector.broadcast %c-1_i32_111 : i32 to vector<8x1xi32>
    %407 = arith.addi %18, %406 : vector<8x1xi32>
    %c7_i32_112 = arith.constant 7 : i32
    %408 = vector.broadcast %c7_i32_112 : i32 to vector<8x1xi32>
    %409 = arith.cmpi sle, %407, %408 : vector<8x1xi32>
    %410 = arith.andi %405, %409 : vector<8x1xi1>
    %c1_i32_113 = arith.constant 1 : i32
    %411 = vector.broadcast %c1_i32_113 : i32 to vector<8x1xi32>
    %412 = arith.addi %18, %411 : vector<8x1xi32>
    %c0_i32_114 = arith.constant 0 : i32
    %413 = vector.broadcast %c0_i32_114 : i32 to vector<8x1xi32>
    %414 = arith.cmpi sge, %412, %413 : vector<8x1xi32>
    %c1_i32_115 = arith.constant 1 : i32
    %415 = vector.broadcast %c1_i32_115 : i32 to vector<8x1xi32>
    %416 = arith.addi %18, %415 : vector<8x1xi32>
    %c7_i32_116 = arith.constant 7 : i32
    %417 = vector.broadcast %c7_i32_116 : i32 to vector<8x1xi32>
    %418 = arith.cmpi sle, %416, %417 : vector<8x1xi32>
    %419 = arith.andi %414, %418 : vector<8x1xi1>
    %c1_i32_117 = arith.constant 1 : i32
    %420 = tpu.dynamic_rotate %309 by %c1_i32_117 dim 0 : vector<8x128xf32>, i32 -> vector<8x128xf32>
    %421 = arith.truncf %363 : vector<8x16xf32> to vector<8x16xbf16>
    %cst_118 = arith.constant dense<0.000000e+00> : vector<8x128xf32>
    %422 = tpu.matmul %421, %298, %cst_118 {dimension_numbers = #tpu.dot_dimension_numbers<[1], [0], [0], [1], [0, 0, 1, 1], [], []>} : vector<8x16xbf16>, vector<16x128xbf16>, vector<8x128xf32> -> vector<8x128xf32>
    %423 = arith.addf %420, %422 : vector<8x128xf32>
    %424 = vector.extract_strided_slice %423 {offsets = [0, 0], sizes = [8, 16], strides = [1, 1]} : vector<8x128xf32> to vector<8x16xf32>
    %425 = arith.negf %424 : vector<8x16xf32>
    %426 = math.exp %425 : vector<8x16xf32>
    %cst_119 = arith.constant 1.000000e+00 : f32
    %427 = vector.broadcast %cst_119 : f32 to vector<8x16xf32>
    %428 = arith.addf %427, %426 : vector<8x16xf32>
    %429 = arith.divf %427, %428 : vector<8x16xf32>
    %430 = vector.extract_strided_slice %423 {offsets = [0, 16], sizes = [8, 16], strides = [1, 1]} : vector<8x128xf32> to vector<8x16xf32>
    %431 = arith.negf %430 : vector<8x16xf32>
    %432 = math.exp %431 : vector<8x16xf32>
    %cst_120 = arith.constant 1.000000e+00 : f32
    %433 = vector.broadcast %cst_120 : f32 to vector<8x16xf32>
    %434 = arith.addf %433, %432 : vector<8x16xf32>
    %435 = arith.divf %433, %434 : vector<8x16xf32>
    %436 = vector.extract_strided_slice %423 {offsets = [0, 32], sizes = [8, 16], strides = [1, 1]} : vector<8x128xf32> to vector<8x16xf32>
    %437 = math.tanh %436 : vector<8x16xf32>
    %438 = vector.extract_strided_slice %423 {offsets = [0, 48], sizes = [8, 16], strides = [1, 1]} : vector<8x128xf32> to vector<8x16xf32>
    %439 = arith.negf %438 : vector<8x16xf32>
    %440 = math.exp %439 : vector<8x16xf32>
    %cst_121 = arith.constant 1.000000e+00 : f32
    %441 = vector.broadcast %cst_121 : f32 to vector<8x16xf32>
    %442 = arith.addf %441, %440 : vector<8x16xf32>
    %443 = arith.divf %441, %442 : vector<8x16xf32>
    %444 = arith.mulf %435, %366 : vector<8x16xf32>
    %445 = arith.mulf %429, %437 : vector<8x16xf32>
    %446 = arith.addf %444, %445 : vector<8x16xf32>
    %447 = math.tanh %446 : vector<8x16xf32>
    %448 = arith.mulf %443, %447 : vector<8x16xf32>
    %449 = vector.shape_cast %410 : vector<8x1xi1> to vector<8x1xi1>
    %450 = vector.broadcast %449 : vector<8x1xi1> to vector<8x16xi1>
    %451 = arith.select %450, %448, %363 : vector<8x16xi1>, vector<8x16xf32>
    %452 = vector.shape_cast %410 : vector<8x1xi1> to vector<8x1xi1>
    %453 = vector.broadcast %452 : vector<8x1xi1> to vector<8x16xi1>
    %454 = arith.select %453, %446, %366 : vector<8x16xi1>, vector<8x16xf32>
    %c7_i32_122 = arith.constant 7 : i32
    %455 = tpu.dynamic_rotate %312 by %c7_i32_122 dim 0 : vector<8x128xf32>, i32 -> vector<8x128xf32>
    %456 = arith.truncf %398 : vector<8x16xf32> to vector<8x16xbf16>
    %cst_123 = arith.constant dense<0.000000e+00> : vector<8x128xf32>
    %457 = tpu.matmul %456, %304, %cst_123 {dimension_numbers = #tpu.dot_dimension_numbers<[1], [0], [0], [1], [0, 0, 1, 1], [], []>} : vector<8x16xbf16>, vector<16x128xbf16>, vector<8x128xf32> -> vector<8x128xf32>
    %458 = arith.addf %455, %457 : vector<8x128xf32>
    %459 = vector.extract_strided_slice %458 {offsets = [0, 0], sizes = [8, 16], strides = [1, 1]} : vector<8x128xf32> to vector<8x16xf32>
    %460 = arith.negf %459 : vector<8x16xf32>
    %461 = math.exp %460 : vector<8x16xf32>
    %cst_124 = arith.constant 1.000000e+00 : f32
    %462 = vector.broadcast %cst_124 : f32 to vector<8x16xf32>
    %463 = arith.addf %462, %461 : vector<8x16xf32>
    %464 = arith.divf %462, %463 : vector<8x16xf32>
    %465 = vector.extract_strided_slice %458 {offsets = [0, 16], sizes = [8, 16], strides = [1, 1]} : vector<8x128xf32> to vector<8x16xf32>
    %466 = arith.negf %465 : vector<8x16xf32>
    %467 = math.exp %466 : vector<8x16xf32>
    %cst_125 = arith.constant 1.000000e+00 : f32
    %468 = vector.broadcast %cst_125 : f32 to vector<8x16xf32>
    %469 = arith.addf %468, %467 : vector<8x16xf32>
    %470 = arith.divf %468, %469 : vector<8x16xf32>
    %471 = vector.extract_strided_slice %458 {offsets = [0, 32], sizes = [8, 16], strides = [1, 1]} : vector<8x128xf32> to vector<8x16xf32>
    %472 = math.tanh %471 : vector<8x16xf32>
    %473 = vector.extract_strided_slice %458 {offsets = [0, 48], sizes = [8, 16], strides = [1, 1]} : vector<8x128xf32> to vector<8x16xf32>
    %474 = arith.negf %473 : vector<8x16xf32>
    %475 = math.exp %474 : vector<8x16xf32>
    %cst_126 = arith.constant 1.000000e+00 : f32
    %476 = vector.broadcast %cst_126 : f32 to vector<8x16xf32>
    %477 = arith.addf %476, %475 : vector<8x16xf32>
    %478 = arith.divf %476, %477 : vector<8x16xf32>
    %479 = arith.mulf %470, %401 : vector<8x16xf32>
    %480 = arith.mulf %464, %472 : vector<8x16xf32>
    %481 = arith.addf %479, %480 : vector<8x16xf32>
    %482 = math.tanh %481 : vector<8x16xf32>
    %483 = arith.mulf %478, %482 : vector<8x16xf32>
    %484 = vector.shape_cast %419 : vector<8x1xi1> to vector<8x1xi1>
    %485 = vector.broadcast %484 : vector<8x1xi1> to vector<8x16xi1>
    %486 = arith.select %485, %483, %398 : vector<8x16xi1>, vector<8x16xf32>
    %487 = vector.shape_cast %419 : vector<8x1xi1> to vector<8x1xi1>
    %488 = vector.broadcast %487 : vector<8x1xi1> to vector<8x16xi1>
    %489 = arith.select %488, %481, %401 : vector<8x16xi1>, vector<8x16xf32>
    %c0_i32_127 = arith.constant 0 : i32
    %490 = vector.broadcast %c0_i32_127 : i32 to vector<8x1xi32>
    %491 = arith.addi %18, %490 : vector<8x1xi32>
    %c0_i32_128 = arith.constant 0 : i32
    %492 = vector.broadcast %c0_i32_128 : i32 to vector<8x1xi32>
    %493 = arith.cmpi sge, %491, %492 : vector<8x1xi32>
    %c0_i32_129 = arith.constant 0 : i32
    %494 = vector.broadcast %c0_i32_129 : i32 to vector<8x1xi32>
    %495 = arith.addi %18, %494 : vector<8x1xi32>
    %c7_i32_130 = arith.constant 7 : i32
    %496 = vector.broadcast %c7_i32_130 : i32 to vector<8x1xi32>
    %497 = arith.cmpi sle, %495, %496 : vector<8x1xi32>
    %498 = arith.andi %493, %497 : vector<8x1xi1>
    %c0_i32_131 = arith.constant 0 : i32
    %499 = vector.broadcast %c0_i32_131 : i32 to vector<8x1xi32>
    %500 = arith.addi %18, %499 : vector<8x1xi32>
    %c0_i32_132 = arith.constant 0 : i32
    %501 = vector.broadcast %c0_i32_132 : i32 to vector<8x1xi32>
    %502 = arith.cmpi sge, %500, %501 : vector<8x1xi32>
    %c0_i32_133 = arith.constant 0 : i32
    %503 = vector.broadcast %c0_i32_133 : i32 to vector<8x1xi32>
    %504 = arith.addi %18, %503 : vector<8x1xi32>
    %c7_i32_134 = arith.constant 7 : i32
    %505 = vector.broadcast %c7_i32_134 : i32 to vector<8x1xi32>
    %506 = arith.cmpi sle, %504, %505 : vector<8x1xi32>
    %507 = arith.andi %502, %506 : vector<8x1xi1>
    %508 = arith.truncf %451 : vector<8x16xf32> to vector<8x16xbf16>
    %cst_135 = arith.constant dense<0.000000e+00> : vector<8x128xf32>
    %509 = tpu.matmul %508, %298, %cst_135 {dimension_numbers = #tpu.dot_dimension_numbers<[1], [0], [0], [1], [0, 0, 1, 1], [], []>} : vector<8x16xbf16>, vector<16x128xbf16>, vector<8x128xf32> -> vector<8x128xf32>
    %510 = arith.addf %309, %509 : vector<8x128xf32>
    %511 = vector.extract_strided_slice %510 {offsets = [0, 0], sizes = [8, 16], strides = [1, 1]} : vector<8x128xf32> to vector<8x16xf32>
    %512 = arith.negf %511 : vector<8x16xf32>
    %513 = math.exp %512 : vector<8x16xf32>
    %cst_136 = arith.constant 1.000000e+00 : f32
    %514 = vector.broadcast %cst_136 : f32 to vector<8x16xf32>
    %515 = arith.addf %514, %513 : vector<8x16xf32>
    %516 = arith.divf %514, %515 : vector<8x16xf32>
    %517 = vector.extract_strided_slice %510 {offsets = [0, 16], sizes = [8, 16], strides = [1, 1]} : vector<8x128xf32> to vector<8x16xf32>
    %518 = arith.negf %517 : vector<8x16xf32>
    %519 = math.exp %518 : vector<8x16xf32>
    %cst_137 = arith.constant 1.000000e+00 : f32
    %520 = vector.broadcast %cst_137 : f32 to vector<8x16xf32>
    %521 = arith.addf %520, %519 : vector<8x16xf32>
    %522 = arith.divf %520, %521 : vector<8x16xf32>
    %523 = vector.extract_strided_slice %510 {offsets = [0, 32], sizes = [8, 16], strides = [1, 1]} : vector<8x128xf32> to vector<8x16xf32>
    %524 = math.tanh %523 : vector<8x16xf32>
    %525 = vector.extract_strided_slice %510 {offsets = [0, 48], sizes = [8, 16], strides = [1, 1]} : vector<8x128xf32> to vector<8x16xf32>
    %526 = arith.negf %525 : vector<8x16xf32>
    %527 = math.exp %526 : vector<8x16xf32>
    %cst_138 = arith.constant 1.000000e+00 : f32
    %528 = vector.broadcast %cst_138 : f32 to vector<8x16xf32>
    %529 = arith.addf %528, %527 : vector<8x16xf32>
    %530 = arith.divf %528, %529 : vector<8x16xf32>
    %531 = arith.mulf %522, %454 : vector<8x16xf32>
    %532 = arith.mulf %516, %524 : vector<8x16xf32>
    %533 = arith.addf %531, %532 : vector<8x16xf32>
    %534 = math.tanh %533 : vector<8x16xf32>
    %535 = arith.mulf %530, %534 : vector<8x16xf32>
    %536 = vector.shape_cast %498 : vector<8x1xi1> to vector<8x1xi1>
    %537 = vector.broadcast %536 : vector<8x1xi1> to vector<8x16xi1>
    %538 = arith.select %537, %535, %451 : vector<8x16xi1>, vector<8x16xf32>
    %539 = vector.shape_cast %498 : vector<8x1xi1> to vector<8x1xi1>
    %540 = vector.broadcast %539 : vector<8x1xi1> to vector<8x16xi1>
    %541 = arith.select %540, %533, %454 : vector<8x16xi1>, vector<8x16xf32>
    %542 = arith.truncf %486 : vector<8x16xf32> to vector<8x16xbf16>
    %cst_139 = arith.constant dense<0.000000e+00> : vector<8x128xf32>
    %543 = tpu.matmul %542, %304, %cst_139 {dimension_numbers = #tpu.dot_dimension_numbers<[1], [0], [0], [1], [0, 0, 1, 1], [], []>} : vector<8x16xbf16>, vector<16x128xbf16>, vector<8x128xf32> -> vector<8x128xf32>
    %544 = arith.addf %312, %543 : vector<8x128xf32>
    %545 = vector.extract_strided_slice %544 {offsets = [0, 0], sizes = [8, 16], strides = [1, 1]} : vector<8x128xf32> to vector<8x16xf32>
    %546 = arith.negf %545 : vector<8x16xf32>
    %547 = math.exp %546 : vector<8x16xf32>
    %cst_140 = arith.constant 1.000000e+00 : f32
    %548 = vector.broadcast %cst_140 : f32 to vector<8x16xf32>
    %549 = arith.addf %548, %547 : vector<8x16xf32>
    %550 = arith.divf %548, %549 : vector<8x16xf32>
    %551 = vector.extract_strided_slice %544 {offsets = [0, 16], sizes = [8, 16], strides = [1, 1]} : vector<8x128xf32> to vector<8x16xf32>
    %552 = arith.negf %551 : vector<8x16xf32>
    %553 = math.exp %552 : vector<8x16xf32>
    %cst_141 = arith.constant 1.000000e+00 : f32
    %554 = vector.broadcast %cst_141 : f32 to vector<8x16xf32>
    %555 = arith.addf %554, %553 : vector<8x16xf32>
    %556 = arith.divf %554, %555 : vector<8x16xf32>
    %557 = vector.extract_strided_slice %544 {offsets = [0, 32], sizes = [8, 16], strides = [1, 1]} : vector<8x128xf32> to vector<8x16xf32>
    %558 = math.tanh %557 : vector<8x16xf32>
    %559 = vector.extract_strided_slice %544 {offsets = [0, 48], sizes = [8, 16], strides = [1, 1]} : vector<8x128xf32> to vector<8x16xf32>
    %560 = arith.negf %559 : vector<8x16xf32>
    %561 = math.exp %560 : vector<8x16xf32>
    %cst_142 = arith.constant 1.000000e+00 : f32
    %562 = vector.broadcast %cst_142 : f32 to vector<8x16xf32>
    %563 = arith.addf %562, %561 : vector<8x16xf32>
    %564 = arith.divf %562, %563 : vector<8x16xf32>
    %565 = arith.mulf %556, %489 : vector<8x16xf32>
    %566 = arith.mulf %550, %558 : vector<8x16xf32>
    %567 = arith.addf %565, %566 : vector<8x16xf32>
    %568 = math.tanh %567 : vector<8x16xf32>
    %569 = arith.mulf %564, %568 : vector<8x16xf32>
    %570 = vector.shape_cast %507 : vector<8x1xi1> to vector<8x1xi1>
    %571 = vector.broadcast %570 : vector<8x1xi1> to vector<8x16xi1>
    %572 = arith.select %571, %569, %486 : vector<8x16xi1>, vector<8x16xf32>
    %573 = vector.shape_cast %507 : vector<8x1xi1> to vector<8x1xi1>
    %574 = vector.broadcast %573 : vector<8x1xi1> to vector<8x16xi1>
    %575 = arith.select %574, %567, %489 : vector<8x16xi1>, vector<8x16xf32>
    %c1_i32_143 = arith.constant 1 : i32
    %576 = vector.broadcast %c1_i32_143 : i32 to vector<8x1xi32>
    %577 = arith.addi %18, %576 : vector<8x1xi32>
    %c0_i32_144 = arith.constant 0 : i32
    %578 = vector.broadcast %c0_i32_144 : i32 to vector<8x1xi32>
    %579 = arith.cmpi sge, %577, %578 : vector<8x1xi32>
    %c1_i32_145 = arith.constant 1 : i32
    %580 = vector.broadcast %c1_i32_145 : i32 to vector<8x1xi32>
    %581 = arith.addi %18, %580 : vector<8x1xi32>
    %c7_i32_146 = arith.constant 7 : i32
    %582 = vector.broadcast %c7_i32_146 : i32 to vector<8x1xi32>
    %583 = arith.cmpi sle, %581, %582 : vector<8x1xi32>
    %584 = arith.andi %579, %583 : vector<8x1xi1>
    %c-1_i32_147 = arith.constant -1 : i32
    %585 = vector.broadcast %c-1_i32_147 : i32 to vector<8x1xi32>
    %586 = arith.addi %18, %585 : vector<8x1xi32>
    %c0_i32_148 = arith.constant 0 : i32
    %587 = vector.broadcast %c0_i32_148 : i32 to vector<8x1xi32>
    %588 = arith.cmpi sge, %586, %587 : vector<8x1xi32>
    %c-1_i32_149 = arith.constant -1 : i32
    %589 = vector.broadcast %c-1_i32_149 : i32 to vector<8x1xi32>
    %590 = arith.addi %18, %589 : vector<8x1xi32>
    %c7_i32_150 = arith.constant 7 : i32
    %591 = vector.broadcast %c7_i32_150 : i32 to vector<8x1xi32>
    %592 = arith.cmpi sle, %590, %591 : vector<8x1xi32>
    %593 = arith.andi %588, %592 : vector<8x1xi1>
    %c7_i32_151 = arith.constant 7 : i32
    %594 = tpu.dynamic_rotate %309 by %c7_i32_151 dim 0 : vector<8x128xf32>, i32 -> vector<8x128xf32>
    %595 = arith.truncf %538 : vector<8x16xf32> to vector<8x16xbf16>
    %cst_152 = arith.constant dense<0.000000e+00> : vector<8x128xf32>
    %596 = tpu.matmul %595, %298, %cst_152 {dimension_numbers = #tpu.dot_dimension_numbers<[1], [0], [0], [1], [0, 0, 1, 1], [], []>} : vector<8x16xbf16>, vector<16x128xbf16>, vector<8x128xf32> -> vector<8x128xf32>
    %597 = arith.addf %594, %596 : vector<8x128xf32>
    %598 = vector.extract_strided_slice %597 {offsets = [0, 0], sizes = [8, 16], strides = [1, 1]} : vector<8x128xf32> to vector<8x16xf32>
    %599 = arith.negf %598 : vector<8x16xf32>
    %600 = math.exp %599 : vector<8x16xf32>
    %cst_153 = arith.constant 1.000000e+00 : f32
    %601 = vector.broadcast %cst_153 : f32 to vector<8x16xf32>
    %602 = arith.addf %601, %600 : vector<8x16xf32>
    %603 = arith.divf %601, %602 : vector<8x16xf32>
    %604 = vector.extract_strided_slice %597 {offsets = [0, 16], sizes = [8, 16], strides = [1, 1]} : vector<8x128xf32> to vector<8x16xf32>
    %605 = arith.negf %604 : vector<8x16xf32>
    %606 = math.exp %605 : vector<8x16xf32>
    %cst_154 = arith.constant 1.000000e+00 : f32
    %607 = vector.broadcast %cst_154 : f32 to vector<8x16xf32>
    %608 = arith.addf %607, %606 : vector<8x16xf32>
    %609 = arith.divf %607, %608 : vector<8x16xf32>
    %610 = vector.extract_strided_slice %597 {offsets = [0, 32], sizes = [8, 16], strides = [1, 1]} : vector<8x128xf32> to vector<8x16xf32>
    %611 = math.tanh %610 : vector<8x16xf32>
    %612 = vector.extract_strided_slice %597 {offsets = [0, 48], sizes = [8, 16], strides = [1, 1]} : vector<8x128xf32> to vector<8x16xf32>
    %613 = arith.negf %612 : vector<8x16xf32>
    %614 = math.exp %613 : vector<8x16xf32>
    %cst_155 = arith.constant 1.000000e+00 : f32
    %615 = vector.broadcast %cst_155 : f32 to vector<8x16xf32>
    %616 = arith.addf %615, %614 : vector<8x16xf32>
    %617 = arith.divf %615, %616 : vector<8x16xf32>
    %618 = arith.mulf %609, %541 : vector<8x16xf32>
    %619 = arith.mulf %603, %611 : vector<8x16xf32>
    %620 = arith.addf %618, %619 : vector<8x16xf32>
    %621 = math.tanh %620 : vector<8x16xf32>
    %622 = arith.mulf %617, %621 : vector<8x16xf32>
    %623 = vector.shape_cast %584 : vector<8x1xi1> to vector<8x1xi1>
    %624 = vector.broadcast %623 : vector<8x1xi1> to vector<8x16xi1>
    %625 = arith.select %624, %622, %538 : vector<8x16xi1>, vector<8x16xf32>
    %626 = vector.shape_cast %584 : vector<8x1xi1> to vector<8x1xi1>
    %627 = vector.broadcast %626 : vector<8x1xi1> to vector<8x16xi1>
    %628 = arith.select %627, %620, %541 : vector<8x16xi1>, vector<8x16xf32>
    %c1_i32_156 = arith.constant 1 : i32
    %629 = tpu.dynamic_rotate %312 by %c1_i32_156 dim 0 : vector<8x128xf32>, i32 -> vector<8x128xf32>
    %630 = arith.truncf %572 : vector<8x16xf32> to vector<8x16xbf16>
    %cst_157 = arith.constant dense<0.000000e+00> : vector<8x128xf32>
    %631 = tpu.matmul %630, %304, %cst_157 {dimension_numbers = #tpu.dot_dimension_numbers<[1], [0], [0], [1], [0, 0, 1, 1], [], []>} : vector<8x16xbf16>, vector<16x128xbf16>, vector<8x128xf32> -> vector<8x128xf32>
    %632 = arith.addf %629, %631 : vector<8x128xf32>
    %633 = vector.extract_strided_slice %632 {offsets = [0, 0], sizes = [8, 16], strides = [1, 1]} : vector<8x128xf32> to vector<8x16xf32>
    %634 = arith.negf %633 : vector<8x16xf32>
    %635 = math.exp %634 : vector<8x16xf32>
    %cst_158 = arith.constant 1.000000e+00 : f32
    %636 = vector.broadcast %cst_158 : f32 to vector<8x16xf32>
    %637 = arith.addf %636, %635 : vector<8x16xf32>
    %638 = arith.divf %636, %637 : vector<8x16xf32>
    %639 = vector.extract_strided_slice %632 {offsets = [0, 16], sizes = [8, 16], strides = [1, 1]} : vector<8x128xf32> to vector<8x16xf32>
    %640 = arith.negf %639 : vector<8x16xf32>
    %641 = math.exp %640 : vector<8x16xf32>
    %cst_159 = arith.constant 1.000000e+00 : f32
    %642 = vector.broadcast %cst_159 : f32 to vector<8x16xf32>
    %643 = arith.addf %642, %641 : vector<8x16xf32>
    %644 = arith.divf %642, %643 : vector<8x16xf32>
    %645 = vector.extract_strided_slice %632 {offsets = [0, 32], sizes = [8, 16], strides = [1, 1]} : vector<8x128xf32> to vector<8x16xf32>
    %646 = math.tanh %645 : vector<8x16xf32>
    %647 = vector.extract_strided_slice %632 {offsets = [0, 48], sizes = [8, 16], strides = [1, 1]} : vector<8x128xf32> to vector<8x16xf32>
    %648 = arith.negf %647 : vector<8x16xf32>
    %649 = math.exp %648 : vector<8x16xf32>
    %cst_160 = arith.constant 1.000000e+00 : f32
    %650 = vector.broadcast %cst_160 : f32 to vector<8x16xf32>
    %651 = arith.addf %650, %649 : vector<8x16xf32>
    %652 = arith.divf %650, %651 : vector<8x16xf32>
    %653 = arith.mulf %644, %575 : vector<8x16xf32>
    %654 = arith.mulf %638, %646 : vector<8x16xf32>
    %655 = arith.addf %653, %654 : vector<8x16xf32>
    %656 = math.tanh %655 : vector<8x16xf32>
    %657 = arith.mulf %652, %656 : vector<8x16xf32>
    %658 = vector.shape_cast %593 : vector<8x1xi1> to vector<8x1xi1>
    %659 = vector.broadcast %658 : vector<8x1xi1> to vector<8x16xi1>
    %660 = arith.select %659, %657, %572 : vector<8x16xi1>, vector<8x16xf32>
    %661 = vector.shape_cast %593 : vector<8x1xi1> to vector<8x1xi1>
    %662 = vector.broadcast %661 : vector<8x1xi1> to vector<8x16xi1>
    %663 = arith.select %662, %655, %575 : vector<8x16xi1>, vector<8x16xf32>
    %c2_i32_161 = arith.constant 2 : i32
    %664 = vector.broadcast %c2_i32_161 : i32 to vector<8x1xi32>
    %665 = arith.addi %18, %664 : vector<8x1xi32>
    %c0_i32_162 = arith.constant 0 : i32
    %666 = vector.broadcast %c0_i32_162 : i32 to vector<8x1xi32>
    %667 = arith.cmpi sge, %665, %666 : vector<8x1xi32>
    %c2_i32_163 = arith.constant 2 : i32
    %668 = vector.broadcast %c2_i32_163 : i32 to vector<8x1xi32>
    %669 = arith.addi %18, %668 : vector<8x1xi32>
    %c7_i32_164 = arith.constant 7 : i32
    %670 = vector.broadcast %c7_i32_164 : i32 to vector<8x1xi32>
    %671 = arith.cmpi sle, %669, %670 : vector<8x1xi32>
    %672 = arith.andi %667, %671 : vector<8x1xi1>
    %c-2_i32_165 = arith.constant -2 : i32
    %673 = vector.broadcast %c-2_i32_165 : i32 to vector<8x1xi32>
    %674 = arith.addi %18, %673 : vector<8x1xi32>
    %c0_i32_166 = arith.constant 0 : i32
    %675 = vector.broadcast %c0_i32_166 : i32 to vector<8x1xi32>
    %676 = arith.cmpi sge, %674, %675 : vector<8x1xi32>
    %c-2_i32_167 = arith.constant -2 : i32
    %677 = vector.broadcast %c-2_i32_167 : i32 to vector<8x1xi32>
    %678 = arith.addi %18, %677 : vector<8x1xi32>
    %c7_i32_168 = arith.constant 7 : i32
    %679 = vector.broadcast %c7_i32_168 : i32 to vector<8x1xi32>
    %680 = arith.cmpi sle, %678, %679 : vector<8x1xi32>
    %681 = arith.andi %676, %680 : vector<8x1xi1>
    %c6_i32_169 = arith.constant 6 : i32
    %682 = tpu.dynamic_rotate %309 by %c6_i32_169 dim 0 : vector<8x128xf32>, i32 -> vector<8x128xf32>
    %683 = arith.truncf %625 : vector<8x16xf32> to vector<8x16xbf16>
    %cst_170 = arith.constant dense<0.000000e+00> : vector<8x128xf32>
    %684 = tpu.matmul %683, %298, %cst_170 {dimension_numbers = #tpu.dot_dimension_numbers<[1], [0], [0], [1], [0, 0, 1, 1], [], []>} : vector<8x16xbf16>, vector<16x128xbf16>, vector<8x128xf32> -> vector<8x128xf32>
    %685 = arith.addf %682, %684 : vector<8x128xf32>
    %686 = vector.extract_strided_slice %685 {offsets = [0, 0], sizes = [8, 16], strides = [1, 1]} : vector<8x128xf32> to vector<8x16xf32>
    %687 = arith.negf %686 : vector<8x16xf32>
    %688 = math.exp %687 : vector<8x16xf32>
    %cst_171 = arith.constant 1.000000e+00 : f32
    %689 = vector.broadcast %cst_171 : f32 to vector<8x16xf32>
    %690 = arith.addf %689, %688 : vector<8x16xf32>
    %691 = arith.divf %689, %690 : vector<8x16xf32>
    %692 = vector.extract_strided_slice %685 {offsets = [0, 16], sizes = [8, 16], strides = [1, 1]} : vector<8x128xf32> to vector<8x16xf32>
    %693 = arith.negf %692 : vector<8x16xf32>
    %694 = math.exp %693 : vector<8x16xf32>
    %cst_172 = arith.constant 1.000000e+00 : f32
    %695 = vector.broadcast %cst_172 : f32 to vector<8x16xf32>
    %696 = arith.addf %695, %694 : vector<8x16xf32>
    %697 = arith.divf %695, %696 : vector<8x16xf32>
    %698 = vector.extract_strided_slice %685 {offsets = [0, 32], sizes = [8, 16], strides = [1, 1]} : vector<8x128xf32> to vector<8x16xf32>
    %699 = math.tanh %698 : vector<8x16xf32>
    %700 = vector.extract_strided_slice %685 {offsets = [0, 48], sizes = [8, 16], strides = [1, 1]} : vector<8x128xf32> to vector<8x16xf32>
    %701 = arith.negf %700 : vector<8x16xf32>
    %702 = math.exp %701 : vector<8x16xf32>
    %cst_173 = arith.constant 1.000000e+00 : f32
    %703 = vector.broadcast %cst_173 : f32 to vector<8x16xf32>
    %704 = arith.addf %703, %702 : vector<8x16xf32>
    %705 = arith.divf %703, %704 : vector<8x16xf32>
    %706 = arith.mulf %697, %628 : vector<8x16xf32>
    %707 = arith.mulf %691, %699 : vector<8x16xf32>
    %708 = arith.addf %706, %707 : vector<8x16xf32>
    %709 = math.tanh %708 : vector<8x16xf32>
    %710 = arith.mulf %705, %709 : vector<8x16xf32>
    %711 = vector.shape_cast %672 : vector<8x1xi1> to vector<8x1xi1>
    %712 = vector.broadcast %711 : vector<8x1xi1> to vector<8x16xi1>
    %713 = arith.select %712, %710, %625 : vector<8x16xi1>, vector<8x16xf32>
    %c2_i32_174 = arith.constant 2 : i32
    %714 = tpu.dynamic_rotate %312 by %c2_i32_174 dim 0 : vector<8x128xf32>, i32 -> vector<8x128xf32>
    %715 = arith.truncf %660 : vector<8x16xf32> to vector<8x16xbf16>
    %cst_175 = arith.constant dense<0.000000e+00> : vector<8x128xf32>
    %716 = tpu.matmul %715, %304, %cst_175 {dimension_numbers = #tpu.dot_dimension_numbers<[1], [0], [0], [1], [0, 0, 1, 1], [], []>} : vector<8x16xbf16>, vector<16x128xbf16>, vector<8x128xf32> -> vector<8x128xf32>
    %717 = arith.addf %714, %716 : vector<8x128xf32>
    %718 = vector.extract_strided_slice %717 {offsets = [0, 0], sizes = [8, 16], strides = [1, 1]} : vector<8x128xf32> to vector<8x16xf32>
    %719 = arith.negf %718 : vector<8x16xf32>
    %720 = math.exp %719 : vector<8x16xf32>
    %cst_176 = arith.constant 1.000000e+00 : f32
    %721 = vector.broadcast %cst_176 : f32 to vector<8x16xf32>
    %722 = arith.addf %721, %720 : vector<8x16xf32>
    %723 = arith.divf %721, %722 : vector<8x16xf32>
    %724 = vector.extract_strided_slice %717 {offsets = [0, 16], sizes = [8, 16], strides = [1, 1]} : vector<8x128xf32> to vector<8x16xf32>
    %725 = arith.negf %724 : vector<8x16xf32>
    %726 = math.exp %725 : vector<8x16xf32>
    %cst_177 = arith.constant 1.000000e+00 : f32
    %727 = vector.broadcast %cst_177 : f32 to vector<8x16xf32>
    %728 = arith.addf %727, %726 : vector<8x16xf32>
    %729 = arith.divf %727, %728 : vector<8x16xf32>
    %730 = vector.extract_strided_slice %717 {offsets = [0, 32], sizes = [8, 16], strides = [1, 1]} : vector<8x128xf32> to vector<8x16xf32>
    %731 = math.tanh %730 : vector<8x16xf32>
    %732 = vector.extract_strided_slice %717 {offsets = [0, 48], sizes = [8, 16], strides = [1, 1]} : vector<8x128xf32> to vector<8x16xf32>
    %733 = arith.negf %732 : vector<8x16xf32>
    %734 = math.exp %733 : vector<8x16xf32>
    %cst_178 = arith.constant 1.000000e+00 : f32
    %735 = vector.broadcast %cst_178 : f32 to vector<8x16xf32>
    %736 = arith.addf %735, %734 : vector<8x16xf32>
    %737 = arith.divf %735, %736 : vector<8x16xf32>
    %738 = arith.mulf %729, %663 : vector<8x16xf32>
    %739 = arith.mulf %723, %731 : vector<8x16xf32>
    %740 = arith.addf %738, %739 : vector<8x16xf32>
    %741 = math.tanh %740 : vector<8x16xf32>
    %742 = arith.mulf %737, %741 : vector<8x16xf32>
    %743 = vector.shape_cast %681 : vector<8x1xi1> to vector<8x1xi1>
    %744 = vector.broadcast %743 : vector<8x1xi1> to vector<8x16xi1>
    %745 = arith.select %744, %742, %660 : vector<8x16xi1>, vector<8x16xf32>
    %746 = tpu.concatenate %713, %745 in 1 : vector<8x16xf32>, vector<8x16xf32> -> vector<8x32xf32>
    %747 = arith.mulf %0, %294 : vector<8x32xf32>
    %cst_179 = arith.constant dense<0.000000e+00> : vector<8xf32>
    %748 = vector.multi_reduction <add>, %747, %cst_179 [1] : vector<8x32xf32> to vector<8xf32>
    %749 = vector.shape_cast %748 : vector<8xf32> to vector<8x1xf32>
    %cst_180 = arith.constant 0.176776692 : f32
    %750 = vector.broadcast %cst_180 : f32 to vector<8x1xf32>
    %751 = arith.mulf %749, %750 : vector<8x1xf32>
    %752 = arith.mulf %0, %746 : vector<8x32xf32>
    %cst_181 = arith.constant dense<0.000000e+00> : vector<8xf32>
    %753 = vector.multi_reduction <add>, %752, %cst_181 [1] : vector<8x32xf32> to vector<8xf32>
    %754 = vector.shape_cast %753 : vector<8xf32> to vector<8x1xf32>
    %cst_182 = arith.constant 0.176776692 : f32
    %755 = vector.broadcast %cst_182 : f32 to vector<8x1xf32>
    %756 = arith.mulf %754, %755 : vector<8x1xf32>
    %757 = tpu.concatenate %751, %756 in 1 : vector<8x1xf32>, vector<8x1xf32> -> vector<8x2xf32>
    %cst_183 = arith.constant dense<0xFF800000> : vector<8xf32>
    %758 = vector.multi_reduction <maximumf>, %757, %cst_183 [1] : vector<8x2xf32> to vector<8xf32>
    %759 = vector.shape_cast %758 : vector<8xf32> to vector<8x1xf32>
    %760 = vector.broadcast %759 : vector<8x1xf32> to vector<8x2xf32>
    %761 = arith.subf %757, %760 : vector<8x2xf32>
    %762 = math.exp %761 : vector<8x2xf32>
    %cst_184 = arith.constant dense<0.000000e+00> : vector<8xf32>
    %763 = vector.multi_reduction <add>, %762, %cst_184 [1] : vector<8x2xf32> to vector<8xf32>
    %764 = vector.shape_cast %763 : vector<8xf32> to vector<8x1xf32>
    %765 = tpu.reciprocal %764 {approx = true} : vector<8x1xf32> -> vector<8x1xf32>
    %cst_185 = arith.constant 0.000000e+00 : f32
    %766 = vector.broadcast %cst_185 : f32 to vector<8x32xf32>
    %767 = vector.extract_strided_slice %762 {offsets = [0, 0], sizes = [8, 1], strides = [1, 1]} : vector<8x2xf32> to vector<8x1xf32>
    %768 = arith.mulf %767, %765 : vector<8x1xf32>
    %769 = vector.broadcast %768 : vector<8x1xf32> to vector<8x32xf32>
    %770 = arith.mulf %769, %294 : vector<8x32xf32>
    %771 = arith.addf %766, %770 : vector<8x32xf32>
    %772 = vector.extract_strided_slice %762 {offsets = [0, 1], sizes = [8, 1], strides = [1, 1]} : vector<8x2xf32> to vector<8x1xf32>
    %773 = arith.mulf %772, %765 : vector<8x1xf32>
    %774 = vector.broadcast %773 : vector<8x1xf32> to vector<8x32xf32>
    %775 = arith.mulf %774, %746 : vector<8x32xf32>
    %776 = arith.addf %771, %775 : vector<8x32xf32>
    %777 = arith.addf %0, %776 : vector<8x32xf32>
    %778 = arith.truncf %777 : vector<8x32xf32> to vector<8x32xbf16>
    %c0_186 = arith.constant 0 : index
    %c0_187 = arith.constant 0 : index
    %779 = vector.load %arg8[%c0_186, %c0_187] : memref<32x128xbf16, #tpu.memory_space<vmem>>, vector<32x128xbf16>
    %cst_188 = arith.constant dense<0.000000e+00> : vector<8x128xf32>
    %780 = tpu.matmul %778, %779, %cst_188 {dimension_numbers = #tpu.dot_dimension_numbers<[1], [0], [0], [1], [0, 0, 1, 1], [], []>} : vector<8x32xbf16>, vector<32x128xbf16>, vector<8x128xf32> -> vector<8x128xf32>
    %c0_189 = arith.constant 0 : index
    %c0_190 = arith.constant 0 : index
    %781 = vector.load %arg9[%c0_189, %c0_190] : memref<1x128xf32, #tpu.memory_space<vmem>>, vector<1x128xf32>
    %782 = vector.broadcast %781 : vector<1x128xf32> to vector<8x128xf32>
    %783 = arith.addf %780, %782 : vector<8x128xf32>
    %c0_191 = arith.constant 0 : index
    %c0_192 = arith.constant 0 : index
    %784 = vector.load %arg10[%c0_191, %c0_192] : memref<8x128xf32, #tpu.memory_space<vmem>>, vector<8x128xf32>
    tpu.vector_store %arg10[%c0_191, %c0_192], %783 {strides = array<i32>} : memref<8x128xf32, #tpu.memory_space<vmem>>, vector<8x128xf32>,
    return
  }
  func.func @transform_0(%arg0: i32) -> (i32, i32) {
    %c0_i32 = arith.constant 0 : i32
    %c0_i32_0 = arith.constant 0 : i32
    return %arg0, %c0_i32 : i32, i32
  }
  func.func @transform_1(%arg0: i32) -> (i32, i32, i32) {
    %c0_i32 = arith.constant 0 : i32
    %c0_i32_0 = arith.constant 0 : i32
    %c0_i32_1 = arith.constant 0 : i32
    %c0_i32_2 = arith.constant 0 : i32
    return %c0_i32, %c0_i32_0, %c0_i32_1 : i32, i32, i32
  }
  func.func @transform_2(%arg0: i32) -> (i32, i32, i32) {
    %c0_i32 = arith.constant 0 : i32
    %c0_i32_0 = arith.constant 0 : i32
    %c0_i32_1 = arith.constant 0 : i32
    %c0_i32_2 = arith.constant 0 : i32
    return %c0_i32, %c0_i32_0, %c0_i32_1 : i32, i32, i32
  }
  func.func @transform_3(%arg0: i32) -> (i32, i32, i32) {
    %c0_i32 = arith.constant 0 : i32
    %c0_i32_0 = arith.constant 0 : i32
    %c0_i32_1 = arith.constant 0 : i32
    %c0_i32_2 = arith.constant 0 : i32
    return %c0_i32, %c0_i32_0, %c0_i32_1 : i32, i32, i32
  }
  func.func @transform_4(%arg0: i32) -> (i32, i32, i32) {
    %c0_i32 = arith.constant 0 : i32
    %c0_i32_0 = arith.constant 0 : i32
    %c0_i32_1 = arith.constant 0 : i32
    %c0_i32_2 = arith.constant 0 : i32
    return %c0_i32, %c0_i32_0, %c0_i32_1 : i32, i32, i32
  }
  func.func @transform_5(%arg0: i32) -> (i32, i32, i32) {
    %c0_i32 = arith.constant 0 : i32
    %c0_i32_0 = arith.constant 0 : i32
    %c0_i32_1 = arith.constant 0 : i32
    %c0_i32_2 = arith.constant 0 : i32
    return %c0_i32, %c0_i32_0, %c0_i32_1 : i32, i32, i32
  }
  func.func @transform_6(%arg0: i32) -> (i32, i32, i32) {
    %c0_i32 = arith.constant 0 : i32
    %c0_i32_0 = arith.constant 0 : i32
    %c0_i32_1 = arith.constant 0 : i32
    %c0_i32_2 = arith.constant 0 : i32
    return %c0_i32, %c0_i32_0, %c0_i32_1 : i32, i32, i32
  }
  func.func @transform_7(%arg0: i32) -> (i32, i32) {
    %c0_i32 = arith.constant 0 : i32
    %c0_i32_0 = arith.constant 0 : i32
    %c0_i32_1 = arith.constant 0 : i32
    return %c0_i32, %c0_i32_0 : i32, i32
  }
  func.func @transform_8(%arg0: i32) -> (i32, i32) {
    %c0_i32 = arith.constant 0 : i32
    %c0_i32_0 = arith.constant 0 : i32
    %c0_i32_1 = arith.constant 0 : i32
    return %c0_i32, %c0_i32_0 : i32, i32
  }
  func.func @transform_9(%arg0: i32) -> (i32, i32) {
    %c0_i32 = arith.constant 0 : i32
    %c0_i32_0 = arith.constant 0 : i32
    return %arg0, %c0_i32 : i32, i32
  }
}

</mosaic_0001>

<llo_original>
// kernel: tpu_custom_call.1
$region0: #{tpu_custom_call.1}
  #allocation0 [shape = 'u32[]', space=smem, size = 0x4, offset = 0x4, fixed_abs, tag = 'smem constant byte address 0x4 - core index']
  #allocation1 [shape = 'u32[144,128]{1,0:T(1,128)}', space=vmem, size = 0x12000, scoped, tag = 'internal scratch']
  %s0 = inlined_call_operand.hbm [shape: f32[16,32], index: 0, kind: input, shape index: {}]
  %s1 = inlined_call_operand.hbm [shape: bf16[2,32,128], index: 1, kind: input, shape index: {}]
  %s2 = inlined_call_operand.hbm [shape: bf16[2,16,128], index: 2, kind: input, shape index: {}]
  %s3 = inlined_call_operand.vmem [shape: f32[2,1,128], index: 3, kind: input, shape index: {}]
  %s4 = inlined_call_operand.hbm [shape: bf16[2,32,128], index: 4, kind: input, shape index: {}]
  %s5 = inlined_call_operand.vmem [shape: bf16[2,16,128], index: 5, kind: input, shape index: {}]
  %s6 = inlined_call_operand.vmem [shape: f32[2,1,128], index: 6, kind: input, shape index: {}]
  %s7 = inlined_call_operand.hbm [shape: bf16[32,128], index: 7, kind: input, shape index: {}]
  %s8 = inlined_call_operand.vmem [shape: f32[1,128], index: 8, kind: input, shape index: {}]
  %s9 = inlined_call_operand.hbm [shape: f32[16,128], index: 9, kind: output, shape index: {}]
  %s10 = sld [smem:[#allocation0]]
  $region89: #{tpu_custom_call.1} parent=0
    _
  %s12 = ssub.s32 1, %s10
  %s13 = scalar_select 0, %s12, %s10
  $region1: #{tpu_custom_call.1} parent=0
    #allocation2 [shape = 'u8[8192]{0}', space=vmem, size = 0x2000, scoped, tag = 'input window, operand 0']
    #allocation3 [shape = 's32[2]{0}', space=sflag, size = 0x8, scoped, tag = 'scoped memory for tpu_custom_call.1']
    #allocation4 [shape = 's32[2]{0}', space=sflag, size = 0x8, scoped, tag = 'scoped memory for tpu_custom_call.1']
    #allocation5 [shape = 'u8[16384]{0}', space=vmem, size = 0x4000, scoped, tag = 'input window, operand 1, single buffered']
    #allocation6 [shape = 's32[1]{0}', space=sflag, size = 0x4, scoped, tag = 'scoped memory for tpu_custom_call.1']
    #allocation7 [shape = 'u8[8192]{0}', space=vmem, size = 0x2000, scoped, tag = 'input window, operand 2, single buffered']
    #allocation8 [shape = 'u8[16384]{0}', space=vmem, size = 0x4000, scoped, tag = 'input window, operand 4, single buffered']
    #allocation9 [shape = 's32[1]{0}', space=sflag, size = 0x4, scoped, tag = 'scoped memory for tpu_custom_call.1']
    #allocation10 [shape = 'u8[8192]{0}', space=vmem, size = 0x2000, scoped, tag = 'input window, operand 7, single buffered']
    #allocation11 [shape = 'u8[8192]{0}', space=vmem, size = 0x2000, scoped, tag = 'output window, operand 0']
    %14 = vsyncpa [#allocation3], 0
    %s15 = scalar_lea.sflag [#allocation3], 1
    %16 = vsyncpa %s15, 0
    %17 = vsyncpa [#allocation6], 0
    %18 = vsyncpa [#allocation9], 0
    %19 = vsyncpa [#allocation4], 0
    %s20 = scalar_lea.sflag [#allocation4], 1
    %21 = vsyncpa %s20, 0
    loop: start=0, step=1, limit=4
    $region2: #{tpu_custom_call.1} parent=1 // loop_pre_header
      _
    $region3: #{tpu_custom_call.1} parent=1 // loop_header
      %s23 = sphi 0, %s27
      %p24 = scmp.ge.s32.totalorder %s23, 4
      %s33 = sphi 0, %s35
      %s36 = sphi 0, %s33
      %s37 = sphi 0, %s36
      %s53 = sphi 0, %s37
      %s57 = sphi 0, %s57
      %s59 = sphi 0, %s57
      %s60 = sphi 0, %s59
      %s74 = sphi 0, %s60
      %s78 = sphi 0, %s78
      %s80 = sphi 0, %s78
      %s81 = sphi 0, %s80
      %s95 = sphi 0, %s81
      %s99 = sphi 0, %s99
      %s101 = sphi 0, %s99
      %s102 = sphi 0, %s101
      %s116 = sphi 0, %s102
      %s120 = sphi 0, %s120
      %s122 = sphi 0, %s120
      %s123 = sphi 0, %s122
      %s137 = sphi 0, %s123
      %s141 = sphi 0, %s141
      %s143 = sphi 0, %s141
      %s144 = sphi 0, %s143
      %s158 = sphi 0, %s144
      %s162 = sphi 0, %s162
      %s164 = sphi 0, %s162
      %s165 = sphi 0, %s164
      %s179 = sphi 0, %s165
      %s183 = sphi 0, %s183
      %s185 = sphi 0, %s183
      %s186 = sphi 0, %s185
      %s200 = sphi 0, %s186
      %s204 = sphi 0, %s204
      %s206 = sphi 0, %s204
      %s207 = sphi 0, %s206
      %s221 = sphi 0, %s207
      %s227 = sphi 0, %s229
      %s230 = sphi 0, %s227
      %s231 = sphi 0, %s230
      %s247 = sphi 0, %s231
    $region4: #{tpu_custom_call.1} parent=1 // loop_header_branch
      %26 = sbr.rel (%p24) target = $region8
    $region5: #{tpu_custom_call.1} parent=1 // loop_body
      %s28 = ssub.s32 %s23, 1
      %s29 = ssub.s32 %s23, 2
      %s30 = sadd.s32 %s23, 1
      %s31 = ssub.s32 %s23, %s30
      %p32 = scmp.eq.s32.totalorder %s31, 0
      %s34 = sadd.s32 %s33, 1
      %s35 = scalar_select %p32, %s33, %s34
      %p38 = pneg %p32
      %p39 = scmp.eq.s32.totalorder %s23, 1
      %p40 = por %p38, %p39
      %p41 = scmp.ne.s32.totalorder %s33, %s36
      %p42 = scmp.eq.s32.totalorder %s23, 0
      %p43 = por %p41, %p42
      %p44 = scmp.ne.s32.totalorder %s33, %s36
      %p45 = scmp.eq.s32.totalorder %s28, 1
      %p46 = por %p44, %p45
      %p47 = scmp.ne.s32.totalorder %s36, %s37
      %p48 = scmp.eq.s32.totalorder %s28, 0
      %p49 = por %p47, %p48
      %p50 = scmp.ne.s32.totalorder %s36, %s37
      %p51 = scmp.eq.s32.totalorder %s29, 1
      %p52 = por %p50, %p51
      %p54 = scmp.ne.s32.totalorder %s37, %s53
      %p55 = scmp.eq.s32.totalorder %s29, 0
      %p56 = por %p54, %p55
      %s58 = sadd.s32 %s57, 1
      %p61 = scmp.eq.s32.totalorder %s23, 1
      %p62 = scmp.ne.s32.totalorder %s57, %s59
      %p63 = scmp.eq.s32.totalorder %s23, 0
      %p64 = por %p62, %p63
      %p65 = scmp.ne.s32.totalorder %s57, %s59
      %p66 = scmp.eq.s32.totalorder %s28, 1
      %p67 = por %p65, %p66
      %p68 = scmp.ne.s32.totalorder %s59, %s60
      %p69 = scmp.eq.s32.totalorder %s28, 0
      %p70 = por %p68, %p69
      %p71 = scmp.ne.s32.totalorder %s59, %s60
      %p72 = scmp.eq.s32.totalorder %s29, 1
      %p73 = por %p71, %p72
      %p75 = scmp.ne.s32.totalorder %s60, %s74
      %p76 = scmp.eq.s32.totalorder %s29, 0
      %p77 = por %p75, %p76
      %s79 = sadd.s32 %s78, 1
      %p82 = scmp.eq.s32.totalorder %s23, 1
      %p83 = scmp.ne.s32.totalorder %s78, %s80
      %p84 = scmp.eq.s32.totalorder %s23, 0
      %p85 = por %p83, %p84
      %p86 = scmp.ne.s32.totalorder %s78, %s80
      %p87 = scmp.eq.s32.totalorder %s28, 1
      %p88 = por %p86, %p87
      %p89 = scmp.ne.s32.totalorder %s80, %s81
      %p90 = scmp.eq.s32.totalorder %s28, 0
      %p91 = por %p89, %p90
      %p92 = scmp.ne.s32.totalorder %s80, %s81
      %p93 = scmp.eq.s32.totalorder %s29, 1
      %p94 = por %p92, %p93
      %p96 = scmp.ne.s32.totalorder %s81, %s95
      %p97 = scmp.eq.s32.totalorder %s29, 0
      %p98 = por %p96, %p97
      %s100 = sadd.s32 %s99, 1
      %p103 = scmp.eq.s32.totalorder %s23, 1
      %p104 = scmp.ne.s32.totalorder %s99, %s101
      %p105 = scmp.eq.s32.totalorder %s23, 0
      %p106 = por %p104, %p105
      %p107 = scmp.ne.s32.totalorder %s99, %s101
      %p108 = scmp.eq.s32.totalorder %s28, 1
      %p109 = por %p107, %p108
      %p110 = scmp.ne.s32.totalorder %s101, %s102
      %p111 = scmp.eq.s32.totalorder %s28, 0
      %p112 = por %p110, %p111
      %p113 = scmp.ne.s32.totalorder %s101, %s102
      %p114 = scmp.eq.s32.totalorder %s29, 1
      %p115 = por %p113, %p114
      %p117 = scmp.ne.s32.totalorder %s102, %s116
      %p118 = scmp.eq.s32.totalorder %s29, 0
      %p119 = por %p117, %p118
      %s121 = sadd.s32 %s120, 1
      %p124 = scmp.eq.s32.totalorder %s23, 1
      %p125 = scmp.ne.s32.totalorder %s120, %s122
      %p126 = scmp.eq.s32.totalorder %s23, 0
      %p127 = por %p125, %p126
      %p128 = scmp.ne.s32.totalorder %s120, %s122
      %p129 = scmp.eq.s32.totalorder %s28, 1
      %p130 = por %p128, %p129
      %p131 = scmp.ne.s32.totalorder %s122, %s123
      %p132 = scmp.eq.s32.totalorder %s28, 0
      %p133 = por %p131, %p132
      %p134 = scmp.ne.s32.totalorder %s122, %s123
      %p135 = scmp.eq.s32.totalorder %s29, 1
      %p136 = por %p134, %p135
      %p138 = scmp.ne.s32.totalorder %s123, %s137
      %p139 = scmp.eq.s32.totalorder %s29, 0
      %p140 = por %p138, %p139
      %s142 = sadd.s32 %s141, 1
      %p145 = scmp.eq.s32.totalorder %s23, 1
      %p146 = scmp.ne.s32.totalorder %s141, %s143
      %p147 = scmp.eq.s32.totalorder %s23, 0
      %p148 = por %p146, %p147
      %p149 = scmp.ne.s32.totalorder %s141, %s143
      %p150 = scmp.eq.s32.totalorder %s28, 1
      %p151 = por %p149, %p150
      %p152 = scmp.ne.s32.totalorder %s143, %s144
      %p153 = scmp.eq.s32.totalorder %s28, 0
      %p154 = por %p152, %p153
      %p155 = scmp.ne.s32.totalorder %s143, %s144
      %p156 = scmp.eq.s32.totalorder %s29, 1
      %p157 = por %p155, %p156
      %p159 = scmp.ne.s32.totalorder %s144, %s158
      %p160 = scmp.eq.s32.totalorder %s29, 0
      %p161 = por %p159, %p160
      %s163 = sadd.s32 %s162, 1
      %p166 = scmp.eq.s32.totalorder %s23, 1
      %p167 = scmp.ne.s32.totalorder %s162, %s164
      %p168 = scmp.eq.s32.totalorder %s23, 0
      %p169 = por %p167, %p168
      %p170 = scmp.ne.s32.totalorder %s162, %s164
      %p171 = scmp.eq.s32.totalorder %s28, 1
      %p172 = por %p170, %p171
      %p173 = scmp.ne.s32.totalorder %s164, %s165
      %p174 = scmp.eq.s32.totalorder %s28, 0
      %p175 = por %p173, %p174
      %p176 = scmp.ne.s32.totalorder %s164, %s165
      %p177 = scmp.eq.s32.totalorder %s29, 1
      %p178 = por %p176, %p177
      %p180 = scmp.ne.s32.totalorder %s165, %s179
      %p181 = scmp.eq.s32.totalorder %s29, 0
      %p182 = por %p180, %p181
      %s184 = sadd.s32 %s183, 1
      %p187 = scmp.eq.s32.totalorder %s23, 1
      %p188 = scmp.ne.s32.totalorder %s183, %s185
      %p189 = scmp.eq.s32.totalorder %s23, 0
      %p190 = por %p188, %p189
      %p191 = scmp.ne.s32.totalorder %s183, %s185
      %p192 = scmp.eq.s32.totalorder %s28, 1
      %p193 = por %p191, %p192
      %p194 = scmp.ne.s32.totalorder %s185, %s186
      %p195 = scmp.eq.s32.totalorder %s28, 0
      %p196 = por %p194, %p195
      %p197 = scmp.ne.s32.totalorder %s185, %s186
      %p198 = scmp.eq.s32.totalorder %s29, 1
      %p199 = por %p197, %p198
      %p201 = scmp.ne.s32.totalorder %s186, %s200
      %p202 = scmp.eq.s32.totalorder %s29, 0
      %p203 = por %p201, %p202
      %s205 = sadd.s32 %s204, 1
      %p208 = scmp.eq.s32.totalorder %s23, 1
      %p209 = scmp.ne.s32.totalorder %s204, %s206
      %p210 = scmp.eq.s32.totalorder %s23, 0
      %p211 = por %p209, %p210
      %p212 = scmp.ne.s32.totalorder %s204, %s206
      %p213 = scmp.eq.s32.totalorder %s28, 1
      %p214 = por %p212, %p213
      %p215 = scmp.ne.s32.totalorder %s206, %s207
      %p216 = scmp.eq.s32.totalorder %s28, 0
      %p217 = por %p215, %p216
      %p218 = scmp.ne.s32.totalorder %s206, %s207
      %p219 = scmp.eq.s32.totalorder %s29, 1
      %p220 = por %p218, %p219
      %p222 = scmp.ne.s32.totalorder %s207, %s221
      %p223 = scmp.eq.s32.totalorder %s29, 0
      %p224 = por %p222, %p223
      %s225 = ssub.s32 %s23, %s30
      %p226 = scmp.eq.s32.totalorder %s225, 0
      %s228 = sadd.s32 %s227, 1
      %s229 = scalar_select %p226, %s227, %s228
      %p232 = pneg %p226
      %p233 = scmp.eq.s32.totalorder %s23, 1
      %p234 = por %p232, %p233
      %p235 = scmp.ne.s32.totalorder %s227, %s230
      %p236 = scmp.eq.s32.totalorder %s23, 0
      %p237 = por %p235, %p236
      %p238 = scmp.ne.s32.totalorder %s227, %s230
      %p239 = scmp.eq.s32.totalorder %s28, 1
      %p240 = por %p238, %p239
      %p241 = scmp.ne.s32.totalorder %s230, %s231
      %p242 = scmp.eq.s32.totalorder %s28, 0
      %p243 = por %p241, %p242
      %p244 = scmp.ne.s32.totalorder %s230, %s231
      %p245 = scmp.eq.s32.totalorder %s29, 1
      %p246 = por %p244, %p245
      %p248 = scmp.ne.s32.totalorder %s231, %s247
      %p249 = scmp.eq.s32.totalorder %s29, 0
      %p250 = por %p248, %p249
      %p251 = scmp.le.s32.totalorder 1, %s23
      %p252 = scmp.lt.s32.totalorder %s23, 3
      %p253 = pnand %p251, %p252
      %p254 = pneg %p253
      // Predicated region
      $region9: #{tpu_custom_call.1} parent=5 // pred_check
        _
      $region10: #{tpu_custom_call.1} parent=5 // pred_check_branch
        %256 = sbr.rel (%p253) target = $region12
      $region11: #{tpu_custom_call.1} parent=5 // pred_region
        %s257 = ssub.s32 %s23, 1
        // Predicated region
        $region13: #{tpu_custom_call.1} parent=11 // pred_check
          %p258 = pneg %p70
        $region14: #{tpu_custom_call.1} parent=11 // pred_check_branch
          %260 = sbr.rel (%p258) target = $region16
        $region15: #{tpu_custom_call.1} parent=11 // pred_region
          %s262 = ssub.s32 512, 512
          %263 = vsyncadd [#allocation6], %s262
          %s264 = sshll.u32 [#allocation5], 4
          %s265 = int_to_ptr.vmem [resolvable:$true] %s264
          %270 = dma.hbm_to_vmem [thread:$0]  %s1, 512, %s265, [#allocation6], 64, 64, 4
        $region16: #{tpu_custom_call.1} parent=11 // pred_fallthru
          _
        // Predicated region
        $region17: #{tpu_custom_call.1} parent=11 // pred_check
          %p271 = pneg %p91
        $region18: #{tpu_custom_call.1} parent=11 // pred_check_branch
          %273 = sbr.rel (%p271) target = $region20
        $region19: #{tpu_custom_call.1} parent=11 // pred_region
          %s275 = ssub.s32 256, 256
          %276 = vsyncadd [#allocation6], %s275
          %s277 = sshll.u32 [#allocation7], 4
          %s278 = int_to_ptr.vmem [resolvable:$true] %s277
          %283 = dma.hbm_to_vmem [thread:$0]  %s2, 256, %s278, [#allocation6], 64, 64, 4
        $region20: #{tpu_custom_call.1} parent=11 // pred_fallthru
          _
        // Predicated region
        $region21: #{tpu_custom_call.1} parent=11 // pred_check
          %p284 = pneg %p112
        $region22: #{tpu_custom_call.1} parent=11 // pred_check_branch
          %286 = sbr.rel (%p284) target = $region24
        $region23: #{tpu_custom_call.1} parent=11 // pred_region
          _
        $region24: #{tpu_custom_call.1} parent=11 // pred_fallthru
          _
        // Predicated region
        $region25: #{tpu_custom_call.1} parent=11 // pred_check
          %p287 = pneg %p133
        $region26: #{tpu_custom_call.1} parent=11 // pred_check_branch
          %289 = sbr.rel (%p287) target = $region28
        $region27: #{tpu_custom_call.1} parent=11 // pred_region
          %s291 = ssub.s32 512, 512
          %292 = vsyncadd [#allocation9], %s291
          %s293 = sshll.u32 [#allocation8], 4
          %s294 = int_to_ptr.vmem [resolvable:$true] %s293
          %299 = dma.hbm_to_vmem [thread:$0]  %s4, 512, %s294, [#allocation9], 64, 64, 4
        $region28: #{tpu_custom_call.1} parent=11 // pred_fallthru
          _
        // Predicated region
        $region29: #{tpu_custom_call.1} parent=11 // pred_check
          %p300 = pneg %p154
        $region30: #{tpu_custom_call.1} parent=11 // pred_check_branch
          %302 = sbr.rel (%p300) target = $region32
        $region31: #{tpu_custom_call.1} parent=11 // pred_region
          _
        $region32: #{tpu_custom_call.1} parent=11 // pred_fallthru
          _
        // Predicated region
        $region33: #{tpu_custom_call.1} parent=11 // pred_check
          %p303 = pneg %p175
        $region34: #{tpu_custom_call.1} parent=11 // pred_check_branch
          %305 = sbr.rel (%p303) target = $region36
        $region35: #{tpu_custom_call.1} parent=11 // pred_region
          _
        $region36: #{tpu_custom_call.1} parent=11 // pred_fallthru
          _
        // Predicated region
        $region37: #{tpu_custom_call.1} parent=11 // pred_check
          %p306 = pneg %p196
        $region38: #{tpu_custom_call.1} parent=11 // pred_check_branch
          %308 = sbr.rel (%p306) target = $region40
        $region39: #{tpu_custom_call.1} parent=11 // pred_region
          %s310 = ssub.s32 256, 256
          %311 = vsyncadd [#allocation9], %s310
          %s312 = sshll.u32 [#allocation10], 4
          %s313 = int_to_ptr.vmem [resolvable:$true] %s312
          %318 = dma.hbm_to_vmem [thread:$0]  %s7, 256, %s313, [#allocation9], 64, 64, 4
        $region40: #{tpu_custom_call.1} parent=11 // pred_fallthru
          _
        // Predicated region
        $region41: #{tpu_custom_call.1} parent=11 // pred_check
          %p319 = pneg %p217
        $region42: #{tpu_custom_call.1} parent=11 // pred_check_branch
          %321 = sbr.rel (%p319) target = $region44
        $region43: #{tpu_custom_call.1} parent=11 // pred_region
          _
        $region44: #{tpu_custom_call.1} parent=11 // pred_fallthru
          _
      $region12: #{tpu_custom_call.1} parent=5 // pred_fallthru
        _
      %p322 = scmp.lt.s32.totalorder %s23, 2
      // Predicated region
      $region45: #{tpu_custom_call.1} parent=5 // pred_check
        %p323 = pneg %p322
      $region46: #{tpu_custom_call.1} parent=5 // pred_check_branch
        %325 = sbr.rel (%p323) target = $region48
      $region47: #{tpu_custom_call.1} parent=5 // pred_region
        // Predicated region
        $region49: #{tpu_custom_call.1} parent=47 // pred_check
          %p326 = pneg %p43
        $region50: #{tpu_custom_call.1} parent=47 // pred_check_branch
          %328 = sbr.rel (%p326) target = $region52
        $region51: #{tpu_custom_call.1} parent=47 // pred_region
          %s329 = sand.u32 %s33, 1
          %s330 = scalar_lea.sflag [#allocation3], %s329
          %s331 = sand.u32 %s33, 1
          %s332 = smul.addr %s331, 8
          %s333 = scalar_lea.vmem [#allocation2], %s332
          %s335 = ssub.s32 128, 128
          %336 = vsyncadd %s330, %s335
          %s337 = smul.addr %s23, 128
          %s338 = scalar_lea.hbm %s0, %s337
          %s340 = sshll.u32 %s333, 4
          %s341 = int_to_ptr.vmem [resolvable:$true] %s340
          %343 = dma.hbm_to_vmem [thread:$0]  %s338, 128, %s341, %s330
        $region52: #{tpu_custom_call.1} parent=47 // pred_fallthru
          _
      $region48: #{tpu_custom_call.1} parent=5 // pred_fallthru
        _
      %p344 = scmp.le.s32.totalorder 1, %s23
      %p345 = scmp.lt.s32.totalorder %s23, 3
      %p346 = pnand %p344, %p345
      %p347 = pneg %p346
      // Predicated region
      $region53: #{tpu_custom_call.1} parent=5 // pred_check
        _
      $region54: #{tpu_custom_call.1} parent=5 // pred_check_branch
        %349 = sbr.rel (%p346) target = $region56
      $region55: #{tpu_custom_call.1} parent=5 // pred_region
        %s350 = ssub.s32 %s23, 1
        %s351 = sand.u32 %s36, 1
        %s352 = scalar_lea.sflag [#allocation3], %s351
        %s353 = sand.u32 %s36, 1
        %s354 = smul.addr %s353, 8
        %s355 = scalar_lea.vmem [#allocation2], %s354
        // Predicated region
        $region57: #{tpu_custom_call.1} parent=55 // pred_check
          %p356 = pneg %p49
        $region58: #{tpu_custom_call.1} parent=55 // pred_check_branch
          %358 = sbr.rel (%p356) target = $region60
        $region59: #{tpu_custom_call.1} parent=55 // pred_region
          %359 = dma.done %s352, 128
        $region60: #{tpu_custom_call.1} parent=55 // pred_fallthru
          _
        // Predicated region
        $region61: #{tpu_custom_call.1} parent=55 // pred_check
          %p360 = pneg %p70
        $region62: #{tpu_custom_call.1} parent=55 // pred_check_branch
          %362 = sbr.rel (%p360) target = $region64
        $region63: #{tpu_custom_call.1} parent=55 // pred_region
          %363 = dma.done [#allocation6], 512
        $region64: #{tpu_custom_call.1} parent=55 // pred_fallthru
          _
        // Predicated region
        $region65: #{tpu_custom_call.1} parent=55 // pred_check
          %p364 = pneg %p91
        $region66: #{tpu_custom_call.1} parent=55 // pred_check_branch
          %366 = sbr.rel (%p364) target = $region68
        $region67: #{tpu_custom_call.1} parent=55 // pred_region
          %367 = dma.done [#allocation6], 256
        $region68: #{tpu_custom_call.1} parent=55 // pred_fallthru
          _
        // Predicated region
        $region69: #{tpu_custom_call.1} parent=55 // pred_check
          %p368 = pneg %p133
        $region70: #{tpu_custom_call.1} parent=55 // pred_check_branch
          %370 = sbr.rel (%p368) target = $region72
        $region71: #{tpu_custom_call.1} parent=55 // pred_region
          %371 = dma.done [#allocation9], 512
        $region72: #{tpu_custom_call.1} parent=55 // pred_fallthru
          _
        // Predicated region
        $region73: #{tpu_custom_call.1} parent=55 // pred_check
          %p372 = pneg %p196
        $region74: #{tpu_custom_call.1} parent=55 // pred_check_branch
          %374 = sbr.rel (%p372) target = $region76
        $region75: #{tpu_custom_call.1} parent=55 // pred_region
          %375 = dma.done [#allocation9], 256
        $region76: #{tpu_custom_call.1} parent=55 // pred_fallthru
          _
        %s376 = sand.u32 %s36, 1
        %s377 = scalar_lea.sflag [#allocation3], %s376
        %s378 = sand.u32 %s36, 1
        %s379 = smul.addr %s378, 8
        %s380 = scalar_lea.vmem [#allocation2], %s379
        %p381 = pneg %p49
        %p382 = pneg %p46
        %p383 = pneg %p70
        %p384 = pneg %p67
        %p385 = pneg %p91
        %p386 = pneg %p88
        %p387 = pneg %p112
        %p388 = pneg %p109
        %p389 = pneg %p133
        %p390 = pneg %p130
        %p391 = pneg %p154
        %p392 = pneg %p151
        %p393 = pneg %p175
        %p394 = pneg %p172
        %p395 = pneg %p196
        %p396 = pneg %p193
        %p397 = pneg %p217
        %p398 = pneg %p214
        %p399 = pneg %p243
        %p400 = pneg %p240
        %s401 = sand.u32 %s230, 1
        %s402 = scalar_lea.sflag [#allocation4], %s401
        %s403 = sand.u32 %s230, 1
        %s404 = smul.addr %s403, 8
        %s405 = scalar_lea.vmem [#allocation11], %s404
        %v407 = vld [vmem:[%s355] sm:$0xff]
        %v408 = vpack.c.bf16 %v407, %v407
        %v409 = vlaneseq
        %v410 = vshrl.u32 %v409, 7
        %vm411 = vcmp.lt.s32.totalorder %v410, 0
        %v412 = vsub.s32 0, %v410
        %v413 = vsel %vm411, %v412, %v410
        %v414 = vshrl.u32 %v413, 3
        %v415 = vand.u32 %v413, 7
        %v416 = vsub.s32 0, %v415
        %v417 = vsel %vm411, %v416, %v415
        %vm418 = vcmp.ne.s32.totalorder %v417, 0
        %vm419 = vcmp.lt.s32.totalorder %v417, 0
        %vm420 = vmand %vm419, %vm418
        %v421 = vadd.s32 %v417, 8
        %v422 = vsel %vm420, %v421, %v417
        %v423 = vld [vmem:[#allocation5] sm:$0xf]
        %v424 = vld [vmem:[#allocation5 + $0x4] sm:$0xf]
        %v425 = vld [vmem:[#allocation5 + $0x8] sm:$0xf]
        %v426 = vld [vmem:[#allocation5 + $0xc] sm:$0xf]
        %v427 = vld [vmem:[#allocation7] sm:$0xf]
        %v428 = vld [vmem:[#allocation7 + $0x4] sm:$0xf]
        %v429 = vld [vmem:[%s3] sm:$0x1]
        %v430 = vld [vmem:[#allocation8] sm:$0xf]
        %v431 = vld [vmem:[#allocation8 + $0x4] sm:$0xf]
        %v432 = vld [vmem:[#allocation8 + $0x8] sm:$0xf]
        %v433 = vld [vmem:[#allocation8 + $0xc] sm:$0xf]
        %v434 = vld [vmem:[%s5] sm:$0xf]
        %v435 = vld [vmem:[%s5 + $0x4] sm:$0xf]
        %v436 = vld [vmem:[%s6] sm:$0x1]
        %v438 = vlaneseq
        %v439 = vshrl.u32 %v438, 7
        %v440 = vsub.s32 0, %v439
        %v441 = vrot.slane %v429, %v440
        %v447 = vunpack.c.l.b16 %v423
        %v448 = vunpack.c.l.b16 %v424
        %v449 = vunpack.c.l.b16 %v425
        %v450 = vunpack.c.l.b16 %v426
        %v451 = vpack.c.b16 %v448, %v447
        %v452 = vpack.c.b16 %v450, %v449
        %vm455 = vcmask 261120
        %v457 = vsel %vm455, %v408, 0
        %459 = vmatprep.subr.bf16.mxu0 0
        %460 = vmatpush1.bf16.msra.mxu0 %v451
        %461 = vmatprep.subr.bf16.mxu0 0
        %462 = vmatpush1.bf16.msra.mxu0 %v452
        %463 = vmatprep.subr.bf16.mxu0 0
        %464 = vmatpush1.bf16.msra.mxu0 0
        %465 = vmatprep.subr.bf16.mxu0 0
        %466 = vmatpush1.bf16.msra.mxu0 0
        %467 = vmatprep.subr.bf16.mxu0 0
        %468 = vmatpush1.bf16.msra.mxu0 0
        %469 = vmatprep.subr.bf16.mxu0 0
        %470 = vmatpush1.bf16.msra.mxu0 0
        %471 = vmatprep.subr.bf16.mxu0 0
        %472 = vmatpush1.bf16.msra.mxu0 0
        %473 = vmatprep.subr.bf16.mxu0 0
        %474 = vmatpush1.bf16.msra.mxu0 0
        %475 = vmatprep.subr.bf16.mxu0 0
        %476 = vmatpush1.bf16.msra.mxu0 0
        %477 = vmatprep.subr.bf16.mxu0 0
        %478 = vmatpush1.bf16.msra.mxu0 0
        %479 = vmatprep.subr.bf16.mxu0 0
        %480 = vmatpush1.bf16.msra.mxu0 0
        %481 = vmatprep.subr.bf16.mxu0 0
        %482 = vmatpush1.bf16.msra.mxu0 0
        %483 = vmatprep.subr.bf16.mxu0 0
        %484 = vmatpush1.bf16.msra.mxu0 0
        %485 = vmatprep.subr.bf16.mxu0 0
        %486 = vmatpush1.bf16.msra.mxu0 0
        %487 = vmatprep.subr.bf16.mxu0 0
        %488 = vmatpush1.bf16.msra.mxu0 0
        %489 = vmatprep.subr.bf16.mxu0 0
        %490 = vmatpush1.bf16.msra.mxu0 0
        %491 = vmatprep.mubr.bf16.mxu0 0
        %492 = vmatmul.mubr.bf16.gmra.mrb[0].mxu0 %v457
        %v493 = vpop.f32.mrb[0].mxu0
        %v494 = vadd.f32 %v441, %v493
        %v495 = vpop.f32.mrb[0].mxu0
        %v496 = vpop.f32.mrb[0].mxu0
        %v497 = vpop.f32.mrb[0].mxu0
        %498 = vdwg.mxu0
        %v500 = vlaneseq
        %v501 = vshrl.u32 %v500, 7
        %v502 = vsub.s32 0, %v501
        %v503 = vrot.slane %v436, %v502
        %v509 = vunpack.c.l.b16 %v430
        %v510 = vunpack.c.l.b16 %v431
        %v511 = vunpack.c.l.b16 %v432
        %v512 = vunpack.c.l.b16 %v433
        %v513 = vpack.c.b16 %v510, %v509
        %v514 = vpack.c.b16 %v512, %v511
        %517 = vmatprep.subr.bf16.mxu0 0
        %518 = vmatpush1.bf16.msra.mxu0 %v513
        %519 = vmatprep.subr.bf16.mxu0 0
        %520 = vmatpush1.bf16.msra.mxu0 %v514
        %521 = vmatprep.subr.bf16.mxu0 0
        %522 = vmatpush1.bf16.msra.mxu0 0
        %523 = vmatprep.subr.bf16.mxu0 0
        %524 = vmatpush1.bf16.msra.mxu0 0
        %525 = vmatprep.subr.bf16.mxu0 0
        %526 = vmatpush1.bf16.msra.mxu0 0
        %527 = vmatprep.subr.bf16.mxu0 0
        %528 = vmatpush1.bf16.msra.mxu0 0
        %529 = vmatprep.subr.bf16.mxu0 0
        %530 = vmatpush1.bf16.msra.mxu0 0
        %531 = vmatprep.subr.bf16.mxu0 0
        %532 = vmatpush1.bf16.msra.mxu0 0
        %533 = vmatprep.subr.bf16.mxu0 0
        %534 = vmatpush1.bf16.msra.mxu0 0
        %535 = vmatprep.subr.bf16.mxu0 0
        %536 = vmatpush1.bf16.msra.mxu0 0
        %537 = vmatprep.subr.bf16.mxu0 0
        %538 = vmatpush1.bf16.msra.mxu0 0
        %539 = vmatprep.subr.bf16.mxu0 0
        %540 = vmatpush1.bf16.msra.mxu0 0
        %541 = vmatprep.subr.bf16.mxu0 0
        %542 = vmatpush1.bf16.msra.mxu0 0
        %543 = vmatprep.subr.bf16.mxu0 0
        %544 = vmatpush1.bf16.msra.mxu0 0
        %545 = vmatprep.subr.bf16.mxu0 0
        %546 = vmatpush1.bf16.msra.mxu0 0
        %547 = vmatprep.subr.bf16.mxu0 0
        %548 = vmatpush1.bf16.msra.mxu0 0
        %549 = vmatprep.mubr.bf16.mxu0 0
        %550 = vmatmul.mubr.bf16.gmra.mrb[0].mxu0 %v457
        %v551 = vpop.f32.mrb[0].mxu0
        %v552 = vadd.f32 %v503, %v551
        %v553 = vpop.f32.mrb[0].mxu0
        %v554 = vpop.f32.mrb[0].mxu0
        %v555 = vpop.f32.mrb[0].mxu0
        %556 = vdwg.mxu0
        %v557 = vadd.s32 %v422, 4294967295
        %vm558 = vcmp.ge.s32.totalorder %v557, 0
        %vm559 = vcmp.le.s32.totalorder %v557, 7
        %vm560 = vmand %vm558, %vm559
        %v561 = vadd.s32 %v422, 1
        %vm562 = vcmp.ge.s32.totalorder %v561, 0
        %vm563 = vcmp.le.s32.totalorder %v561, 7
        %vm564 = vmand %vm562, %vm563
        %v565 = vrot.slane %v494, 7
        %v568 = vunpack.c.l.b16 %v427
        %v569 = vunpack.c.l.b16 %v428
        %v570 = vpack.c.b16 %v569, %v568
        %vm572 = vcmask 130048
        %v574 = vsel %vm572, 0, 0
        %576 = vmatprep.subr.bf16.mxu0 0
        %577 = vmatpush1.bf16.msra.mxu0 %v570
        %578 = vmatprep.subr.bf16.mxu0 0
        %579 = vmatpush1.bf16.msra.mxu0 0
        %580 = vmatprep.subr.bf16.mxu0 0
        %581 = vmatpush1.bf16.msra.mxu0 0
        %582 = vmatprep.subr.bf16.mxu0 0
        %583 = vmatpush1.bf16.msra.mxu0 0
        %584 = vmatprep.subr.bf16.mxu0 0
        %585 = vmatpush1.bf16.msra.mxu0 0
        %586 = vmatprep.subr.bf16.mxu0 0
        %587 = vmatpush1.bf16.msra.mxu0 0
        %588 = vmatprep.subr.bf16.mxu0 0
        %589 = vmatpush1.bf16.msra.mxu0 0
        %590 = vmatprep.subr.bf16.mxu0 0
        %591 = vmatpush1.bf16.msra.mxu0 0
        %592 = vmatprep.subr.bf16.mxu0 0
        %593 = vmatpush1.bf16.msra.mxu0 0
        %594 = vmatprep.subr.bf16.mxu0 0
        %595 = vmatpush1.bf16.msra.mxu0 0
        %596 = vmatprep.subr.bf16.mxu0 0
        %597 = vmatpush1.bf16.msra.mxu0 0
        %598 = vmatprep.subr.bf16.mxu0 0
        %599 = vmatpush1.bf16.msra.mxu0 0
        %600 = vmatprep.subr.bf16.mxu0 0
        %601 = vmatpush1.bf16.msra.mxu0 0
        %602 = vmatprep.subr.bf16.mxu0 0
        %603 = vmatpush1.bf16.msra.mxu0 0
        %604 = vmatprep.subr.bf16.mxu0 0
        %605 = vmatpush1.bf16.msra.mxu0 0
        %606 = vmatprep.subr.bf16.mxu0 0
        %607 = vmatpush1.bf16.msra.mxu0 0
        %608 = vmatprep.mubr.bf16.mxu0 0
        %609 = vmatmul.mubr.bf16.gmra.mrb[0].mxu0 %v574
        %v610 = vpop.f32.mrb[0].mxu0
        %v611 = vadd.f32 0.0, %v610
        %v612 = vpop.f32.mrb[0].mxu0
        %v613 = vpop.f32.mrb[0].mxu0
        %v614 = vpop.f32.mrb[0].mxu0
        %615 = vdwg.mxu0
        %v616 = vadd.f32 %v565, %v611
        %v617 = vxor.u32 %v616, 2147483648
        %v618 = vmul.f32 %v617, 1.442695
        %v619 = vpow.pop %v618
        %v620 = vadd.f32 %v619, 1.0
        %v621 = vrcp.pop %v620
        %v622 = vmul.f32 1.0, %v621
        %v623 = vtanh.pop %v616
        %v624 = vmul.f32 %v622, 0.0
        %626 = vrot.lane.b32.xlu0 %v623, 96
        %v627 = vpop.permute.xlu0 %626
        %v629 = vmul.f32 %v622, %v627
        %631 = vrot.lane.b32.xlu0 %v629, 16
        %v632 = vpop.permute.xlu0 %631
        %v634 = vadd.f32 %v624, %v632
        %v635 = vtanh.pop %v634
        %637 = vrot.lane.b32.xlu0 %v635, 32
        %v638 = vpop.permute.xlu0 %637
        %v640 = vmul.f32 %v622, %v638
        %v641 = vsel %vm560, 1, 0
        %vm642 = vcmp.eq.s32.totalorder %v641, 1
        %v643 = vsel %vm642, %v640, 0.0
        %v644 = vsel %vm642, %v634, 0.0
        %v645 = vrot.slane %v552, 1
        %v648 = vunpack.c.l.b16 %v434
        %v649 = vunpack.c.l.b16 %v435
        %v650 = vpack.c.b16 %v649, %v648
        %652 = vmatprep.subr.bf16.mxu0 0
        %653 = vmatpush1.bf16.msra.mxu0 %v650
        %654 = vmatprep.subr.bf16.mxu0 0
        %655 = vmatpush1.bf16.msra.mxu0 0
        %656 = vmatprep.subr.bf16.mxu0 0
        %657 = vmatpush1.bf16.msra.mxu0 0
        %658 = vmatprep.subr.bf16.mxu0 0
        %659 = vmatpush1.bf16.msra.mxu0 0
        %660 = vmatprep.subr.bf16.mxu0 0
        %661 = vmatpush1.bf16.msra.mxu0 0
        %662 = vmatprep.subr.bf16.mxu0 0
        %663 = vmatpush1.bf16.msra.mxu0 0
        %664 = vmatprep.subr.bf16.mxu0 0
        %665 = vmatpush1.bf16.msra.mxu0 0
        %666 = vmatprep.subr.bf16.mxu0 0
        %667 = vmatpush1.bf16.msra.mxu0 0
        %668 = vmatprep.subr.bf16.mxu0 0
        %669 = vmatpush1.bf16.msra.mxu0 0
        %670 = vmatprep.subr.bf16.mxu0 0
        %671 = vmatpush1.bf16.msra.mxu0 0
        %672 = vmatprep.subr.bf16.mxu0 0
        %673 = vmatpush1.bf16.msra.mxu0 0
        %674 = vmatprep.subr.bf16.mxu0 0
        %675 = vmatpush1.bf16.msra.mxu0 0
        %676 = vmatprep.subr.bf16.mxu0 0
        %677 = vmatpush1.bf16.msra.mxu0 0
        %678 = vmatprep.subr.bf16.mxu0 0
        %679 = vmatpush1.bf16.msra.mxu0 0
        %680 = vmatprep.subr.bf16.mxu0 0
        %681 = vmatpush1.bf16.msra.mxu0 0
        %682 = vmatprep.subr.bf16.mxu0 0
        %683 = vmatpush1.bf16.msra.mxu0 0
        %684 = vmatprep.mubr.bf16.mxu0 0
        %685 = vmatmul.mubr.bf16.gmra.mrb[0].mxu0 %v574
        %v686 = vpop.f32.mrb[0].mxu0
        %v687 = vadd.f32 0.0, %v686
        %v688 = vpop.f32.mrb[0].mxu0
        %v689 = vpop.f32.mrb[0].mxu0
        %v690 = vpop.f32.mrb[0].mxu0
        %691 = vdwg.mxu0
        %v692 = vadd.f32 %v645, %v687
        %v693 = vxor.u32 %v692, 2147483648
        %v694 = vmul.f32 %v693, 1.442695
        %v695 = vpow.pop %v694
        %v696 = vadd.f32 %v695, 1.0
        %v697 = vrcp.pop %v696
        %v698 = vmul.f32 1.0, %v697
        %v699 = vtanh.pop %v692
        %v700 = vmul.f32 %v698, 0.0
        %702 = vrot.lane.b32.xlu0 %v699, 96
        %v703 = vpop.permute.xlu0 %702
        %v705 = vmul.f32 %v698, %v703
        %707 = vrot.lane.b32.xlu0 %v705, 16
        %v708 = vpop.permute.xlu0 %707
        %v710 = vadd.f32 %v700, %v708
        %v711 = vtanh.pop %v710
        %713 = vrot.lane.b32.xlu0 %v711, 32
        %v714 = vpop.permute.xlu0 %713
        %v716 = vmul.f32 %v698, %v714
        %v717 = vsel %vm564, 1, 0
        %vm718 = vcmp.eq.s32.totalorder %v717, 1
        %v719 = vsel %vm718, %v716, 0.0
        %v720 = vsel %vm718, %v710, 0.0
        %vm721 = vcmp.ge.s32.totalorder %v422, 0
        %vm722 = vcmp.le.s32.totalorder %v422, 7
        %vm723 = vmand %vm721, %vm722
        %v724 = vpack.c.bf16 %v643, %v643
        %726 = vrot.lane.b32.xlu0 %v724, 80
        %v727 = vpop.permute.xlu0 %726
        %v729 = vsel %vm572, %v727, 0
        %731 = vmatprep.subr.bf16.mxu0 0
        %732 = vmatpush1.bf16.msra.mxu0 %v570
        %733 = vmatprep.subr.bf16.mxu0 0
        %734 = vmatpush1.bf16.msra.mxu0 0
        %735 = vmatprep.subr.bf16.mxu0 0
        %736 = vmatpush1.bf16.msra.mxu0 0
        %737 = vmatprep.subr.bf16.mxu0 0
        %738 = vmatpush1.bf16.msra.mxu0 0
        %739 = vmatprep.subr.bf16.mxu0 0
        %740 = vmatpush1.bf16.msra.mxu0 0
        %741 = vmatprep.subr.bf16.mxu0 0
        %742 = vmatpush1.bf16.msra.mxu0 0
        %743 = vmatprep.subr.bf16.mxu0 0
        %744 = vmatpush1.bf16.msra.mxu0 0
        %745 = vmatprep.subr.bf16.mxu0 0
        %746 = vmatpush1.bf16.msra.mxu0 0
        %747 = vmatprep.subr.bf16.mxu0 0
        %748 = vmatpush1.bf16.msra.mxu0 0
        %749 = vmatprep.subr.bf16.mxu0 0
        %750 = vmatpush1.bf16.msra.mxu0 0
        %751 = vmatprep.subr.bf16.mxu0 0
        %752 = vmatpush1.bf16.msra.mxu0 0
        %753 = vmatprep.subr.bf16.mxu0 0
        %754 = vmatpush1.bf16.msra.mxu0 0
        %755 = vmatprep.subr.bf16.mxu0 0
        %756 = vmatpush1.bf16.msra.mxu0 0
        %757 = vmatprep.subr.bf16.mxu0 0
        %758 = vmatpush1.bf16.msra.mxu0 0
        %759 = vmatprep.subr.bf16.mxu0 0
        %760 = vmatpush1.bf16.msra.mxu0 0
        %761 = vmatprep.subr.bf16.mxu0 0
        %762 = vmatpush1.bf16.msra.mxu0 0
        %763 = vmatprep.mubr.bf16.mxu0 0
        %764 = vmatmul.mubr.bf16.gmra.mrb[0].mxu0 %v729
        %v765 = vpop.f32.mrb[0].mxu0
        %v766 = vadd.f32 0.0, %v765
        %v767 = vpop.f32.mrb[0].mxu0
        %v768 = vpop.f32.mrb[0].mxu0
        %v769 = vpop.f32.mrb[0].mxu0
        %770 = vdwg.mxu0
        %v771 = vadd.f32 %v494, %v766
        %v772 = vxor.u32 %v771, 2147483648
        %v773 = vmul.f32 %v772, 1.442695
        %v774 = vpow.pop %v773
        %v775 = vadd.f32 %v774, 1.0
        %v776 = vrcp.pop %v775
        %v777 = vmul.f32 1.0, %v776
        %v778 = vtanh.pop %v771
        %v779 = vmul.f32 %v777, %v644
        %781 = vrot.lane.b32.xlu0 %v778, 96
        %v782 = vpop.permute.xlu0 %781
        %v784 = vmul.f32 %v777, %v782
        %786 = vrot.lane.b32.xlu0 %v784, 16
        %v787 = vpop.permute.xlu0 %786
        %v789 = vadd.f32 %v779, %v787
        %v790 = vtanh.pop %v789
        %792 = vrot.lane.b32.xlu0 %v790, 32
        %v793 = vpop.permute.xlu0 %792
        %v795 = vmul.f32 %v777, %v793
        %v796 = vsel %vm723, 1, 0
        %vm797 = vcmp.eq.s32.totalorder %v796, 1
        %v798 = vsel %vm797, %v795, %v643
        %v799 = vsel %vm797, %v789, %v644
        %v800 = vpack.c.bf16 %v719, %v719
        %802 = vrot.lane.b32.xlu0 %v800, 80
        %v803 = vpop.permute.xlu0 %802
        %v805 = vsel %vm572, %v803, 0
        %807 = vmatprep.subr.bf16.mxu0 0
        %808 = vmatpush1.bf16.msra.mxu0 %v650
        %809 = vmatprep.subr.bf16.mxu0 0
        %810 = vmatpush1.bf16.msra.mxu0 0
        %811 = vmatprep.subr.bf16.mxu0 0
        %812 = vmatpush1.bf16.msra.mxu0 0
        %813 = vmatprep.subr.bf16.mxu0 0
        %814 = vmatpush1.bf16.msra.mxu0 0
        %815 = vmatprep.subr.bf16.mxu0 0
        %816 = vmatpush1.bf16.msra.mxu0 0
        %817 = vmatprep.subr.bf16.mxu0 0
        %818 = vmatpush1.bf16.msra.mxu0 0
        %819 = vmatprep.subr.bf16.mxu0 0
        %820 = vmatpush1.bf16.msra.mxu0 0
        %821 = vmatprep.subr.bf16.mxu0 0
        %822 = vmatpush1.bf16.msra.mxu0 0
        %823 = vmatprep.subr.bf16.mxu0 0
        %824 = vmatpush1.bf16.msra.mxu0 0
        %825 = vmatprep.subr.bf16.mxu0 0
        %826 = vmatpush1.bf16.msra.mxu0 0
        %827 = vmatprep.subr.bf16.mxu0 0
        %828 = vmatpush1.bf16.msra.mxu0 0
        %829 = vmatprep.subr.bf16.mxu0 0
        %830 = vmatpush1.bf16.msra.mxu0 0
        %831 = vmatprep.subr.bf16.mxu0 0
        %832 = vmatpush1.bf16.msra.mxu0 0
        %833 = vmatprep.subr.bf16.mxu0 0
        %834 = vmatpush1.bf16.msra.mxu0 0
        %835 = vmatprep.subr.bf16.mxu0 0
        %836 = vmatpush1.bf16.msra.mxu0 0
        %837 = vmatprep.subr.bf16.mxu0 0
        %838 = vmatpush1.bf16.msra.mxu0 0
        %839 = vmatprep.mubr.bf16.mxu0 0
        %840 = vmatmul.mubr.bf16.gmra.mrb[0].mxu0 %v805
        %v841 = vpop.f32.mrb[0].mxu0
        %v842 = vadd.f32 0.0, %v841
        %v843 = vpop.f32.mrb[0].mxu0
        %v844 = vpop.f32.mrb[0].mxu0
        %v845 = vpop.f32.mrb[0].mxu0
        %846 = vdwg.mxu0
        %v847 = vadd.f32 %v552, %v842
        %v848 = vxor.u32 %v847, 2147483648
        %v849 = vmul.f32 %v848, 1.442695
        %v850 = vpow.pop %v849
        %v851 = vadd.f32 %v850, 1.0
        %v852 = vrcp.pop %v851
        %v853 = vmul.f32 1.0, %v852
        %v854 = vtanh.pop %v847
        %v855 = vmul.f32 %v853, %v720
        %857 = vrot.lane.b32.xlu0 %v854, 96
        %v858 = vpop.permute.xlu0 %857
        %v860 = vmul.f32 %v853, %v858
        %862 = vrot.lane.b32.xlu0 %v860, 16
        %v863 = vpop.permute.xlu0 %862
        %v865 = vadd.f32 %v855, %v863
        %v866 = vtanh.pop %v865
        %868 = vrot.lane.b32.xlu0 %v866, 32
        %v869 = vpop.permute.xlu0 %868
        %v871 = vmul.f32 %v853, %v869
        %v872 = vsel %vm797, %v871, %v719
        %v873 = vsel %vm797, %v865, %v720
        %v874 = vrot.slane %v494, 1
        %v875 = vpack.c.bf16 %v798, %v798
        %877 = vrot.lane.b32.xlu0 %v875, 80
        %v878 = vpop.permute.xlu0 %877
        %v880 = vsel %vm572, %v878, 0
        %882 = vmatprep.subr.bf16.mxu0 0
        %883 = vmatpush1.bf16.msra.mxu0 %v570
        %884 = vmatprep.subr.bf16.mxu0 0
        %885 = vmatpush1.bf16.msra.mxu0 0
        %886 = vmatprep.subr.bf16.mxu0 0
        %887 = vmatpush1.bf16.msra.mxu0 0
        %888 = vmatprep.subr.bf16.mxu0 0
        %889 = vmatpush1.bf16.msra.mxu0 0
        %890 = vmatprep.subr.bf16.mxu0 0
        %891 = vmatpush1.bf16.msra.mxu0 0
        %892 = vmatprep.subr.bf16.mxu0 0
        %893 = vmatpush1.bf16.msra.mxu0 0
        %894 = vmatprep.subr.bf16.mxu0 0
        %895 = vmatpush1.bf16.msra.mxu0 0
        %896 = vmatprep.subr.bf16.mxu0 0
        %897 = vmatpush1.bf16.msra.mxu0 0
        %898 = vmatprep.subr.bf16.mxu0 0
        %899 = vmatpush1.bf16.msra.mxu0 0
        %900 = vmatprep.subr.bf16.mxu0 0
        %901 = vmatpush1.bf16.msra.mxu0 0
        %902 = vmatprep.subr.bf16.mxu0 0
        %903 = vmatpush1.bf16.msra.mxu0 0
        %904 = vmatprep.subr.bf16.mxu0 0
        %905 = vmatpush1.bf16.msra.mxu0 0
        %906 = vmatprep.subr.bf16.mxu0 0
        %907 = vmatpush1.bf16.msra.mxu0 0
        %908 = vmatprep.subr.bf16.mxu0 0
        %909 = vmatpush1.bf16.msra.mxu0 0
        %910 = vmatprep.subr.bf16.mxu0 0
        %911 = vmatpush1.bf16.msra.mxu0 0
        %912 = vmatprep.subr.bf16.mxu0 0
        %913 = vmatpush1.bf16.msra.mxu0 0
        %914 = vmatprep.mubr.bf16.mxu0 0
        %915 = vmatmul.mubr.bf16.gmra.mrb[0].mxu0 %v880
        %v916 = vpop.f32.mrb[0].mxu0
        %v917 = vadd.f32 0.0, %v916
        %v918 = vpop.f32.mrb[0].mxu0
        %v919 = vpop.f32.mrb[0].mxu0
        %v920 = vpop.f32.mrb[0].mxu0
        %921 = vdwg.mxu0
        %v922 = vadd.f32 %v874, %v917
        %v923 = vxor.u32 %v922, 2147483648
        %v924 = vmul.f32 %v923, 1.442695
        %v925 = vpow.pop %v924
        %v926 = vadd.f32 %v925, 1.0
        %v927 = vrcp.pop %v926
        %v928 = vmul.f32 1.0, %v927
        %v929 = vtanh.pop %v922
        %v930 = vmul.f32 %v928, %v799
        %932 = vrot.lane.b32.xlu0 %v929, 96
        %v933 = vpop.permute.xlu0 %932
        %v935 = vmul.f32 %v928, %v933
        %937 = vrot.lane.b32.xlu0 %v935, 16
        %v938 = vpop.permute.xlu0 %937
        %v940 = vadd.f32 %v930, %v938
        %v941 = vtanh.pop %v940
        %943 = vrot.lane.b32.xlu0 %v941, 32
        %v944 = vpop.permute.xlu0 %943
        %v946 = vmul.f32 %v928, %v944
        %v947 = vsel %vm718, %v946, %v798
        %v948 = vrot.slane %v552, 7
        %v949 = vpack.c.bf16 %v872, %v872
        %951 = vrot.lane.b32.xlu0 %v949, 80
        %v952 = vpop.permute.xlu0 %951
        %v954 = vsel %vm572, %v952, 0
        %956 = vmatprep.subr.bf16.mxu0 0
        %957 = vmatpush1.bf16.msra.mxu0 %v650
        %958 = vmatprep.subr.bf16.mxu0 0
        %959 = vmatpush1.bf16.msra.mxu0 0
        %960 = vmatprep.subr.bf16.mxu0 0
        %961 = vmatpush1.bf16.msra.mxu0 0
        %962 = vmatprep.subr.bf16.mxu0 0
        %963 = vmatpush1.bf16.msra.mxu0 0
        %964 = vmatprep.subr.bf16.mxu0 0
        %965 = vmatpush1.bf16.msra.mxu0 0
        %966 = vmatprep.subr.bf16.mxu0 0
        %967 = vmatpush1.bf16.msra.mxu0 0
        %968 = vmatprep.subr.bf16.mxu0 0
        %969 = vmatpush1.bf16.msra.mxu0 0
        %970 = vmatprep.subr.bf16.mxu0 0
        %971 = vmatpush1.bf16.msra.mxu0 0
        %972 = vmatprep.subr.bf16.mxu0 0
        %973 = vmatpush1.bf16.msra.mxu0 0
        %974 = vmatprep.subr.bf16.mxu0 0
        %975 = vmatpush1.bf16.msra.mxu0 0
        %976 = vmatprep.subr.bf16.mxu0 0
        %977 = vmatpush1.bf16.msra.mxu0 0
        %978 = vmatprep.subr.bf16.mxu0 0
        %979 = vmatpush1.bf16.msra.mxu0 0
        %980 = vmatprep.subr.bf16.mxu0 0
        %981 = vmatpush1.bf16.msra.mxu0 0
        %982 = vmatprep.subr.bf16.mxu0 0
        %983 = vmatpush1.bf16.msra.mxu0 0
        %984 = vmatprep.subr.bf16.mxu0 0
        %985 = vmatpush1.bf16.msra.mxu0 0
        %986 = vmatprep.subr.bf16.mxu0 0
        %987 = vmatpush1.bf16.msra.mxu0 0
        %988 = vmatprep.mubr.bf16.mxu0 0
        %989 = vmatmul.mubr.bf16.gmra.mrb[0].mxu0 %v954
        %v990 = vpop.f32.mrb[0].mxu0
        %v991 = vadd.f32 0.0, %v990
        %v992 = vpop.f32.mrb[0].mxu0
        %v993 = vpop.f32.mrb[0].mxu0
        %v994 = vpop.f32.mrb[0].mxu0
        %995 = vdwg.mxu0
        %v996 = vadd.f32 %v948, %v991
        %v997 = vxor.u32 %v996, 2147483648
        %v998 = vmul.f32 %v997, 1.442695
        %v999 = vpow.pop %v998
        %v1000 = vadd.f32 %v999, 1.0
        %v1001 = vrcp.pop %v1000
        %v1002 = vmul.f32 1.0, %v1001
        %v1003 = vtanh.pop %v996
        %v1004 = vmul.f32 %v1002, %v873
        %1006 = vrot.lane.b32.xlu0 %v1003, 96
        %v1007 = vpop.permute.xlu0 %1006
        %v1009 = vmul.f32 %v1002, %v1007
        %1011 = vrot.lane.b32.xlu0 %v1009, 16
        %v1012 = vpop.permute.xlu0 %1011
        %v1014 = vadd.f32 %v1004, %v1012
        %v1015 = vtanh.pop %v1014
        %1017 = vrot.lane.b32.xlu0 %v1015, 32
        %v1018 = vpop.permute.xlu0 %1017
        %v1020 = vmul.f32 %v1002, %v1018
        %v1021 = vsel %vm642, %v1020, %v872
        %1023 = vrot.lane.b32.xlu0 %v947, 80
        %v1024 = vpop.permute.xlu0 %1023
        %1027 = vrot.lane.b32.xlu0 %v1021, 96
        %v1028 = vpop.permute.xlu0 %1027
        %v1030 = vsel %vm572, %v1024, %v1028
        %s1031 = scalar_lea.vmem [#allocation5], 16
        %v1032 = vld [vmem:[%s1031] sm:$0xf]
        %v1033 = vld [vmem:[%s1031 + $0x4] sm:$0xf]
        %v1034 = vld [vmem:[%s1031 + $0x8] sm:$0xf]
        %v1035 = vld [vmem:[%s1031 + $0xc] sm:$0xf]
        %s1036 = scalar_lea.vmem [#allocation7], 8
        %v1037 = vld [vmem:[%s1036] sm:$0xf]
        %v1038 = vld [vmem:[%s1036 + $0x4] sm:$0xf]
        %s1039 = scalar_lea.vmem %s3, 1
        %v1040 = vld [vmem:[%s1039] sm:$0x1]
        %s1041 = scalar_lea.vmem [#allocation8], 16
        %v1042 = vld [vmem:[%s1041] sm:$0xf]
        %v1043 = vld [vmem:[%s1041 + $0x4] sm:$0xf]
        %v1044 = vld [vmem:[%s1041 + $0x8] sm:$0xf]
        %v1045 = vld [vmem:[%s1041 + $0xc] sm:$0xf]
        %s1046 = scalar_lea.vmem %s5, 8
        %v1047 = vld [vmem:[%s1046] sm:$0xf]
        %v1048 = vld [vmem:[%s1046 + $0x4] sm:$0xf]
        %s1049 = scalar_lea.vmem %s6, 1
        %v1050 = vld [vmem:[%s1049] sm:$0x1]
        %v1052 = vlaneseq
        %v1053 = vshrl.u32 %v1052, 7
        %v1054 = vsub.s32 0, %v1053
        %v1055 = vrot.slane %v1040, %v1054
        %v1061 = vunpack.c.l.b16 %v1032
        %v1062 = vunpack.c.l.b16 %v1033
        %v1063 = vunpack.c.l.b16 %v1034
        %v1064 = vunpack.c.l.b16 %v1035
        %v1065 = vpack.c.b16 %v1062, %v1061
        %v1066 = vpack.c.b16 %v1064, %v1063
        %1069 = vmatprep.subr.bf16.mxu0 0
        %1070 = vmatpush1.bf16.msra.mxu0 %v1065
        %1071 = vmatprep.subr.bf16.mxu0 0
        %1072 = vmatpush1.bf16.msra.mxu0 %v1066
        %1073 = vmatprep.subr.bf16.mxu0 0
        %1074 = vmatpush1.bf16.msra.mxu0 0
        %1075 = vmatprep.subr.bf16.mxu0 0
        %1076 = vmatpush1.bf16.msra.mxu0 0
        %1077 = vmatprep.subr.bf16.mxu0 0
        %1078 = vmatpush1.bf16.msra.mxu0 0
        %1079 = vmatprep.subr.bf16.mxu0 0
        %1080 = vmatpush1.bf16.msra.mxu0 0
        %1081 = vmatprep.subr.bf16.mxu0 0
        %1082 = vmatpush1.bf16.msra.mxu0 0
        %1083 = vmatprep.subr.bf16.mxu0 0
        %1084 = vmatpush1.bf16.msra.mxu0 0
        %1085 = vmatprep.subr.bf16.mxu0 0
        %1086 = vmatpush1.bf16.msra.mxu0 0
        %1087 = vmatprep.subr.bf16.mxu0 0
        %1088 = vmatpush1.bf16.msra.mxu0 0
        %1089 = vmatprep.subr.bf16.mxu0 0
        %1090 = vmatpush1.bf16.msra.mxu0 0
        %1091 = vmatprep.subr.bf16.mxu0 0
        %1092 = vmatpush1.bf16.msra.mxu0 0
        %1093 = vmatprep.subr.bf16.mxu0 0
        %1094 = vmatpush1.bf16.msra.mxu0 0
        %1095 = vmatprep.subr.bf16.mxu0 0
        %1096 = vmatpush1.bf16.msra.mxu0 0
        %1097 = vmatprep.subr.bf16.mxu0 0
        %1098 = vmatpush1.bf16.msra.mxu0 0
        %1099 = vmatprep.subr.bf16.mxu0 0
        %1100 = vmatpush1.bf16.msra.mxu0 0
        %1101 = vmatprep.mubr.bf16.mxu0 0
        %1102 = vmatmul.mubr.bf16.gmra.mrb[0].mxu0 %v457
        %v1103 = vpop.f32.mrb[0].mxu0
        %v1104 = vadd.f32 %v1055, %v1103
        %v1105 = vpop.f32.mrb[0].mxu0
        %v1106 = vpop.f32.mrb[0].mxu0
        %v1107 = vpop.f32.mrb[0].mxu0
        %1108 = vdwg.mxu0
        %v1110 = vlaneseq
        %v1111 = vshrl.u32 %v1110, 7
        %v1112 = vsub.s32 0, %v1111
        %v1113 = vrot.slane %v1050, %v1112
        %v1119 = vunpack.c.l.b16 %v1042
        %v1120 = vunpack.c.l.b16 %v1043
        %v1121 = vunpack.c.l.b16 %v1044
        %v1122 = vunpack.c.l.b16 %v1045
        %v1123 = vpack.c.b16 %v1120, %v1119
        %v1124 = vpack.c.b16 %v1122, %v1121
        %1127 = vmatprep.subr.bf16.mxu0 0
        %1128 = vmatpush1.bf16.msra.mxu0 %v1123
        %1129 = vmatprep.subr.bf16.mxu0 0
        %1130 = vmatpush1.bf16.msra.mxu0 %v1124
        %1131 = vmatprep.subr.bf16.mxu0 0
        %1132 = vmatpush1.bf16.msra.mxu0 0
        %1133 = vmatprep.subr.bf16.mxu0 0
        %1134 = vmatpush1.bf16.msra.mxu0 0
        %1135 = vmatprep.subr.bf16.mxu0 0
        %1136 = vmatpush1.bf16.msra.mxu0 0
        %1137 = vmatprep.subr.bf16.mxu0 0
        %1138 = vmatpush1.bf16.msra.mxu0 0
        %1139 = vmatprep.subr.bf16.mxu0 0
        %1140 = vmatpush1.bf16.msra.mxu0 0
        %1141 = vmatprep.subr.bf16.mxu0 0
        %1142 = vmatpush1.bf16.msra.mxu0 0
        %1143 = vmatprep.subr.bf16.mxu0 0
        %1144 = vmatpush1.bf16.msra.mxu0 0
        %1145 = vmatprep.subr.bf16.mxu0 0
        %1146 = vmatpush1.bf16.msra.mxu0 0
        %1147 = vmatprep.subr.bf16.mxu0 0
        %1148 = vmatpush1.bf16.msra.mxu0 0
        %1149 = vmatprep.subr.bf16.mxu0 0
        %1150 = vmatpush1.bf16.msra.mxu0 0
        %1151 = vmatprep.subr.bf16.mxu0 0
        %1152 = vmatpush1.bf16.msra.mxu0 0
        %1153 = vmatprep.subr.bf16.mxu0 0
        %1154 = vmatpush1.bf16.msra.mxu0 0
        %1155 = vmatprep.subr.bf16.mxu0 0
        %1156 = vmatpush1.bf16.msra.mxu0 0
        %1157 = vmatprep.subr.bf16.mxu0 0
        %1158 = vmatpush1.bf16.msra.mxu0 0
        %1159 = vmatprep.mubr.bf16.mxu0 0
        %1160 = vmatmul.mubr.bf16.gmra.mrb[0].mxu0 %v457
        %v1161 = vpop.f32.mrb[0].mxu0
        %v1162 = vadd.f32 %v1113, %v1161
        %v1163 = vpop.f32.mrb[0].mxu0
        %v1164 = vpop.f32.mrb[0].mxu0
        %v1165 = vpop.f32.mrb[0].mxu0
        %1166 = vdwg.mxu0
        %v1167 = vadd.s32 %v422, 4294967294
        %vm1168 = vcmp.ge.s32.totalorder %v1167, 0
        %vm1169 = vcmp.le.s32.totalorder %v1167, 7
        %vm1170 = vmand %vm1168, %vm1169
        %v1171 = vadd.s32 %v422, 2
        %vm1172 = vcmp.ge.s32.totalorder %v1171, 0
        %vm1173 = vcmp.le.s32.totalorder %v1171, 7
        %vm1174 = vmand %vm1172, %vm1173
        %v1175 = vrot.slane %v1104, 6
        %v1178 = vunpack.c.l.b16 %v1037
        %v1179 = vunpack.c.l.b16 %v1038
        %v1180 = vpack.c.b16 %v1179, %v1178
        %1182 = vmatprep.subr.bf16.mxu0 0
        %1183 = vmatpush1.bf16.msra.mxu0 %v1180
        %1184 = vmatprep.subr.bf16.mxu0 0
        %1185 = vmatpush1.bf16.msra.mxu0 0
        %1186 = vmatprep.subr.bf16.mxu0 0
        %1187 = vmatpush1.bf16.msra.mxu0 0
        %1188 = vmatprep.subr.bf16.mxu0 0
        %1189 = vmatpush1.bf16.msra.mxu0 0
        %1190 = vmatprep.subr.bf16.mxu0 0
        %1191 = vmatpush1.bf16.msra.mxu0 0
        %1192 = vmatprep.subr.bf16.mxu0 0
        %1193 = vmatpush1.bf16.msra.mxu0 0
        %1194 = vmatprep.subr.bf16.mxu0 0
        %1195 = vmatpush1.bf16.msra.mxu0 0
        %1196 = vmatprep.subr.bf16.mxu0 0
        %1197 = vmatpush1.bf16.msra.mxu0 0
        %1198 = vmatprep.subr.bf16.mxu0 0
        %1199 = vmatpush1.bf16.msra.mxu0 0
        %1200 = vmatprep.subr.bf16.mxu0 0
        %1201 = vmatpush1.bf16.msra.mxu0 0
        %1202 = vmatprep.subr.bf16.mxu0 0
        %1203 = vmatpush1.bf16.msra.mxu0 0
        %1204 = vmatprep.subr.bf16.mxu0 0
        %1205 = vmatpush1.bf16.msra.mxu0 0
        %1206 = vmatprep.subr.bf16.mxu0 0
        %1207 = vmatpush1.bf16.msra.mxu0 0
        %1208 = vmatprep.subr.bf16.mxu0 0
        %1209 = vmatpush1.bf16.msra.mxu0 0
        %1210 = vmatprep.subr.bf16.mxu0 0
        %1211 = vmatpush1.bf16.msra.mxu0 0
        %1212 = vmatprep.subr.bf16.mxu0 0
        %1213 = vmatpush1.bf16.msra.mxu0 0
        %1214 = vmatprep.mubr.bf16.mxu0 0
        %1215 = vmatmul.mubr.bf16.gmra.mrb[0].mxu0 %v574
        %v1216 = vpop.f32.mrb[0].mxu0
        %v1217 = vadd.f32 0.0, %v1216
        %v1218 = vpop.f32.mrb[0].mxu0
        %v1219 = vpop.f32.mrb[0].mxu0
        %v1220 = vpop.f32.mrb[0].mxu0
        %1221 = vdwg.mxu0
        %v1222 = vadd.f32 %v1175, %v1217
        %v1223 = vxor.u32 %v1222, 2147483648
        %v1224 = vmul.f32 %v1223, 1.442695
        %v1225 = vpow.pop %v1224
        %v1226 = vadd.f32 %v1225, 1.0
        %v1227 = vrcp.pop %v1226
        %v1228 = vmul.f32 1.0, %v1227
        %v1229 = vtanh.pop %v1222
        %v1230 = vmul.f32 %v1228, 0.0
        %1232 = vrot.lane.b32.xlu0 %v1229, 96
        %v1233 = vpop.permute.xlu0 %1232
        %v1235 = vmul.f32 %v1228, %v1233
        %1237 = vrot.lane.b32.xlu0 %v1235, 16
        %v1238 = vpop.permute.xlu0 %1237
        %v1240 = vadd.f32 %v1230, %v1238
        %v1241 = vtanh.pop %v1240
        %1243 = vrot.lane.b32.xlu0 %v1241, 32
        %v1244 = vpop.permute.xlu0 %1243
        %v1246 = vmul.f32 %v1228, %v1244
        %v1247 = vsel %vm1170, 1, 0
        %vm1248 = vcmp.eq.s32.totalorder %v1247, 1
        %v1249 = vsel %vm1248, %v1246, 0.0
        %v1250 = vsel %vm1248, %v1240, 0.0
        %v1251 = vrot.slane %v1162, 2
        %v1254 = vunpack.c.l.b16 %v1047
        %v1255 = vunpack.c.l.b16 %v1048
        %v1256 = vpack.c.b16 %v1255, %v1254
        %1258 = vmatprep.subr.bf16.mxu0 0
        %1259 = vmatpush1.bf16.msra.mxu0 %v1256
        %1260 = vmatprep.subr.bf16.mxu0 0
        %1261 = vmatpush1.bf16.msra.mxu0 0
        %1262 = vmatprep.subr.bf16.mxu0 0
        %1263 = vmatpush1.bf16.msra.mxu0 0
        %1264 = vmatprep.subr.bf16.mxu0 0
        %1265 = vmatpush1.bf16.msra.mxu0 0
        %1266 = vmatprep.subr.bf16.mxu0 0
        %1267 = vmatpush1.bf16.msra.mxu0 0
        %1268 = vmatprep.subr.bf16.mxu0 0
        %1269 = vmatpush1.bf16.msra.mxu0 0
        %1270 = vmatprep.subr.bf16.mxu0 0
        %1271 = vmatpush1.bf16.msra.mxu0 0
        %1272 = vmatprep.subr.bf16.mxu0 0
        %1273 = vmatpush1.bf16.msra.mxu0 0
        %1274 = vmatprep.subr.bf16.mxu0 0
        %1275 = vmatpush1.bf16.msra.mxu0 0
        %1276 = vmatprep.subr.bf16.mxu0 0
        %1277 = vmatpush1.bf16.msra.mxu0 0
        %1278 = vmatprep.subr.bf16.mxu0 0
        %1279 = vmatpush1.bf16.msra.mxu0 0
        %1280 = vmatprep.subr.bf16.mxu0 0
        %1281 = vmatpush1.bf16.msra.mxu0 0
        %1282 = vmatprep.subr.bf16.mxu0 0
        %1283 = vmatpush1.bf16.msra.mxu0 0
        %1284 = vmatprep.subr.bf16.mxu0 0
        %1285 = vmatpush1.bf16.msra.mxu0 0
        %1286 = vmatprep.subr.bf16.mxu0 0
        %1287 = vmatpush1.bf16.msra.mxu0 0
        %1288 = vmatprep.subr.bf16.mxu0 0
        %1289 = vmatpush1.bf16.msra.mxu0 0
        %1290 = vmatprep.mubr.bf16.mxu0 0
        %1291 = vmatmul.mubr.bf16.gmra.mrb[0].mxu0 %v574
        %v1292 = vpop.f32.mrb[0].mxu0
        %v1293 = vadd.f32 0.0, %v1292
        %v1294 = vpop.f32.mrb[0].mxu0
        %v1295 = vpop.f32.mrb[0].mxu0
        %v1296 = vpop.f32.mrb[0].mxu0
        %1297 = vdwg.mxu0
        %v1298 = vadd.f32 %v1251, %v1293
        %v1299 = vxor.u32 %v1298, 2147483648
        %v1300 = vmul.f32 %v1299, 1.442695
        %v1301 = vpow.pop %v1300
        %v1302 = vadd.f32 %v1301, 1.0
        %v1303 = vrcp.pop %v1302
        %v1304 = vmul.f32 1.0, %v1303
        %v1305 = vtanh.pop %v1298
        %v1306 = vmul.f32 %v1304, 0.0
        %1308 = vrot.lane.b32.xlu0 %v1305, 96
        %v1309 = vpop.permute.xlu0 %1308
        %v1311 = vmul.f32 %v1304, %v1309
        %1313 = vrot.lane.b32.xlu0 %v1311, 16
        %v1314 = vpop.permute.xlu0 %1313
        %v1316 = vadd.f32 %v1306, %v1314
        %v1317 = vtanh.pop %v1316
        %1319 = vrot.lane.b32.xlu0 %v1317, 32
        %v1320 = vpop.permute.xlu0 %1319
        %v1322 = vmul.f32 %v1304, %v1320
        %v1323 = vsel %vm1174, 1, 0
        %vm1324 = vcmp.eq.s32.totalorder %v1323, 1
        %v1325 = vsel %vm1324, %v1322, 0.0
        %v1326 = vsel %vm1324, %v1316, 0.0
        %v1327 = vrot.slane %v1104, 7
        %v1328 = vpack.c.bf16 %v1249, %v1249
        %1330 = vrot.lane.b32.xlu0 %v1328, 80
        %v1331 = vpop.permute.xlu0 %1330
        %v1333 = vsel %vm572, %v1331, 0
        %1335 = vmatprep.subr.bf16.mxu0 0
        %1336 = vmatpush1.bf16.msra.mxu0 %v1180
        %1337 = vmatprep.subr.bf16.mxu0 0
        %1338 = vmatpush1.bf16.msra.mxu0 0
        %1339 = vmatprep.subr.bf16.mxu0 0
        %1340 = vmatpush1.bf16.msra.mxu0 0
        %1341 = vmatprep.subr.bf16.mxu0 0
        %1342 = vmatpush1.bf16.msra.mxu0 0
        %1343 = vmatprep.subr.bf16.mxu0 0
        %1344 = vmatpush1.bf16.msra.mxu0 0
        %1345 = vmatprep.subr.bf16.mxu0 0
        %1346 = vmatpush1.bf16.msra.mxu0 0
        %1347 = vmatprep.subr.bf16.mxu0 0
        %1348 = vmatpush1.bf16.msra.mxu0 0
        %1349 = vmatprep.subr.bf16.mxu0 0
        %1350 = vmatpush1.bf16.msra.mxu0 0
        %1351 = vmatprep.subr.bf16.mxu0 0
        %1352 = vmatpush1.bf16.msra.mxu0 0
        %1353 = vmatprep.subr.bf16.mxu0 0
        %1354 = vmatpush1.bf16.msra.mxu0 0
        %1355 = vmatprep.subr.bf16.mxu0 0
        %1356 = vmatpush1.bf16.msra.mxu0 0
        %1357 = vmatprep.subr.bf16.mxu0 0
        %1358 = vmatpush1.bf16.msra.mxu0 0
        %1359 = vmatprep.subr.bf16.mxu0 0
        %1360 = vmatpush1.bf16.msra.mxu0 0
        %1361 = vmatprep.subr.bf16.mxu0 0
        %1362 = vmatpush1.bf16.msra.mxu0 0
        %1363 = vmatprep.subr.bf16.mxu0 0
        %1364 = vmatpush1.bf16.msra.mxu0 0
        %1365 = vmatprep.subr.bf16.mxu0 0
        %1366 = vmatpush1.bf16.msra.mxu0 0
        %1367 = vmatprep.mubr.bf16.mxu0 0
        %1368 = vmatmul.mubr.bf16.gmra.mrb[0].mxu0 %v1333
        %v1369 = vpop.f32.mrb[0].mxu0
        %v1370 = vadd.f32 0.0, %v1369
        %v1371 = vpop.f32.mrb[0].mxu0
        %v1372 = vpop.f32.mrb[0].mxu0
        %v1373 = vpop.f32.mrb[0].mxu0
        %1374 = vdwg.mxu0
        %v1375 = vadd.f32 %v1327, %v1370
        %v1376 = vxor.u32 %v1375, 2147483648
        %v1377 = vmul.f32 %v1376, 1.442695
        %v1378 = vpow.pop %v1377
        %v1379 = vadd.f32 %v1378, 1.0
        %v1380 = vrcp.pop %v1379
        %v1381 = vmul.f32 1.0, %v1380
        %v1382 = vtanh.pop %v1375
        %v1383 = vmul.f32 %v1381, %v1250
        %1385 = vrot.lane.b32.xlu0 %v1382, 96
        %v1386 = vpop.permute.xlu0 %1385
        %v1388 = vmul.f32 %v1381, %v1386
        %1390 = vrot.lane.b32.xlu0 %v1388, 16
        %v1391 = vpop.permute.xlu0 %1390
        %v1393 = vadd.f32 %v1383, %v1391
        %v1394 = vtanh.pop %v1393
        %1396 = vrot.lane.b32.xlu0 %v1394, 32
        %v1397 = vpop.permute.xlu0 %1396
        %v1399 = vmul.f32 %v1381, %v1397
        %v1400 = vsel %vm642, %v1399, %v1249
        %v1401 = vsel %vm642, %v1393, %v1250
        %v1402 = vrot.slane %v1162, 1
        %v1403 = vpack.c.bf16 %v1325, %v1325
        %1405 = vrot.lane.b32.xlu0 %v1403, 80
        %v1406 = vpop.permute.xlu0 %1405
        %v1408 = vsel %vm572, %v1406, 0
        %1410 = vmatprep.subr.bf16.mxu0 0
        %1411 = vmatpush1.bf16.msra.mxu0 %v1256
        %1412 = vmatprep.subr.bf16.mxu0 0
        %1413 = vmatpush1.bf16.msra.mxu0 0
        %1414 = vmatprep.subr.bf16.mxu0 0
        %1415 = vmatpush1.bf16.msra.mxu0 0
        %1416 = vmatprep.subr.bf16.mxu0 0
        %1417 = vmatpush1.bf16.msra.mxu0 0
        %1418 = vmatprep.subr.bf16.mxu0 0
        %1419 = vmatpush1.bf16.msra.mxu0 0
        %1420 = vmatprep.subr.bf16.mxu0 0
        %1421 = vmatpush1.bf16.msra.mxu0 0
        %1422 = vmatprep.subr.bf16.mxu0 0
        %1423 = vmatpush1.bf16.msra.mxu0 0
        %1424 = vmatprep.subr.bf16.mxu0 0
        %1425 = vmatpush1.bf16.msra.mxu0 0
        %1426 = vmatprep.subr.bf16.mxu0 0
        %1427 = vmatpush1.bf16.msra.mxu0 0
        %1428 = vmatprep.subr.bf16.mxu0 0
        %1429 = vmatpush1.bf16.msra.mxu0 0
        %1430 = vmatprep.subr.bf16.mxu0 0
        %1431 = vmatpush1.bf16.msra.mxu0 0
        %1432 = vmatprep.subr.bf16.mxu0 0
        %1433 = vmatpush1.bf16.msra.mxu0 0
        %1434 = vmatprep.subr.bf16.mxu0 0
        %1435 = vmatpush1.bf16.msra.mxu0 0
        %1436 = vmatprep.subr.bf16.mxu0 0
        %1437 = vmatpush1.bf16.msra.mxu0 0
        %1438 = vmatprep.subr.bf16.mxu0 0
        %1439 = vmatpush1.bf16.msra.mxu0 0
        %1440 = vmatprep.subr.bf16.mxu0 0
        %1441 = vmatpush1.bf16.msra.mxu0 0
        %1442 = vmatprep.mubr.bf16.mxu0 0
        %1443 = vmatmul.mubr.bf16.gmra.mrb[0].mxu0 %v1408
        %v1444 = vpop.f32.mrb[0].mxu0
        %v1445 = vadd.f32 0.0, %v1444
        %v1446 = vpop.f32.mrb[0].mxu0
        %v1447 = vpop.f32.mrb[0].mxu0
        %v1448 = vpop.f32.mrb[0].mxu0
        %1449 = vdwg.mxu0
        %v1450 = vadd.f32 %v1402, %v1445
        %v1451 = vxor.u32 %v1450, 2147483648
        %v1452 = vmul.f32 %v1451, 1.442695
        %v1453 = vpow.pop %v1452
        %v1454 = vadd.f32 %v1453, 1.0
        %v1455 = vrcp.pop %v1454
        %v1456 = vmul.f32 1.0, %v1455
        %v1457 = vtanh.pop %v1450
        %v1458 = vmul.f32 %v1456, %v1326
        %1460 = vrot.lane.b32.xlu0 %v1457, 96
        %v1461 = vpop.permute.xlu0 %1460
        %v1463 = vmul.f32 %v1456, %v1461
        %1465 = vrot.lane.b32.xlu0 %v1463, 16
        %v1466 = vpop.permute.xlu0 %1465
        %v1468 = vadd.f32 %v1458, %v1466
        %v1469 = vtanh.pop %v1468
        %1471 = vrot.lane.b32.xlu0 %v1469, 32
        %v1472 = vpop.permute.xlu0 %1471
        %v1474 = vmul.f32 %v1456, %v1472
        %v1475 = vsel %vm718, %v1474, %v1325
        %v1476 = vsel %vm718, %v1468, %v1326
        %v1477 = vpack.c.bf16 %v1400, %v1400
        %1479 = vrot.lane.b32.xlu0 %v1477, 80
        %v1480 = vpop.permute.xlu0 %1479
        %v1482 = vsel %vm572, %v1480, 0
        %1484 = vmatprep.subr.bf16.mxu0 0
        %1485 = vmatpush1.bf16.msra.mxu0 %v1180
        %1486 = vmatprep.subr.bf16.mxu0 0
        %1487 = vmatpush1.bf16.msra.mxu0 0
        %1488 = vmatprep.subr.bf16.mxu0 0
        %1489 = vmatpush1.bf16.msra.mxu0 0
        %1490 = vmatprep.subr.bf16.mxu0 0
        %1491 = vmatpush1.bf16.msra.mxu0 0
        %1492 = vmatprep.subr.bf16.mxu0 0
        %1493 = vmatpush1.bf16.msra.mxu0 0
        %1494 = vmatprep.subr.bf16.mxu0 0
        %1495 = vmatpush1.bf16.msra.mxu0 0
        %1496 = vmatprep.subr.bf16.mxu0 0
        %1497 = vmatpush1.bf16.msra.mxu0 0
        %1498 = vmatprep.subr.bf16.mxu0 0
        %1499 = vmatpush1.bf16.msra.mxu0 0
        %1500 = vmatprep.subr.bf16.mxu0 0
        %1501 = vmatpush1.bf16.msra.mxu0 0
        %1502 = vmatprep.subr.bf16.mxu0 0
        %1503 = vmatpush1.bf16.msra.mxu0 0
        %1504 = vmatprep.subr.bf16.mxu0 0
        %1505 = vmatpush1.bf16.msra.mxu0 0
        %1506 = vmatprep.subr.bf16.mxu0 0
        %1507 = vmatpush1.bf16.msra.mxu0 0
        %1508 = vmatprep.subr.bf16.mxu0 0
        %1509 = vmatpush1.bf16.msra.mxu0 0
        %1510 = vmatprep.subr.bf16.mxu0 0
        %1511 = vmatpush1.bf16.msra.mxu0 0
        %1512 = vmatprep.subr.bf16.mxu0 0
        %1513 = vmatpush1.bf16.msra.mxu0 0
        %1514 = vmatprep.subr.bf16.mxu0 0
        %1515 = vmatpush1.bf16.msra.mxu0 0
        %1516 = vmatprep.mubr.bf16.mxu0 0
        %1517 = vmatmul.mubr.bf16.gmra.mrb[0].mxu0 %v1482
        %v1518 = vpop.f32.mrb[0].mxu0
        %v1519 = vadd.f32 0.0, %v1518
        %v1520 = vpop.f32.mrb[0].mxu0
        %v1521 = vpop.f32.mrb[0].mxu0
        %v1522 = vpop.f32.mrb[0].mxu0
        %1523 = vdwg.mxu0
        %v1524 = vadd.f32 %v1104, %v1519
        %v1525 = vxor.u32 %v1524, 2147483648
        %v1526 = vmul.f32 %v1525, 1.442695
        %v1527 = vpow.pop %v1526
        %v1528 = vadd.f32 %v1527, 1.0
        %v1529 = vrcp.pop %v1528
        %v1530 = vmul.f32 1.0, %v1529
        %v1531 = vtanh.pop %v1524
        %v1532 = vmul.f32 %v1530, %v1401
        %1534 = vrot.lane.b32.xlu0 %v1531, 96
        %v1535 = vpop.permute.xlu0 %1534
        %v1537 = vmul.f32 %v1530, %v1535
        %1539 = vrot.lane.b32.xlu0 %v1537, 16
        %v1540 = vpop.permute.xlu0 %1539
        %v1542 = vadd.f32 %v1532, %v1540
        %v1543 = vtanh.pop %v1542
        %1545 = vrot.lane.b32.xlu0 %v1543, 32
        %v1546 = vpop.permute.xlu0 %1545
        %v1548 = vmul.f32 %v1530, %v1546
        %v1549 = vsel %vm797, %v1548, %v1400
        %v1550 = vsel %vm797, %v1542, %v1401
        %v1551 = vpack.c.bf16 %v1475, %v1475
        %1553 = vrot.lane.b32.xlu0 %v1551, 80
        %v1554 = vpop.permute.xlu0 %1553
        %v1556 = vsel %vm572, %v1554, 0
        %1558 = vmatprep.subr.bf16.mxu0 0
        %1559 = vmatpush1.bf16.msra.mxu0 %v1256
        %1560 = vmatprep.subr.bf16.mxu0 0
        %1561 = vmatpush1.bf16.msra.mxu0 0
        %1562 = vmatprep.subr.bf16.mxu0 0
        %1563 = vmatpush1.bf16.msra.mxu0 0
        %1564 = vmatprep.subr.bf16.mxu0 0
        %1565 = vmatpush1.bf16.msra.mxu0 0
        %1566 = vmatprep.subr.bf16.mxu0 0
        %1567 = vmatpush1.bf16.msra.mxu0 0
        %1568 = vmatprep.subr.bf16.mxu0 0
        %1569 = vmatpush1.bf16.msra.mxu0 0
        %1570 = vmatprep.subr.bf16.mxu0 0
        %1571 = vmatpush1.bf16.msra.mxu0 0
        %1572 = vmatprep.subr.bf16.mxu0 0
        %1573 = vmatpush1.bf16.msra.mxu0 0
        %1574 = vmatprep.subr.bf16.mxu0 0
        %1575 = vmatpush1.bf16.msra.mxu0 0
        %1576 = vmatprep.subr.bf16.mxu0 0
        %1577 = vmatpush1.bf16.msra.mxu0 0
        %1578 = vmatprep.subr.bf16.mxu0 0
        %1579 = vmatpush1.bf16.msra.mxu0 0
        %1580 = vmatprep.subr.bf16.mxu0 0
        %1581 = vmatpush1.bf16.msra.mxu0 0
        %1582 = vmatprep.subr.bf16.mxu0 0
        %1583 = vmatpush1.bf16.msra.mxu0 0
        %1584 = vmatprep.subr.bf16.mxu0 0
        %1585 = vmatpush1.bf16.msra.mxu0 0
        %1586 = vmatprep.subr.bf16.mxu0 0
        %1587 = vmatpush1.bf16.msra.mxu0 0
        %1588 = vmatprep.subr.bf16.mxu0 0
        %1589 = vmatpush1.bf16.msra.mxu0 0
        %1590 = vmatprep.mubr.bf16.mxu0 0
        %1591 = vmatmul.mubr.bf16.gmra.mrb[0].mxu0 %v1556
        %v1592 = vpop.f32.mrb[0].mxu0
        %v1593 = vadd.f32 0.0, %v1592
        %v1594 = vpop.f32.mrb[0].mxu0
        %v1595 = vpop.f32.mrb[0].mxu0
        %v1596 = vpop.f32.mrb[0].mxu0
        %1597 = vdwg.mxu0
        %v1598 = vadd.f32 %v1162, %v1593
        %v1599 = vxor.u32 %v1598, 2147483648
        %v1600 = vmul.f32 %v1599, 1.442695
        %v1601 = vpow.pop %v1600
        %v1602 = vadd.f32 %v1601, 1.0
        %v1603 = vrcp.pop %v1602
        %v1604 = vmul.f32 1.0, %v1603
        %v1605 = vtanh.pop %v1598
        %v1606 = vmul.f32 %v1604, %v1476
        %1608 = vrot.lane.b32.xlu0 %v1605, 96
        %v1609 = vpop.permute.xlu0 %1608
        %v1611 = vmul.f32 %v1604, %v1609
        %1613 = vrot.lane.b32.xlu0 %v1611, 16
        %v1614 = vpop.permute.xlu0 %1613
        %v1616 = vadd.f32 %v1606, %v1614
        %v1617 = vtanh.pop %v1616
        %1619 = vrot.lane.b32.xlu0 %v1617, 32
        %v1620 = vpop.permute.xlu0 %1619
        %v1622 = vmul.f32 %v1604, %v1620
        %v1623 = vsel %vm797, %v1622, %v1475
        %v1624 = vsel %vm797, %v1616, %v1476
        %v1625 = vrot.slane %v1104, 1
        %v1626 = vpack.c.bf16 %v1549, %v1549
        %1628 = vrot.lane.b32.xlu0 %v1626, 80
        %v1629 = vpop.permute.xlu0 %1628
        %v1631 = vsel %vm572, %v1629, 0
        %1633 = vmatprep.subr.bf16.mxu0 0
        %1634 = vmatpush1.bf16.msra.mxu0 %v1180
        %1635 = vmatprep.subr.bf16.mxu0 0
        %1636 = vmatpush1.bf16.msra.mxu0 0
        %1637 = vmatprep.subr.bf16.mxu0 0
        %1638 = vmatpush1.bf16.msra.mxu0 0
        %1639 = vmatprep.subr.bf16.mxu0 0
        %1640 = vmatpush1.bf16.msra.mxu0 0
        %1641 = vmatprep.subr.bf16.mxu0 0
        %1642 = vmatpush1.bf16.msra.mxu0 0
        %1643 = vmatprep.subr.bf16.mxu0 0
        %1644 = vmatpush1.bf16.msra.mxu0 0
        %1645 = vmatprep.subr.bf16.mxu0 0
        %1646 = vmatpush1.bf16.msra.mxu0 0
        %1647 = vmatprep.subr.bf16.mxu0 0
        %1648 = vmatpush1.bf16.msra.mxu0 0
        %1649 = vmatprep.subr.bf16.mxu0 0
        %1650 = vmatpush1.bf16.msra.mxu0 0
        %1651 = vmatprep.subr.bf16.mxu0 0
        %1652 = vmatpush1.bf16.msra.mxu0 0
        %1653 = vmatprep.subr.bf16.mxu0 0
        %1654 = vmatpush1.bf16.msra.mxu0 0
        %1655 = vmatprep.subr.bf16.mxu0 0
        %1656 = vmatpush1.bf16.msra.mxu0 0
        %1657 = vmatprep.subr.bf16.mxu0 0
        %1658 = vmatpush1.bf16.msra.mxu0 0
        %1659 = vmatprep.subr.bf16.mxu0 0
        %1660 = vmatpush1.bf16.msra.mxu0 0
        %1661 = vmatprep.subr.bf16.mxu0 0
        %1662 = vmatpush1.bf16.msra.mxu0 0
        %1663 = vmatprep.subr.bf16.mxu0 0
        %1664 = vmatpush1.bf16.msra.mxu0 0
        %1665 = vmatprep.mubr.bf16.mxu0 0
        %1666 = vmatmul.mubr.bf16.gmra.mrb[0].mxu0 %v1631
        %v1667 = vpop.f32.mrb[0].mxu0
        %v1668 = vadd.f32 0.0, %v1667
        %v1669 = vpop.f32.mrb[0].mxu0
        %v1670 = vpop.f32.mrb[0].mxu0
        %v1671 = vpop.f32.mrb[0].mxu0
        %1672 = vdwg.mxu0
        %v1673 = vadd.f32 %v1625, %v1668
        %v1674 = vxor.u32 %v1673, 2147483648
        %v1675 = vmul.f32 %v1674, 1.442695
        %v1676 = vpow.pop %v1675
        %v1677 = vadd.f32 %v1676, 1.0
        %v1678 = vrcp.pop %v1677
        %v1679 = vmul.f32 1.0, %v1678
        %v1680 = vtanh.pop %v1673
        %v1681 = vmul.f32 %v1679, %v1550
        %1683 = vrot.lane.b32.xlu0 %v1680, 96
        %v1684 = vpop.permute.xlu0 %1683
        %v1686 = vmul.f32 %v1679, %v1684
        %1688 = vrot.lane.b32.xlu0 %v1686, 16
        %v1689 = vpop.permute.xlu0 %1688
        %v1691 = vadd.f32 %v1681, %v1689
        %v1692 = vtanh.pop %v1691
        %1694 = vrot.lane.b32.xlu0 %v1692, 32
        %v1695 = vpop.permute.xlu0 %1694
        %v1697 = vmul.f32 %v1679, %v1695
        %v1698 = vsel %vm718, %v1697, %v1549
        %v1699 = vsel %vm718, %v1691, %v1550
        %v1700 = vrot.slane %v1162, 7
        %v1701 = vpack.c.bf16 %v1623, %v1623
        %1703 = vrot.lane.b32.xlu0 %v1701, 80
        %v1704 = vpop.permute.xlu0 %1703
        %v1706 = vsel %vm572, %v1704, 0
        %1708 = vmatprep.subr.bf16.mxu0 0
        %1709 = vmatpush1.bf16.msra.mxu0 %v1256
        %1710 = vmatprep.subr.bf16.mxu0 0
        %1711 = vmatpush1.bf16.msra.mxu0 0
        %1712 = vmatprep.subr.bf16.mxu0 0
        %1713 = vmatpush1.bf16.msra.mxu0 0
        %1714 = vmatprep.subr.bf16.mxu0 0
        %1715 = vmatpush1.bf16.msra.mxu0 0
        %1716 = vmatprep.subr.bf16.mxu0 0
        %1717 = vmatpush1.bf16.msra.mxu0 0
        %1718 = vmatprep.subr.bf16.mxu0 0
        %1719 = vmatpush1.bf16.msra.mxu0 0
        %1720 = vmatprep.subr.bf16.mxu0 0
        %1721 = vmatpush1.bf16.msra.mxu0 0
        %1722 = vmatprep.subr.bf16.mxu0 0
        %1723 = vmatpush1.bf16.msra.mxu0 0
        %1724 = vmatprep.subr.bf16.mxu0 0
        %1725 = vmatpush1.bf16.msra.mxu0 0
        %1726 = vmatprep.subr.bf16.mxu0 0
        %1727 = vmatpush1.bf16.msra.mxu0 0
        %1728 = vmatprep.subr.bf16.mxu0 0
        %1729 = vmatpush1.bf16.msra.mxu0 0
        %1730 = vmatprep.subr.bf16.mxu0 0
        %1731 = vmatpush1.bf16.msra.mxu0 0
        %1732 = vmatprep.subr.bf16.mxu0 0
        %1733 = vmatpush1.bf16.msra.mxu0 0
        %1734 = vmatprep.subr.bf16.mxu0 0
        %1735 = vmatpush1.bf16.msra.mxu0 0
        %1736 = vmatprep.subr.bf16.mxu0 0
        %1737 = vmatpush1.bf16.msra.mxu0 0
        %1738 = vmatprep.subr.bf16.mxu0 0
        %1739 = vmatpush1.bf16.msra.mxu0 0
        %1740 = vmatprep.mubr.bf16.mxu0 0
        %1741 = vmatmul.mubr.bf16.gmra.mrb[0].mxu0 %v1706
        %v1742 = vpop.f32.mrb[0].mxu0
        %v1743 = vadd.f32 0.0, %v1742
        %v1744 = vpop.f32.mrb[0].mxu0
        %v1745 = vpop.f32.mrb[0].mxu0
        %v1746 = vpop.f32.mrb[0].mxu0
        %1747 = vdwg.mxu0
        %v1748 = vadd.f32 %v1700, %v1743
        %v1749 = vxor.u32 %v1748, 2147483648
        %v1750 = vmul.f32 %v1749, 1.442695
        %v1751 = vpow.pop %v1750
        %v1752 = vadd.f32 %v1751, 1.0
        %v1753 = vrcp.pop %v1752
        %v1754 = vmul.f32 1.0, %v1753
        %v1755 = vtanh.pop %v1748
        %v1756 = vmul.f32 %v1754, %v1624
        %1758 = vrot.lane.b32.xlu0 %v1755, 96
        %v1759 = vpop.permute.xlu0 %1758
        %v1761 = vmul.f32 %v1754, %v1759
        %1763 = vrot.lane.b32.xlu0 %v1761, 16
        %v1764 = vpop.permute.xlu0 %1763
        %v1766 = vadd.f32 %v1756, %v1764
        %v1767 = vtanh.pop %v1766
        %1769 = vrot.lane.b32.xlu0 %v1767, 32
        %v1770 = vpop.permute.xlu0 %1769
        %v1772 = vmul.f32 %v1754, %v1770
        %v1773 = vsel %vm642, %v1772, %v1623
        %v1774 = vsel %vm642, %v1766, %v1624
        %v1775 = vrot.slane %v1104, 2
        %v1776 = vpack.c.bf16 %v1698, %v1698
        %1778 = vrot.lane.b32.xlu0 %v1776, 80
        %v1779 = vpop.permute.xlu0 %1778
        %v1781 = vsel %vm572, %v1779, 0
        %1783 = vmatprep.subr.bf16.mxu0 0
        %1784 = vmatpush1.bf16.msra.mxu0 %v1180
        %1785 = vmatprep.subr.bf16.mxu0 0
        %1786 = vmatpush1.bf16.msra.mxu0 0
        %1787 = vmatprep.subr.bf16.mxu0 0
        %1788 = vmatpush1.bf16.msra.mxu0 0
        %1789 = vmatprep.subr.bf16.mxu0 0
        %1790 = vmatpush1.bf16.msra.mxu0 0
        %1791 = vmatprep.subr.bf16.mxu0 0
        %1792 = vmatpush1.bf16.msra.mxu0 0
        %1793 = vmatprep.subr.bf16.mxu0 0
        %1794 = vmatpush1.bf16.msra.mxu0 0
        %1795 = vmatprep.subr.bf16.mxu0 0
        %1796 = vmatpush1.bf16.msra.mxu0 0
        %1797 = vmatprep.subr.bf16.mxu0 0
        %1798 = vmatpush1.bf16.msra.mxu0 0
        %1799 = vmatprep.subr.bf16.mxu0 0
        %1800 = vmatpush1.bf16.msra.mxu0 0
        %1801 = vmatprep.subr.bf16.mxu0 0
        %1802 = vmatpush1.bf16.msra.mxu0 0
        %1803 = vmatprep.subr.bf16.mxu0 0
        %1804 = vmatpush1.bf16.msra.mxu0 0
        %1805 = vmatprep.subr.bf16.mxu0 0
        %1806 = vmatpush1.bf16.msra.mxu0 0
        %1807 = vmatprep.subr.bf16.mxu0 0
        %1808 = vmatpush1.bf16.msra.mxu0 0
        %1809 = vmatprep.subr.bf16.mxu0 0
        %1810 = vmatpush1.bf16.msra.mxu0 0
        %1811 = vmatprep.subr.bf16.mxu0 0
        %1812 = vmatpush1.bf16.msra.mxu0 0
        %1813 = vmatprep.subr.bf16.mxu0 0
        %1814 = vmatpush1.bf16.msra.mxu0 0
        %1815 = vmatprep.mubr.bf16.mxu0 0
        %1816 = vmatmul.mubr.bf16.gmra.mrb[0].mxu0 %v1781
        %v1817 = vpop.f32.mrb[0].mxu0
        %v1818 = vadd.f32 0.0, %v1817
        %v1819 = vpop.f32.mrb[0].mxu0
        %v1820 = vpop.f32.mrb[0].mxu0
        %v1821 = vpop.f32.mrb[0].mxu0
        %1822 = vdwg.mxu0
        %v1823 = vadd.f32 %v1775, %v1818
        %v1824 = vxor.u32 %v1823, 2147483648
        %v1825 = vmul.f32 %v1824, 1.442695
        %v1826 = vpow.pop %v1825
        %v1827 = vadd.f32 %v1826, 1.0
        %v1828 = vrcp.pop %v1827
        %v1829 = vmul.f32 1.0, %v1828
        %v1830 = vtanh.pop %v1823
        %v1831 = vmul.f32 %v1829, %v1699
        %1833 = vrot.lane.b32.xlu0 %v1830, 96
        %v1834 = vpop.permute.xlu0 %1833
        %v1836 = vmul.f32 %v1829, %v1834
        %1838 = vrot.lane.b32.xlu0 %v1836, 16
        %v1839 = vpop.permute.xlu0 %1838
        %v1841 = vadd.f32 %v1831, %v1839
        %v1842 = vtanh.pop %v1841
        %1844 = vrot.lane.b32.xlu0 %v1842, 32
        %v1845 = vpop.permute.xlu0 %1844
        %v1847 = vmul.f32 %v1829, %v1845
        %v1848 = vsel %vm1324, %v1847, %v1698
        %v1849 = vrot.slane %v1162, 6
        %v1850 = vpack.c.bf16 %v1773, %v1773
        %1852 = vrot.lane.b32.xlu0 %v1850, 80
        %v1853 = vpop.permute.xlu0 %1852
        %v1855 = vsel %vm572, %v1853, 0
        %1857 = vmatprep.subr.bf16.mxu0 0
        %1858 = vmatpush1.bf16.msra.mxu0 %v1256
        %1859 = vmatprep.subr.bf16.mxu0 0
        %1860 = vmatpush1.bf16.msra.mxu0 0
        %1861 = vmatprep.subr.bf16.mxu0 0
        %1862 = vmatpush1.bf16.msra.mxu0 0
        %1863 = vmatprep.subr.bf16.mxu0 0
        %1864 = vmatpush1.bf16.msra.mxu0 0
        %1865 = vmatprep.subr.bf16.mxu0 0
        %1866 = vmatpush1.bf16.msra.mxu0 0
        %1867 = vmatprep.subr.bf16.mxu0 0
        %1868 = vmatpush1.bf16.msra.mxu0 0
        %1869 = vmatprep.subr.bf16.mxu0 0
        %1870 = vmatpush1.bf16.msra.mxu0 0
        %1871 = vmatprep.subr.bf16.mxu0 0
        %1872 = vmatpush1.bf16.msra.mxu0 0
        %1873 = vmatprep.subr.bf16.mxu0 0
        %1874 = vmatpush1.bf16.msra.mxu0 0
        %1875 = vmatprep.subr.bf16.mxu0 0
        %1876 = vmatpush1.bf16.msra.mxu0 0
        %1877 = vmatprep.subr.bf16.mxu0 0
        %1878 = vmatpush1.bf16.msra.mxu0 0
        %1879 = vmatprep.subr.bf16.mxu0 0
        %1880 = vmatpush1.bf16.msra.mxu0 0
        %1881 = vmatprep.subr.bf16.mxu0 0
        %1882 = vmatpush1.bf16.msra.mxu0 0
        %1883 = vmatprep.subr.bf16.mxu0 0
        %1884 = vmatpush1.bf16.msra.mxu0 0
        %1885 = vmatprep.subr.bf16.mxu0 0
        %1886 = vmatpush1.bf16.msra.mxu0 0
        %1887 = vmatprep.subr.bf16.mxu0 0
        %1888 = vmatpush1.bf16.msra.mxu0 0
        %1889 = vmatprep.mubr.bf16.mxu0 0
        %1890 = vmatmul.mubr.bf16.gmra.mrb[0].mxu0 %v1855
        %v1891 = vpop.f32.mrb[0].mxu0
        %v1892 = vadd.f32 0.0, %v1891
        %v1893 = vpop.f32.mrb[0].mxu0
        %v1894 = vpop.f32.mrb[0].mxu0
        %v1895 = vpop.f32.mrb[0].mxu0
        %1896 = vdwg.mxu0
        %v1897 = vadd.f32 %v1849, %v1892
        %v1898 = vxor.u32 %v1897, 2147483648
        %v1899 = vmul.f32 %v1898, 1.442695
        %v1900 = vpow.pop %v1899
        %v1901 = vadd.f32 %v1900, 1.0
        %v1902 = vrcp.pop %v1901
        %v1903 = vmul.f32 1.0, %v1902
        %v1904 = vtanh.pop %v1897
        %v1905 = vmul.f32 %v1903, %v1774
        %1907 = vrot.lane.b32.xlu0 %v1904, 96
        %v1908 = vpop.permute.xlu0 %1907
        %v1910 = vmul.f32 %v1903, %v1908
        %1912 = vrot.lane.b32.xlu0 %v1910, 16
        %v1913 = vpop.permute.xlu0 %1912
        %v1915 = vadd.f32 %v1905, %v1913
        %v1916 = vtanh.pop %v1915
        %1918 = vrot.lane.b32.xlu0 %v1916, 32
        %v1919 = vpop.permute.xlu0 %1918
        %v1921 = vmul.f32 %v1903, %v1919
        %v1922 = vsel %vm1248, %v1921, %v1773
        %1924 = vrot.lane.b32.xlu0 %v1848, 80
        %v1925 = vpop.permute.xlu0 %1924
        %1928 = vrot.lane.b32.xlu0 %v1922, 96
        %v1929 = vpop.permute.xlu0 %1928
        %v1931 = vsel %vm572, %v1925, %v1929
        %v1932 = vmul.f32 %v407, %v1030
        %v1933 = vsel %vm455, %v1932, 0.0
        %1934 = vadd.xlane.f32.xlu0 %v1933
        %v1935 = vpop.xlane.xlu0 %1934
        %v1936 = vmul.f32 %v1935, 0.17677669
        %v1937 = vmul.f32 %v407, %v1931
        %v1938 = vsel %vm455, %v1937, 0.0
        %1939 = vadd.xlane.f32.xlu0 %v1938
        %v1940 = vpop.xlane.xlu0 %1939
        %v1941 = vmul.f32 %v1940, 0.17677669
        %vm1942 = vcmask 7168
        %v1943 = vsel %vm1942, %v1936, %v1941
        %vm1944 = vcmask 15360
        %v1945 = vsel %vm1944, %v1943, -inf
        %1946 = vmax.xlane.f32.xlu0 %v1945
        %v1947 = vpop.xlane.xlu0 %1946
        %v1948 = vsub.f32 %v1943, %v1947
        %v1949 = vmul.f32 %v1948, 1.442695
        %v1950 = vpow.pop %v1949
        %v1951 = vsel %vm1944, %v1950, 0.0
        %1952 = vadd.xlane.f32.xlu0 %v1951
        %v1953 = vpop.xlane.xlu0 %1952
        %v1954 = vrcp.pop %v1953
        %v1955 = vmul.f32 %v1950, %v1954
        %1957 = vset.pattern.permute.xlu0 0
        %1958 = vperm.xlu0 %1957, %v1955
        %v1959 = vpop.permute.xlu0 %1958
        %v1961 = vmul.f32 %v1959, %v1030
        %v1962 = vadd.f32 %v1961, 0.0
        %1963 = vset.pattern.permute.xlu0 1
        %1964 = vperm.xlu0 %1963, %v1955
        %v1965 = vpop.permute.xlu0 %1964
        %v1967 = vmul.f32 %v1965, %v1931
        %v1968 = vadd.f32 %v1962, %v1967
        %v1969 = vadd.f32 %v407, %v1968
        %v1970 = vpack.c.bf16 %v1969, %v1969
        %v1971 = vld [vmem:[#allocation10] sm:$0xf]
        %v1972 = vld [vmem:[#allocation10 + $0x4] sm:$0xf]
        %v1973 = vld [vmem:[#allocation10 + $0x8] sm:$0xf]
        %v1974 = vld [vmem:[#allocation10 + $0xc] sm:$0xf]
        %v1975 = vld [vmem:[%s8] sm:$0x1]
        %v1977 = vlaneseq
        %v1978 = vshrl.u32 %v1977, 7
        %v1979 = vsub.s32 0, %v1978
        %v1980 = vrot.slane %v1975, %v1979
        %v1986 = vunpack.c.l.b16 %v1971
        %v1987 = vunpack.c.l.b16 %v1972
        %v1988 = vunpack.c.l.b16 %v1973
        %v1989 = vunpack.c.l.b16 %v1974
        %v1990 = vpack.c.b16 %v1987, %v1986
        %v1991 = vpack.c.b16 %v1989, %v1988
        %v1995 = vsel %vm455, %v1970, 0
        %1997 = vmatprep.subr.bf16.mxu0 0
        %1998 = vmatpush1.bf16.msra.mxu0 %v1990
        %1999 = vmatprep.subr.bf16.mxu0 0
        %2000 = vmatpush1.bf16.msra.mxu0 %v1991
        %2001 = vmatprep.subr.bf16.mxu0 0
        %2002 = vmatpush1.bf16.msra.mxu0 0
        %2003 = vmatprep.subr.bf16.mxu0 0
        %2004 = vmatpush1.bf16.msra.mxu0 0
        %2005 = vmatprep.subr.bf16.mxu0 0
        %2006 = vmatpush1.bf16.msra.mxu0 0
        %2007 = vmatprep.subr.bf16.mxu0 0
        %2008 = vmatpush1.bf16.msra.mxu0 0
        %2009 = vmatprep.subr.bf16.mxu0 0
        %2010 = vmatpush1.bf16.msra.mxu0 0
        %2011 = vmatprep.subr.bf16.mxu0 0
        %2012 = vmatpush1.bf16.msra.mxu0 0
        %2013 = vmatprep.subr.bf16.mxu0 0
        %2014 = vmatpush1.bf16.msra.mxu0 0
        %2015 = vmatprep.subr.bf16.mxu0 0
        %2016 = vmatpush1.bf16.msra.mxu0 0
        %2017 = vmatprep.subr.bf16.mxu0 0
        %2018 = vmatpush1.bf16.msra.mxu0 0
        %2019 = vmatprep.subr.bf16.mxu0 0
        %2020 = vmatpush1.bf16.msra.mxu0 0
        %2021 = vmatprep.subr.bf16.mxu0 0
        %2022 = vmatpush1.bf16.msra.mxu0 0
        %2023 = vmatprep.subr.bf16.mxu0 0
        %2024 = vmatpush1.bf16.msra.mxu0 0
        %2025 = vmatprep.subr.bf16.mxu0 0
        %2026 = vmatpush1.bf16.msra.mxu0 0
        %2027 = vmatprep.subr.bf16.mxu0 0
        %2028 = vmatpush1.bf16.msra.mxu0 0
        %2029 = vmatprep.mubr.bf16.mxu0 0
        %2030 = vmatmul.mubr.bf16.gmra.mrb[0].mxu0 %v1995
        %v2031 = vpop.f32.mrb[0].mxu0
        %v2032 = vadd.f32 %v1980, %v2031
        %v2033 = vpop.f32.mrb[0].mxu0
        %v2034 = vpop.f32.mrb[0].mxu0
        %v2035 = vpop.f32.mrb[0].mxu0
        %2036 = vdwg.mxu0
        %2037 = vst [vmem:[%s405] sm:$0xff] %v2032
        %s2038 = sand.u32 %s230, 1
        %s2039 = scalar_lea.sflag [#allocation4], %s2038
        %s2040 = sand.u32 %s230, 1
        %s2041 = smul.addr %s2040, 8
        %s2042 = scalar_lea.vmem [#allocation11], %s2041
        // Predicated region
        $region77: #{tpu_custom_call.1} parent=55 // pred_check
          %p2043 = pneg %p240
        $region78: #{tpu_custom_call.1} parent=55 // pred_check_branch
          %2045 = sbr.rel (%p2043) target = $region80
        $region79: #{tpu_custom_call.1} parent=55 // pred_region
          %s2047 = ssub.s32 128, 128
          %2048 = vsyncadd %s2039, %s2047
          %s2049 = smul.addr %s28, 128
          %s2050 = scalar_lea.hbm %s9, %s2049
          %s2052 = sshll.u32 %s2042, 4
          %s2053 = int_to_ptr.vmem [resolvable:$true] %s2052
          %2055 = dma.vmem_to_hbm [thread:$0]  %s2053, 128, %s2050, %s2039
        $region80: #{tpu_custom_call.1} parent=55 // pred_fallthru
          _
      $region56: #{tpu_custom_call.1} parent=5 // pred_fallthru
        _
      %p2056 = scmp.le.s32.totalorder 2, %s23
      // Predicated region
      $region81: #{tpu_custom_call.1} parent=5 // pred_check
        %p2057 = pneg %p2056
      $region82: #{tpu_custom_call.1} parent=5 // pred_check_branch
        %2059 = sbr.rel (%p2057) target = $region84
      $region83: #{tpu_custom_call.1} parent=5 // pred_region
        %s2060 = ssub.s32 %s23, 2
        // Predicated region
        $region85: #{tpu_custom_call.1} parent=83 // pred_check
          %p2061 = pneg %p246
        $region86: #{tpu_custom_call.1} parent=83 // pred_check_branch
          %2063 = sbr.rel (%p2061) target = $region88
        $region87: #{tpu_custom_call.1} parent=83 // pred_region
          %s2064 = sand.u32 %s231, 1
          %s2065 = scalar_lea.sflag [#allocation4], %s2064
          %s2066 = sand.u32 %s231, 1
          %s2067 = smul.addr %s2066, 8
          %s2068 = scalar_lea.vmem [#allocation11], %s2067
          %2069 = dma.done %s2065, 128
        $region88: #{tpu_custom_call.1} parent=83 // pred_fallthru
          _
      $region84: #{tpu_custom_call.1} parent=5 // pred_fallthru
        _
    $region6: #{tpu_custom_call.1} parent=1 // loop_footer
      %s27 = sadd.s32 1, %s23
    $region7: #{tpu_custom_call.1} parent=1 // loop_footer_branch
      %22 = sbr.rel target = $region3
    $region8: #{tpu_custom_call.1} parent=1 // loop_exit
      _
    %2070 = vsyncpa [#allocation3], 1
    %s2071 = scalar_lea.sflag [#allocation3], 1
    %2072 = vsyncpa %s2071, 1
    %2073 = vsyncpa [#allocation6], 1
    %2074 = vsyncpa [#allocation9], 1
    %2075 = vsyncpa [#allocation4], 1
    %s2076 = scalar_lea.sflag [#allocation4], 1
    %2077 = vsyncpa %s2076, 1

</llo_original>
